<compile_context>
chip_gen: v6e
topology: v6e:2x2x1
jax: 0.10.0
libtpu: 0.0.40
codegen_flags: <defaults>
</compile_context>

<pallas_src>
import functools
import math

import jax
import jax.numpy as jnp
from jax.experimental import pallas as pl
from jax.experimental.pallas import tpu as pltpu

ETA = 1e-6      # Constants.eta in the reference repo
LANE = 128      # TPU lane width; all matmul N dims padded to multiples of 128


# ------------------------------ Pallas kernels ------------------------------ #

def _dense_relu_kernel(x_ref, w_ref, b_ref, o_ref):
    """relu(x @ w + b): bf16 MXU operands, f32 accumulate/epilogue, bf16 store."""
    y = jnp.dot(x_ref[...], w_ref[...], preferred_element_type=jnp.float32)
    o_ref[...] = jnp.maximum(y + b_ref[...], 0.0).astype(o_ref.dtype)


def _tail_kernel(c3_ref, w3_ref, b3_ref, w4_ref, b4_ref, wh_ref, bh_ref,
                 mu_ref, lv_ref, *, d_real):
    """Fused conv3 + ReLU + conv4 + ReLU + (mu|logvar) heads + masked softmax."""
    bt, S, K3 = c3_ref.shape               # (batch tile, 16 spatial taps, 16*64)
    C4 = w3_ref.shape[1]                   # 128 channel lanes after conv3
    Dp = mu_ref.shape[-1]                  # 128 (padded latent dim)

    # conv3 (k4 s2 p1 on the 8x8 map) as one dense matmul over bt*16 rows.
    h3 = jnp.dot(c3_ref[...].reshape(bt * S, K3), w3_ref[...],
                 preferred_element_type=jnp.float32)
    h3 = jnp.maximum(h3 + b3_ref[...], 0.0).astype(jnp.bfloat16)
    h3 = h3.reshape(bt, S, C4)             # cheap: S=16 is a sublane multiple

    # conv4 (k4 s2 p0 on the 4x4 map -> 1x1): contract the 16 spatial taps with
    # per-tap (C4, C4) weights -- avoids a (16,128)->(1,2048) in-kernel relayout.
    acc = jnp.zeros((bt, C4), jnp.float32)
    for t in range(S):                     # static loop; 16 small MXU matmuls
        acc = acc + jnp.dot(h3[:, t, :], w4_ref[t],
                            preferred_element_type=jnp.float32)
    h4 = jnp.maximum(acc + b4_ref[...], 0.0)

    # mu | logvar as a single 256-wide head matmul, split by static lane slices.
    heads = jnp.dot(h4.astype(jnp.bfloat16), wh_ref[...],
                    preferred_element_type=jnp.float32) + bh_ref[...]
    mu = heads[:, :Dp]
    lg = heads[:, Dp:]

    # logvar head: softmax over the first d_real (un-padded) columns, + eta.
    col = jax.lax.broadcasted_iota(jnp.int32, lg.shape, 1)
    valid = col < d_real
    lg = jnp.where(valid, lg, -1e30)
    lg = lg - jnp.max(lg, axis=-1, keepdims=True)
    e = jnp.where(valid, jnp.exp(lg), 0.0)
    lv = e * pl.reciprocal(jnp.sum(e, axis=-1, keepdims=True), approx=True) + ETA

    mu_ref[...] = mu.astype(mu_ref.dtype)
    lv_ref[...] = lv.astype(lv_ref.dtype)


# ------------------------------ Pallas wrappers ----------------------------- #

def _m_tiles(M, cap, min_split=None):
    """Pick (tile_m, padded_M).  Prefers a divisor of M (no pad/slice copies),
    a multiple of 8 (clean sublane tiling), and >=2 grid steps when M is large
    enough to feed both v7x TensorCores."""
    limit = max(8, min(cap, M))
    if min_split is not None and M >= min_split:
        limit = min(limit, max(8, M // 2))
    if M <= limit:
        return M, M
    tm = limit - (limit % 8)
    while tm >= 8:
        if M % tm == 0:
            return tm, M
        tm -= 8
    tm = max(8, limit - (limit % 8))       # rare fallback: pad M up to a tile multiple
    return tm, ((M + tm - 1) // tm) * tm


def dense_relu(x, w, b, tile_cap):
    """relu(x @ w + b).  x:(M,K) bf16, w:(K,N) bf16, b:(1,N) f32.  N = 128."""
    M, K = x.shape
    N = w.shape[1]
    tm, Mp = _m_tiles(M, tile_cap, min_split=256)
    if Mp != M:
        x = jnp.pad(x, ((0, Mp - M), (0, 0)))
    out = pl.pallas_call(
        _dense_relu_kernel,
        out_shape=jax.ShapeDtypeStruct((Mp, N), jnp.bfloat16),
        grid=(Mp // tm,),
        in_specs=[
            pl.BlockSpec((tm, K), lambda i: (i, 0)),
            pl.BlockSpec((K, N), lambda i: (0, 0)),
            pl.BlockSpec((1, N), lambda i: (0, 0)),
        ],
        out_specs=pl.BlockSpec((tm, N), lambda i: (i, 0)),
        compiler_params=pltpu.CompilerParams(dimension_semantics=("parallel",)),
    )(x, w, b)
    return out if Mp == M else out[:M]


def tail_head(cols3, w3, b3, w4, b4, wh, bh, out_dim):
    """Fused conv3+conv4+heads.  cols3: (bs, 16, 1024) bf16 conv3 im2col patches."""
    bs, S, K3 = cols3.shape
    C4 = w3.shape[1]
    Dp2 = wh.shape[1]
    Dp = Dp2 // 2
    bt, Bp = _m_tiles(bs, cap=64, min_split=32)
    if Bp != bs:
        cols3 = jnp.pad(cols3, ((0, Bp - bs), (0, 0), (0, 0)))
    kern = functools.partial(_tail_kernel, d_real=out_dim)
    mu, lv = pl.pallas_call(
        kern,
        out_shape=(jax.ShapeDtypeStruct((Bp, Dp), jnp.float32),
                   jax.ShapeDtypeStruct((Bp, Dp), jnp.float32)),
        grid=(Bp // bt,),
        in_specs=[
            pl.BlockSpec((bt, S, K3), lambda i: (i, 0, 0)),
            pl.BlockSpec((K3, C4), lambda i: (0, 0)),
            pl.BlockSpec((1, C4), lambda i: (0, 0)),
            pl.BlockSpec((S, C4, C4), lambda i: (0, 0, 0)),
            pl.BlockSpec((1, C4), lambda i: (0, 0)),
            pl.BlockSpec((C4, Dp2), lambda i: (0, 0)),
            pl.BlockSpec((1, Dp2), lambda i: (0, 0)),
        ],
        out_specs=(pl.BlockSpec((bt, Dp), lambda i: (i, 0)),
                   pl.BlockSpec((bt, Dp), lambda i: (i, 0))),
        compiler_params=pltpu.CompilerParams(dimension_semantics=("parallel",)),
    )(cols3, w3, b3, w4, b4, wh, bh)
    return mu[:bs, :out_dim], lv[:bs, :out_dim]


# ------------------------------- JAX glue (jit) ------------------------------ #

def _im2col_nhwc(x, k, s, p, c_real):
    """x:(N,H,W,C) -> patches (N, Ho*Wo, k*k*c_real); taps use only the first
    c_real (real) channels so no zero-padded K is carried into the matmul."""
    N, H, W, C = x.shape
    Ho = (H + 2 * p - k) // s + 1
    Wo = (W + 2 * p - k) // s + 1
    if p:
        x = jnp.pad(x, ((0, 0), (p, p), (p, p), (0, 0)))
    taps = [x[:, di:di + (Ho - 1) * s + 1:s, dj:dj + (Wo - 1) * s + 1:s, :c_real]
            for di in range(k) for dj in range(k)]
    cols = jnp.stack(taps, axis=3)                       # (N, Ho, Wo, k*k, c_real)
    return cols.reshape(N, Ho * Wo, k * k * c_real), Ho, Wo


@functools.partial(jax.jit, static_argnums=(2,))
def enc_svhn_forward(params, x, out_dim):
    """x: (bs, 3, 32, 32) NCHW float -> (mu, logvar), each (bs, out_dim)."""
    bs = x.shape[0]
    h = jnp.transpose(x, (0, 2, 3, 1)).astype(jnp.bfloat16)           # NHWC, once
    h = jnp.pad(h, ((0, 0), (0, 0), (0, 0), (0, 8 - h.shape[-1])))    # C: 3 -> 8 (K=128)

    (w1, b1), (w2, b2) = params["convs"]
    cols, Ho, Wo = _im2col_nhwc(h, 4, 2, 1, 8)           # conv1: K = 16*8 = 128
    h = dense_relu(cols.reshape(bs * Ho * Wo, -1), w1, b1, tile_cap=2048)
    h = h.reshape(bs, Ho, Wo, -1)

    cols, Ho, Wo = _im2col_nhwc(h, 4, 2, 1, 32)          # conv2: K = 16*32 = 512
    h = dense_relu(cols.reshape(bs * Ho * Wo, -1), w2, b2, tile_cap=1024)
    h = h.reshape(bs, Ho, Wo, -1)

    cols3, _, _ = _im2col_nhwc(h, 4, 2, 1, 64)           # conv3: K = 16*64 = 1024
    w3, b3, w4, b4, wh, bh = params["tail"]
    return tail_head(cols3, w3, b3, w4, b4, wh, bh, out_dim)


# --------------------------- parameters & layout prep ------------------------ #

def init_raw_params(key, out_dim):
    """PyTorch-layout parameters: conv (Cout,Cin,kh,kw), linear (Dout,Din)."""
    ks = iter(jax.random.split(key, 16))

    def conv_w(cout, cin, k=4):
        fan = cin * k * k
        return jax.random.normal(next(ks), (cout, cin, k, k), jnp.float32) / math.sqrt(fan)

    def lin_w(dout, din):
        return jax.random.normal(next(ks), (dout, din), jnp.float32) / math.sqrt(din)

    def bias(n):
        return jax.random.normal(next(ks), (n,), jnp.float32) * 0.01

    return {
        "conv1": (conv_w(32, 3), bias(32)),
        "conv2": (conv_w(64, 32), bias(64)),
        "conv3": (conv_w(64, 64), bias(64)),
        "conv4": (conv_w(128, 64), bias(128)),
        "mu": (lin_w(out_dim, 128), bias(out_dim)),
        "logvar": (lin_w(out_dim, 128), bias(out_dim)),
    }


def prepare_params(raw):
    """One-time conversion to bf16 lane-dense (K, N) matmul layout.

    Only the output channels (N) are padded to 128; input channels keep their
    real count so K = 128 / 512 / 1024.  Padded output channels have zero
    weights + zero bias, so they carry exact zeros through ReLU.
    """
    def conv_mat(w, b, cin_pad, cout_pad):
        cout, cin, kh, kw = w.shape
        wt = jnp.transpose(w, (2, 3, 1, 0))                              # (kh,kw,Cin,Cout)
        wt = jnp.pad(wt, ((0, 0), (0, 0), (0, cin_pad - cin), (0, cout_pad - cout)))
        return (wt.reshape(kh * kw * cin_pad, cout_pad).astype(jnp.bfloat16),
                jnp.pad(b, (0, cout_pad - cout)).reshape(1, cout_pad).astype(jnp.float32))

    w1, b1 = conv_mat(*raw["conv1"], 8, LANE)        # K = 128,  N = 128
    w2, b2 = conv_mat(*raw["conv2"], 32, LANE)       # K = 512,  N = 128
    w3, b3 = conv_mat(*raw["conv3"], 64, LANE)       # K = 1024, N = 128

    # conv4 as per-tap weights (16, 128, 128); cin padded to 128 to match the
    # (zero-padded) conv3 output lanes -- padded lanes are exact zeros.
    w4r, b4r = raw["conv4"]
    cout4, cin4, kh, kw = w4r.shape
    w4 = jnp.transpose(w4r, (2, 3, 1, 0))                                # (4,4,64,128)
    w4 = jnp.pad(w4, ((0, 0), (0, 0), (0, LANE - cin4), (0, 0)))
    w4 = w4.reshape(kh * kw, LANE, cout4).astype(jnp.bfloat16)           # (16,128,128)
    b4 = b4r.reshape(1, cout4).astype(jnp.float32)

    # mu | logvar concatenated into one (128, 2*Dp) head.
    d = raw["mu"][0].shape[0]
    dp = -(-d // LANE) * LANE

    def head_mat(w, b):
        return jnp.pad(w.T, ((0, 0), (0, dp - d))), jnp.pad(b, (0, dp - d))

    wm, bm = head_mat(*raw["mu"])
    wl, bl = head_mat(*raw["logvar"])
    wh = jnp.concatenate([wm, wl], axis=1).astype(jnp.bfloat16)          # (128, 2*dp)
    bh = jnp.concatenate([bm, bl]).reshape(1, 2 * dp).astype(jnp.float32)

    return {"convs": [(w1, b1), (w2, b2)], "tail": (w3, b3, w4, b4, wh, bh)}


# ------------------------------ pure-JAX reference --------------------------- #

def reference_forward(raw, x):
    h = x.astype(jnp.float32)

    def conv(h, w, b, pad):
        y = jax.lax.conv_general_dilated(
            h, w, window_strides=(2, 2), padding=[(pad, pad), (pad, pad)],
            dimension_numbers=("NCHW", "OIHW", "NCHW"))
        return jnp.maximum(y + b[None, :, None, None], 0.0)

    h = conv(h, *raw["conv1"], 1)
    h = conv(h, *raw["conv2"], 1)
    h = conv(h, *raw["conv3"], 1)
    h = conv(h, *raw["conv4"], 0)
    h = h.reshape(h.shape[0], -1)
    wm, bm = raw["mu"]
    wl, bl = raw["logvar"]
    mu = h @ wm.T + bm
    lv = jax.nn.softmax(h @ wl.T + bl, axis=-1) + ETA
    return mu, lv


# ------------------------------------ main ----------------------------------- #

if __name__ == "__main__":
    latent_dim = 16
    bs = 2
    key = jax.random.PRNGKey(0)
    kp, kx = jax.random.split(key)

    raw = init_raw_params(kp, latent_dim)
    params = prepare_params(raw)

    x = jax.random.normal(kx, (bs, 3, 32, 32), jnp.float32)   # batch['data'] (NCHW)

    mu, logvar = enc_svhn_forward(params, x, latent_dim)
    jax.block_until_ready((mu, logvar))

    assert mu.shape == (bs, latent_dim) and logvar.shape == (bs, latent_dim)
    mu_ref, lv_ref = reference_forward(raw, x)
    # bf16 MXU operands with f32 accumulation -> compare at bf16-level tolerance.
    assert jnp.allclose(mu, mu_ref, rtol=3e-2, atol=3e-2), "mu mismatch vs reference"
    assert jnp.allclose(logvar, lv_ref, rtol=3e-2, atol=3e-2), "logvar mismatch vs reference"
    assert bool(jnp.isfinite(mu).all()) and bool(jnp.isfinite(logvar).all())

    print("KERNEL_OK")
</pallas_src>

<mosaic_0001>
module attributes {stable_mosaic.version = 11 : i64} {
  func.func @_dense_relu_kernel(%arg0: i32, %arg1: memref<256x128xbf16, #tpu.memory_space<vmem>>, %arg2: memref<128x128xbf16, #tpu.memory_space<vmem>>, %arg3: memref<1x128xf32, #tpu.memory_space<vmem>>, %arg4: memref<256x128xbf16, #tpu.memory_space<vmem>>) attributes {dimension_semantics = [#tpu.dimension_semantics<parallel>], iteration_bounds = array<i64: 2>, scalar_prefetch = 0 : i64, scratch_operands = 0 : i64, tpu.core_type = #tpu.core_type<tc>, window_params = [{transform_indices = @transform_0, window_bounds = array<i64: 256, 128>}, {pipeline_mode = #tpu.pipeline_mode<synchronous>, transform_indices = @transform_1, window_bounds = array<i64: 128, 128>}, {pipeline_mode = #tpu.pipeline_mode<synchronous>, transform_indices = @transform_2, window_bounds = array<i64: 1, 128>}, {transform_indices = @transform_3, window_bounds = array<i64: 256, 128>}]} {
    %c0 = arith.constant 0 : index
    %c0_0 = arith.constant 0 : index
    %0 = vector.load %arg1[%c0, %c0_0] : memref<256x128xbf16, #tpu.memory_space<vmem>>, vector<256x128xbf16>
    %c0_1 = arith.constant 0 : index
    %c0_2 = arith.constant 0 : index
    %1 = vector.load %arg2[%c0_1, %c0_2] : memref<128x128xbf16, #tpu.memory_space<vmem>>, vector<128x128xbf16>
    %cst = arith.constant dense<0.000000e+00> : vector<256x128xf32>
    %2 = tpu.matmul %0, %1, %cst {dimension_numbers = #tpu.dot_dimension_numbers<[1], [0], [0], [1], [0, 0, 1, 1], [], []>} : vector<256x128xbf16>, vector<128x128xbf16>, vector<256x128xf32> -> vector<256x128xf32>
    %c0_3 = arith.constant 0 : index
    %c0_4 = arith.constant 0 : index
    %3 = vector.load %arg3[%c0_3, %c0_4] : memref<1x128xf32, #tpu.memory_space<vmem>>, vector<1x128xf32>
    %4 = vector.broadcast %3 : vector<1x128xf32> to vector<256x128xf32>
    %5 = arith.addf %2, %4 : vector<256x128xf32>
    %cst_5 = arith.constant 0.000000e+00 : f32
    %6 = vector.broadcast %cst_5 : f32 to vector<256x128xf32>
    %7 = arith.maximumf %5, %6 : vector<256x128xf32>
    %8 = arith.truncf %7 : vector<256x128xf32> to vector<256x128xbf16>
    %c0_6 = arith.constant 0 : index
    %c0_7 = arith.constant 0 : index
    %9 = vector.load %arg4[%c0_6, %c0_7] : memref<256x128xbf16, #tpu.memory_space<vmem>>, vector<256x128xbf16>
    tpu.vector_store %arg4[%c0_6, %c0_7], %8 {strides = array<i32>} : memref<256x128xbf16, #tpu.memory_space<vmem>>, vector<256x128xbf16>,
    return
  }
  func.func @transform_0(%arg0: i32) -> (i32, i32) {
    %c0_i32 = arith.constant 0 : i32
    %c0_i32_0 = arith.constant 0 : i32
    return %arg0, %c0_i32 : i32, i32
  }
  func.func @transform_1(%arg0: i32) -> (i32, i32) {
    %c0_i32 = arith.constant 0 : i32
    %c0_i32_0 = arith.constant 0 : i32
    %c0_i32_1 = arith.constant 0 : i32
    return %c0_i32, %c0_i32_0 : i32, i32
  }
  func.func @transform_2(%arg0: i32) -> (i32, i32) {
    %c0_i32 = arith.constant 0 : i32
    %c0_i32_0 = arith.constant 0 : i32
    %c0_i32_1 = arith.constant 0 : i32
    return %c0_i32, %c0_i32_0 : i32, i32
  }
  func.func @transform_3(%arg0: i32) -> (i32, i32) {
    %c0_i32 = arith.constant 0 : i32
    %c0_i32_0 = arith.constant 0 : i32
    return %arg0, %c0_i32 : i32, i32
  }
}

module attributes {stable_mosaic.version = 11 : i64} {
  func.func @_dense_relu_kernel(%arg0: i32, %arg1: memref<128x512xbf16, #tpu.memory_space<vmem>>, %arg2: memref<512x128xbf16, #tpu.memory_space<vmem>>, %arg3: memref<1x128xf32, #tpu.memory_space<vmem>>, %arg4: memref<128x128xbf16, #tpu.memory_space<vmem>>) attributes {dimension_semantics = [#tpu.dimension_semantics<parallel>], iteration_bounds = array<i64: 1>, scalar_prefetch = 0 : i64, scratch_operands = 0 : i64, tpu.core_type = #tpu.core_type<tc>, window_params = [{transform_indices = @transform_0, window_bounds = array<i64: 128, 512>}, {pipeline_mode = #tpu.pipeline_mode<synchronous>, transform_indices = @transform_1, window_bounds = array<i64: 512, 128>}, {pipeline_mode = #tpu.pipeline_mode<synchronous>, transform_indices = @transform_2, window_bounds = array<i64: 1, 128>}, {transform_indices = @transform_3, window_bounds = array<i64: 128, 128>}]} {
    %c0 = arith.constant 0 : index
    %c0_0 = arith.constant 0 : index
    %0 = vector.load %arg1[%c0, %c0_0] : memref<128x512xbf16, #tpu.memory_space<vmem>>, vector<128x512xbf16>
    %c0_1 = arith.constant 0 : index
    %c0_2 = arith.constant 0 : index
    %1 = vector.load %arg2[%c0_1, %c0_2] : memref<512x128xbf16, #tpu.memory_space<vmem>>, vector<512x128xbf16>
    %cst = arith.constant dense<0.000000e+00> : vector<128x128xf32>
    %2 = tpu.matmul %0, %1, %cst {dimension_numbers = #tpu.dot_dimension_numbers<[1], [0], [0], [1], [0, 0, 1, 1], [], []>} : vector<128x512xbf16>, vector<512x128xbf16>, vector<128x128xf32> -> vector<128x128xf32>
    %c0_3 = arith.constant 0 : index
    %c0_4 = arith.constant 0 : index
    %3 = vector.load %arg3[%c0_3, %c0_4] : memref<1x128xf32, #tpu.memory_space<vmem>>, vector<1x128xf32>
    %4 = vector.broadcast %3 : vector<1x128xf32> to vector<128x128xf32>
    %5 = arith.addf %2, %4 : vector<128x128xf32>
    %cst_5 = arith.constant 0.000000e+00 : f32
    %6 = vector.broadcast %cst_5 : f32 to vector<128x128xf32>
    %7 = arith.maximumf %5, %6 : vector<128x128xf32>
    %8 = arith.truncf %7 : vector<128x128xf32> to vector<128x128xbf16>
    %c0_6 = arith.constant 0 : index
    %c0_7 = arith.constant 0 : index
    %9 = vector.load %arg4[%c0_6, %c0_7] : memref<128x128xbf16, #tpu.memory_space<vmem>>, vector<128x128xbf16>
    tpu.vector_store %arg4[%c0_6, %c0_7], %8 {strides = array<i32>} : memref<128x128xbf16, #tpu.memory_space<vmem>>, vector<128x128xbf16>,
    return
  }
  func.func @transform_0(%arg0: i32) -> (i32, i32) {
    %c0_i32 = arith.constant 0 : i32
    %c0_i32_0 = arith.constant 0 : i32
    return %arg0, %c0_i32 : i32, i32
  }
  func.func @transform_1(%arg0: i32) -> (i32, i32) {
    %c0_i32 = arith.constant 0 : i32
    %c0_i32_0 = arith.constant 0 : i32
    %c0_i32_1 = arith.constant 0 : i32
    return %c0_i32, %c0_i32_0 : i32, i32
  }
  func.func @transform_2(%arg0: i32) -> (i32, i32) {
    %c0_i32 = arith.constant 0 : i32
    %c0_i32_0 = arith.constant 0 : i32
    %c0_i32_1 = arith.constant 0 : i32
    return %c0_i32, %c0_i32_0 : i32, i32
  }
  func.func @transform_3(%arg0: i32) -> (i32, i32) {
    %c0_i32 = arith.constant 0 : i32
    %c0_i32_0 = arith.constant 0 : i32
    return %arg0, %c0_i32 : i32, i32
  }
}

module attributes {stable_mosaic.version = 11 : i64} {
  func.func @_tail_kernel(%arg0: i32, %arg1: memref<2x16x1024xbf16, #tpu.memory_space<vmem>>, %arg2: memref<1024x128xbf16, #tpu.memory_space<vmem>>, %arg3: memref<1x128xf32, #tpu.memory_space<vmem>>, %arg4: memref<16x128x128xbf16, #tpu.memory_space<vmem>>, %arg5: memref<1x128xf32, #tpu.memory_space<vmem>>, %arg6: memref<128x256xbf16, #tpu.memory_space<vmem>>, %arg7: memref<1x256xf32, #tpu.memory_space<vmem>>, %arg8: memref<2x128xf32, #tpu.memory_space<vmem>>, %arg9: memref<2x128xf32, #tpu.memory_space<vmem>>) attributes {dimension_semantics = [#tpu.dimension_semantics<parallel>], iteration_bounds = array<i64: 1>, scalar_prefetch = 0 : i64, scratch_operands = 0 : i64, tpu.core_type = #tpu.core_type<tc>, window_params = [{transform_indices = @transform_0, window_bounds = array<i64: 2, 16, 1024>}, {pipeline_mode = #tpu.pipeline_mode<synchronous>, transform_indices = @transform_1, window_bounds = array<i64: 1024, 128>}, {pipeline_mode = #tpu.pipeline_mode<synchronous>, transform_indices = @transform_2, window_bounds = array<i64: 1, 128>}, {pipeline_mode = #tpu.pipeline_mode<synchronous>, transform_indices = @transform_3, window_bounds = array<i64: 16, 128, 128>}, {pipeline_mode = #tpu.pipeline_mode<synchronous>, transform_indices = @transform_4, window_bounds = array<i64: 1, 128>}, {pipeline_mode = #tpu.pipeline_mode<synchronous>, transform_indices = @transform_5, window_bounds = array<i64: 128, 256>}, {pipeline_mode = #tpu.pipeline_mode<synchronous>, transform_indices = @transform_6, window_bounds = array<i64: 1, 256>}, {transform_indices = @transform_7, window_bounds = array<i64: 2, 128>}, {transform_indices = @transform_8, window_bounds = array<i64: 2, 128>}]} {
    %c0 = arith.constant 0 : index
    %c0_0 = arith.constant 0 : index
    %c0_1 = arith.constant 0 : index
    %0 = vector.load %arg1[%c0, %c0_0, %c0_1] : memref<2x16x1024xbf16, #tpu.memory_space<vmem>>, vector<2x16x1024xbf16>
    %1 = vector.shape_cast %0 : vector<2x16x1024xbf16> to vector<32x1024xbf16>
    %c0_2 = arith.constant 0 : index
    %c0_3 = arith.constant 0 : index
    %2 = vector.load %arg2[%c0_2, %c0_3] : memref<1024x128xbf16, #tpu.memory_space<vmem>>, vector<1024x128xbf16>
    %cst = arith.constant dense<0.000000e+00> : vector<32x128xf32>
    %3 = tpu.matmul %1, %2, %cst {dimension_numbers = #tpu.dot_dimension_numbers<[1], [0], [0], [1], [0, 0, 1, 1], [], []>} : vector<32x1024xbf16>, vector<1024x128xbf16>, vector<32x128xf32> -> vector<32x128xf32>
    %c0_4 = arith.constant 0 : index
    %c0_5 = arith.constant 0 : index
    %4 = vector.load %arg3[%c0_4, %c0_5] : memref<1x128xf32, #tpu.memory_space<vmem>>, vector<1x128xf32>
    %5 = vector.broadcast %4 : vector<1x128xf32> to vector<32x128xf32>
    %6 = arith.addf %3, %5 : vector<32x128xf32>
    %cst_6 = arith.constant 0.000000e+00 : f32
    %7 = vector.broadcast %cst_6 : f32 to vector<32x128xf32>
    %8 = arith.maximumf %6, %7 : vector<32x128xf32>
    %9 = arith.truncf %8 : vector<32x128xf32> to vector<32x128xbf16>
    %10 = vector.shape_cast %9 : vector<32x128xbf16> to vector<2x16x128xbf16>
    %cst_7 = arith.constant 0.000000e+00 : f32
    %11 = vector.broadcast %cst_7 : f32 to vector<2x128xf32>
    %12 = vector.extract_strided_slice %10 {offsets = [0, 0, 0], sizes = [2, 1, 128], strides = [1, 1, 1]} : vector<2x16x128xbf16> to vector<2x1x128xbf16>
    %13 = vector.shape_cast %12 : vector<2x1x128xbf16> to vector<2x128xbf16>
    %c0_8 = arith.constant 0 : index
    %c0_9 = arith.constant 0 : index
    %c0_10 = arith.constant 0 : index
    %14 = vector.load %arg4[%c0_8, %c0_9, %c0_10] : memref<16x128x128xbf16, #tpu.memory_space<vmem>>, vector<1x128x128xbf16>
    %15 = vector.shape_cast %14 : vector<1x128x128xbf16> to vector<128x128xbf16>
    %cst_11 = arith.constant dense<0.000000e+00> : vector<2x128xf32>
    %16 = tpu.matmul %13, %15, %cst_11 {dimension_numbers = #tpu.dot_dimension_numbers<[1], [0], [0], [1], [0, 0, 1, 1], [], []>} : vector<2x128xbf16>, vector<128x128xbf16>, vector<2x128xf32> -> vector<2x128xf32>
    %17 = arith.addf %11, %16 : vector<2x128xf32>
    %18 = vector.extract_strided_slice %10 {offsets = [0, 1, 0], sizes = [2, 1, 128], strides = [1, 1, 1]} : vector<2x16x128xbf16> to vector<2x1x128xbf16>
    %19 = vector.shape_cast %18 : vector<2x1x128xbf16> to vector<2x128xbf16>
    %c1 = arith.constant 1 : index
    %c0_12 = arith.constant 0 : index
    %c0_13 = arith.constant 0 : index
    %20 = vector.load %arg4[%c1, %c0_12, %c0_13] : memref<16x128x128xbf16, #tpu.memory_space<vmem>>, vector<1x128x128xbf16>
    %21 = vector.shape_cast %20 : vector<1x128x128xbf16> to vector<128x128xbf16>
    %cst_14 = arith.constant dense<0.000000e+00> : vector<2x128xf32>
    %22 = tpu.matmul %19, %21, %cst_14 {dimension_numbers = #tpu.dot_dimension_numbers<[1], [0], [0], [1], [0, 0, 1, 1], [], []>} : vector<2x128xbf16>, vector<128x128xbf16>, vector<2x128xf32> -> vector<2x128xf32>
    %23 = arith.addf %17, %22 : vector<2x128xf32>
    %24 = vector.extract_strided_slice %10 {offsets = [0, 2, 0], sizes = [2, 1, 128], strides = [1, 1, 1]} : vector<2x16x128xbf16> to vector<2x1x128xbf16>
    %25 = vector.shape_cast %24 : vector<2x1x128xbf16> to vector<2x128xbf16>
    %c2 = arith.constant 2 : index
    %c0_15 = arith.constant 0 : index
    %c0_16 = arith.constant 0 : index
    %26 = vector.load %arg4[%c2, %c0_15, %c0_16] : memref<16x128x128xbf16, #tpu.memory_space<vmem>>, vector<1x128x128xbf16>
    %27 = vector.shape_cast %26 : vector<1x128x128xbf16> to vector<128x128xbf16>
    %cst_17 = arith.constant dense<0.000000e+00> : vector<2x128xf32>
    %28 = tpu.matmul %25, %27, %cst_17 {dimension_numbers = #tpu.dot_dimension_numbers<[1], [0], [0], [1], [0, 0, 1, 1], [], []>} : vector<2x128xbf16>, vector<128x128xbf16>, vector<2x128xf32> -> vector<2x128xf32>
    %29 = arith.addf %23, %28 : vector<2x128xf32>
    %30 = vector.extract_strided_slice %10 {offsets = [0, 3, 0], sizes = [2, 1, 128], strides = [1, 1, 1]} : vector<2x16x128xbf16> to vector<2x1x128xbf16>
    %31 = vector.shape_cast %30 : vector<2x1x128xbf16> to vector<2x128xbf16>
    %c3 = arith.constant 3 : index
    %c0_18 = arith.constant 0 : index
    %c0_19 = arith.constant 0 : index
    %32 = vector.load %arg4[%c3, %c0_18, %c0_19] : memref<16x128x128xbf16, #tpu.memory_space<vmem>>, vector<1x128x128xbf16>
    %33 = vector.shape_cast %32 : vector<1x128x128xbf16> to vector<128x128xbf16>
    %cst_20 = arith.constant dense<0.000000e+00> : vector<2x128xf32>
    %34 = tpu.matmul %31, %33, %cst_20 {dimension_numbers = #tpu.dot_dimension_numbers<[1], [0], [0], [1], [0, 0, 1, 1], [], []>} : vector<2x128xbf16>, vector<128x128xbf16>, vector<2x128xf32> -> vector<2x128xf32>
    %35 = arith.addf %29, %34 : vector<2x128xf32>
    %36 = vector.extract_strided_slice %10 {offsets = [0, 4, 0], sizes = [2, 1, 128], strides = [1, 1, 1]} : vector<2x16x128xbf16> to vector<2x1x128xbf16>
    %37 = vector.shape_cast %36 : vector<2x1x128xbf16> to vector<2x128xbf16>
    %c4 = arith.constant 4 : index
    %c0_21 = arith.constant 0 : index
    %c0_22 = arith.constant 0 : index
    %38 = vector.load %arg4[%c4, %c0_21, %c0_22] : memref<16x128x128xbf16, #tpu.memory_space<vmem>>, vector<1x128x128xbf16>
    %39 = vector.shape_cast %38 : vector<1x128x128xbf16> to vector<128x128xbf16>
    %cst_23 = arith.constant dense<0.000000e+00> : vector<2x128xf32>
    %40 = tpu.matmul %37, %39, %cst_23 {dimension_numbers = #tpu.dot_dimension_numbers<[1], [0], [0], [1], [0, 0, 1, 1], [], []>} : vector<2x128xbf16>, vector<128x128xbf16>, vector<2x128xf32> -> vector<2x128xf32>
    %41 = arith.addf %35, %40 : vector<2x128xf32>
    %42 = vector.extract_strided_slice %10 {offsets = [0, 5, 0], sizes = [2, 1, 128], strides = [1, 1, 1]} : vector<2x16x128xbf16> to vector<2x1x128xbf16>
    %43 = vector.shape_cast %42 : vector<2x1x128xbf16> to vector<2x128xbf16>
    %c5 = arith.constant 5 : index
    %c0_24 = arith.constant 0 : index
    %c0_25 = arith.constant 0 : index
    %44 = vector.load %arg4[%c5, %c0_24, %c0_25] : memref<16x128x128xbf16, #tpu.memory_space<vmem>>, vector<1x128x128xbf16>
    %45 = vector.shape_cast %44 : vector<1x128x128xbf16> to vector<128x128xbf16>
    %cst_26 = arith.constant dense<0.000000e+00> : vector<2x128xf32>
    %46 = tpu.matmul %43, %45, %cst_26 {dimension_numbers = #tpu.dot_dimension_numbers<[1], [0], [0], [1], [0, 0, 1, 1], [], []>} : vector<2x128xbf16>, vector<128x128xbf16>, vector<2x128xf32> -> vector<2x128xf32>
    %47 = arith.addf %41, %46 : vector<2x128xf32>
    %48 = vector.extract_strided_slice %10 {offsets = [0, 6, 0], sizes = [2, 1, 128], strides = [1, 1, 1]} : vector<2x16x128xbf16> to vector<2x1x128xbf16>
    %49 = vector.shape_cast %48 : vector<2x1x128xbf16> to vector<2x128xbf16>
    %c6 = arith.constant 6 : index
    %c0_27 = arith.constant 0 : index
    %c0_28 = arith.constant 0 : index
    %50 = vector.load %arg4[%c6, %c0_27, %c0_28] : memref<16x128x128xbf16, #tpu.memory_space<vmem>>, vector<1x128x128xbf16>
    %51 = vector.shape_cast %50 : vector<1x128x128xbf16> to vector<128x128xbf16>
    %cst_29 = arith.constant dense<0.000000e+00> : vector<2x128xf32>
    %52 = tpu.matmul %49, %51, %cst_29 {dimension_numbers = #tpu.dot_dimension_numbers<[1], [0], [0], [1], [0, 0, 1, 1], [], []>} : vector<2x128xbf16>, vector<128x128xbf16>, vector<2x128xf32> -> vector<2x128xf32>
    %53 = arith.addf %47, %52 : vector<2x128xf32>
    %54 = vector.extract_strided_slice %10 {offsets = [0, 7, 0], sizes = [2, 1, 128], strides = [1, 1, 1]} : vector<2x16x128xbf16> to vector<2x1x128xbf16>
    %55 = vector.shape_cast %54 : vector<2x1x128xbf16> to vector<2x128xbf16>
    %c7 = arith.constant 7 : index
    %c0_30 = arith.constant 0 : index
    %c0_31 = arith.constant 0 : index
    %56 = vector.load %arg4[%c7, %c0_30, %c0_31] : memref<16x128x128xbf16, #tpu.memory_space<vmem>>, vector<1x128x128xbf16>
    %57 = vector.shape_cast %56 : vector<1x128x128xbf16> to vector<128x128xbf16>
    %cst_32 = arith.constant dense<0.000000e+00> : vector<2x128xf32>
    %58 = tpu.matmul %55, %57, %cst_32 {dimension_numbers = #tpu.dot_dimension_numbers<[1], [0], [0], [1], [0, 0, 1, 1], [], []>} : vector<2x128xbf16>, vector<128x128xbf16>, vector<2x128xf32> -> vector<2x128xf32>
    %59 = arith.addf %53, %58 : vector<2x128xf32>
    %60 = vector.extract_strided_slice %10 {offsets = [0, 8, 0], sizes = [2, 1, 128], strides = [1, 1, 1]} : vector<2x16x128xbf16> to vector<2x1x128xbf16>
    %61 = vector.shape_cast %60 : vector<2x1x128xbf16> to vector<2x128xbf16>
    %c8 = arith.constant 8 : index
    %c0_33 = arith.constant 0 : index
    %c0_34 = arith.constant 0 : index
    %62 = vector.load %arg4[%c8, %c0_33, %c0_34] : memref<16x128x128xbf16, #tpu.memory_space<vmem>>, vector<1x128x128xbf16>
    %63 = vector.shape_cast %62 : vector<1x128x128xbf16> to vector<128x128xbf16>
    %cst_35 = arith.constant dense<0.000000e+00> : vector<2x128xf32>
    %64 = tpu.matmul %61, %63, %cst_35 {dimension_numbers = #tpu.dot_dimension_numbers<[1], [0], [0], [1], [0, 0, 1, 1], [], []>} : vector<2x128xbf16>, vector<128x128xbf16>, vector<2x128xf32> -> vector<2x128xf32>
    %65 = arith.addf %59, %64 : vector<2x128xf32>
    %66 = vector.extract_strided_slice %10 {offsets = [0, 9, 0], sizes = [2, 1, 128], strides = [1, 1, 1]} : vector<2x16x128xbf16> to vector<2x1x128xbf16>
    %67 = vector.shape_cast %66 : vector<2x1x128xbf16> to vector<2x128xbf16>
    %c9 = arith.constant 9 : index
    %c0_36 = arith.constant 0 : index
    %c0_37 = arith.constant 0 : index
    %68 = vector.load %arg4[%c9, %c0_36, %c0_37] : memref<16x128x128xbf16, #tpu.memory_space<vmem>>, vector<1x128x128xbf16>
    %69 = vector.shape_cast %68 : vector<1x128x128xbf16> to vector<128x128xbf16>
    %cst_38 = arith.constant dense<0.000000e+00> : vector<2x128xf32>
    %70 = tpu.matmul %67, %69, %cst_38 {dimension_numbers = #tpu.dot_dimension_numbers<[1], [0], [0], [1], [0, 0, 1, 1], [], []>} : vector<2x128xbf16>, vector<128x128xbf16>, vector<2x128xf32> -> vector<2x128xf32>
    %71 = arith.addf %65, %70 : vector<2x128xf32>
    %72 = vector.extract_strided_slice %10 {offsets = [0, 10, 0], sizes = [2, 1, 128], strides = [1, 1, 1]} : vector<2x16x128xbf16> to vector<2x1x128xbf16>
    %73 = vector.shape_cast %72 : vector<2x1x128xbf16> to vector<2x128xbf16>
    %c10 = arith.constant 10 : index
    %c0_39 = arith.constant 0 : index
    %c0_40 = arith.constant 0 : index
    %74 = vector.load %arg4[%c10, %c0_39, %c0_40] : memref<16x128x128xbf16, #tpu.memory_space<vmem>>, vector<1x128x128xbf16>
    %75 = vector.shape_cast %74 : vector<1x128x128xbf16> to vector<128x128xbf16>
    %cst_41 = arith.constant dense<0.000000e+00> : vector<2x128xf32>
    %76 = tpu.matmul %73, %75, %cst_41 {dimension_numbers = #tpu.dot_dimension_numbers<[1], [0], [0], [1], [0, 0, 1, 1], [], []>} : vector<2x128xbf16>, vector<128x128xbf16>, vector<2x128xf32> -> vector<2x128xf32>
    %77 = arith.addf %71, %76 : vector<2x128xf32>
    %78 = vector.extract_strided_slice %10 {offsets = [0, 11, 0], sizes = [2, 1, 128], strides = [1, 1, 1]} : vector<2x16x128xbf16> to vector<2x1x128xbf16>
    %79 = vector.shape_cast %78 : vector<2x1x128xbf16> to vector<2x128xbf16>
    %c11 = arith.constant 11 : index
    %c0_42 = arith.constant 0 : index
    %c0_43 = arith.constant 0 : index
    %80 = vector.load %arg4[%c11, %c0_42, %c0_43] : memref<16x128x128xbf16, #tpu.memory_space<vmem>>, vector<1x128x128xbf16>
    %81 = vector.shape_cast %80 : vector<1x128x128xbf16> to vector<128x128xbf16>
    %cst_44 = arith.constant dense<0.000000e+00> : vector<2x128xf32>
    %82 = tpu.matmul %79, %81, %cst_44 {dimension_numbers = #tpu.dot_dimension_numbers<[1], [0], [0], [1], [0, 0, 1, 1], [], []>} : vector<2x128xbf16>, vector<128x128xbf16>, vector<2x128xf32> -> vector<2x128xf32>
    %83 = arith.addf %77, %82 : vector<2x128xf32>
    %84 = vector.extract_strided_slice %10 {offsets = [0, 12, 0], sizes = [2, 1, 128], strides = [1, 1, 1]} : vector<2x16x128xbf16> to vector<2x1x128xbf16>
    %85 = vector.shape_cast %84 : vector<2x1x128xbf16> to vector<2x128xbf16>
    %c12 = arith.constant 12 : index
    %c0_45 = arith.constant 0 : index
    %c0_46 = arith.constant 0 : index
    %86 = vector.load %arg4[%c12, %c0_45, %c0_46] : memref<16x128x128xbf16, #tpu.memory_space<vmem>>, vector<1x128x128xbf16>
    %87 = vector.shape_cast %86 : vector<1x128x128xbf16> to vector<128x128xbf16>
    %cst_47 = arith.constant dense<0.000000e+00> : vector<2x128xf32>
    %88 = tpu.matmul %85, %87, %cst_47 {dimension_numbers = #tpu.dot_dimension_numbers<[1], [0], [0], [1], [0, 0, 1, 1], [], []>} : vector<2x128xbf16>, vector<128x128xbf16>, vector<2x128xf32> -> vector<2x128xf32>
    %89 = arith.addf %83, %88 : vector<2x128xf32>
    %90 = vector.extract_strided_slice %10 {offsets = [0, 13, 0], sizes = [2, 1, 128], strides = [1, 1, 1]} : vector<2x16x128xbf16> to vector<2x1x128xbf16>
    %91 = vector.shape_cast %90 : vector<2x1x128xbf16> to vector<2x128xbf16>
    %c13 = arith.constant 13 : index
    %c0_48 = arith.constant 0 : index
    %c0_49 = arith.constant 0 : index
    %92 = vector.load %arg4[%c13, %c0_48, %c0_49] : memref<16x128x128xbf16, #tpu.memory_space<vmem>>, vector<1x128x128xbf16>
    %93 = vector.shape_cast %92 : vector<1x128x128xbf16> to vector<128x128xbf16>
    %cst_50 = arith.constant dense<0.000000e+00> : vector<2x128xf32>
    %94 = tpu.matmul %91, %93, %cst_50 {dimension_numbers = #tpu.dot_dimension_numbers<[1], [0], [0], [1], [0, 0, 1, 1], [], []>} : vector<2x128xbf16>, vector<128x128xbf16>, vector<2x128xf32> -> vector<2x128xf32>
    %95 = arith.addf %89, %94 : vector<2x128xf32>
    %96 = vector.extract_strided_slice %10 {offsets = [0, 14, 0], sizes = [2, 1, 128], strides = [1, 1, 1]} : vector<2x16x128xbf16> to vector<2x1x128xbf16>
    %97 = vector.shape_cast %96 : vector<2x1x128xbf16> to vector<2x128xbf16>
    %c14 = arith.constant 14 : index
    %c0_51 = arith.constant 0 : index
    %c0_52 = arith.constant 0 : index
    %98 = vector.load %arg4[%c14, %c0_51, %c0_52] : memref<16x128x128xbf16, #tpu.memory_space<vmem>>, vector<1x128x128xbf16>
    %99 = vector.shape_cast %98 : vector<1x128x128xbf16> to vector<128x128xbf16>
    %cst_53 = arith.constant dense<0.000000e+00> : vector<2x128xf32>
    %100 = tpu.matmul %97, %99, %cst_53 {dimension_numbers = #tpu.dot_dimension_numbers<[1], [0], [0], [1], [0, 0, 1, 1], [], []>} : vector<2x128xbf16>, vector<128x128xbf16>, vector<2x128xf32> -> vector<2x128xf32>
    %101 = arith.addf %95, %100 : vector<2x128xf32>
    %102 = vector.extract_strided_slice %10 {offsets = [0, 15, 0], sizes = [2, 1, 128], strides = [1, 1, 1]} : vector<2x16x128xbf16> to vector<2x1x128xbf16>
    %103 = vector.shape_cast %102 : vector<2x1x128xbf16> to vector<2x128xbf16>
    %c15 = arith.constant 15 : index
    %c0_54 = arith.constant 0 : index
    %c0_55 = arith.constant 0 : index
    %104 = vector.load %arg4[%c15, %c0_54, %c0_55] : memref<16x128x128xbf16, #tpu.memory_space<vmem>>, vector<1x128x128xbf16>
    %105 = vector.shape_cast %104 : vector<1x128x128xbf16> to vector<128x128xbf16>
    %cst_56 = arith.constant dense<0.000000e+00> : vector<2x128xf32>
    %106 = tpu.matmul %103, %105, %cst_56 {dimension_numbers = #tpu.dot_dimension_numbers<[1], [0], [0], [1], [0, 0, 1, 1], [], []>} : vector<2x128xbf16>, vector<128x128xbf16>, vector<2x128xf32> -> vector<2x128xf32>
    %107 = arith.addf %101, %106 : vector<2x128xf32>
    %c0_57 = arith.constant 0 : index
    %c0_58 = arith.constant 0 : index
    %108 = vector.load %arg5[%c0_57, %c0_58] : memref<1x128xf32, #tpu.memory_space<vmem>>, vector<1x128xf32>
    %109 = vector.broadcast %108 : vector<1x128xf32> to vector<2x128xf32>
    %110 = arith.addf %107, %109 : vector<2x128xf32>
    %cst_59 = arith.constant 0.000000e+00 : f32
    %111 = vector.broadcast %cst_59 : f32 to vector<2x128xf32>
    %112 = arith.maximumf %110, %111 : vector<2x128xf32>
    %113 = arith.truncf %112 : vector<2x128xf32> to vector<2x128xbf16>
    %c0_60 = arith.constant 0 : index
    %c0_61 = arith.constant 0 : index
    %114 = vector.load %arg6[%c0_60, %c0_61] : memref<128x256xbf16, #tpu.memory_space<vmem>>, vector<128x256xbf16>
    %cst_62 = arith.constant dense<0.000000e+00> : vector<2x256xf32>
    %115 = tpu.matmul %113, %114, %cst_62 {dimension_numbers = #tpu.dot_dimension_numbers<[1], [0], [0], [1], [0, 0, 1, 1], [], []>} : vector<2x128xbf16>, vector<128x256xbf16>, vector<2x256xf32> -> vector<2x256xf32>
    %c0_63 = arith.constant 0 : index
    %c0_64 = arith.constant 0 : index
    %116 = vector.load %arg7[%c0_63, %c0_64] : memref<1x256xf32, #tpu.memory_space<vmem>>, vector<1x256xf32>
    %117 = vector.broadcast %116 : vector<1x256xf32> to vector<2x256xf32>
    %118 = arith.addf %115, %117 : vector<2x256xf32>
    %119 = vector.extract_strided_slice %118 {offsets = [0, 0], sizes = [2, 128], strides = [1, 1]} : vector<2x256xf32> to vector<2x128xf32>
    %120 = vector.extract_strided_slice %118 {offsets = [0, 128], sizes = [2, 128], strides = [1, 1]} : vector<2x256xf32> to vector<2x128xf32>
    %121 = tpu.iota {dimensions = array<i32: 1>} : vector<2x128xi32>
    %c16_i32 = arith.constant 16 : i32
    %122 = vector.broadcast %c16_i32 : i32 to vector<2x128xi32>
    %123 = arith.cmpi slt, %121, %122 : vector<2x128xi32>
    %cst_65 = arith.constant -1.000000e+30 : f32
    %124 = vector.broadcast %cst_65 : f32 to vector<2x128xf32>
    %125 = arith.select %123, %120, %124 : vector<2x128xi1>, vector<2x128xf32>
    %cst_66 = arith.constant dense<0xFF800000> : vector<2xf32>
    %126 = vector.multi_reduction <maximumf>, %125, %cst_66 [1] : vector<2x128xf32> to vector<2xf32>
    %127 = vector.shape_cast %126 : vector<2xf32> to vector<2x1xf32>
    %128 = vector.broadcast %127 : vector<2x1xf32> to vector<2x128xf32>
    %129 = arith.subf %125, %128 : vector<2x128xf32>
    %130 = math.exp %129 : vector<2x128xf32>
    %cst_67 = arith.constant 0.000000e+00 : f32
    %131 = vector.broadcast %cst_67 : f32 to vector<2x128xf32>
    %132 = arith.select %123, %130, %131 : vector<2x128xi1>, vector<2x128xf32>
    %cst_68 = arith.constant dense<0.000000e+00> : vector<2xf32>
    %133 = vector.multi_reduction <add>, %132, %cst_68 [1] : vector<2x128xf32> to vector<2xf32>
    %134 = vector.shape_cast %133 : vector<2xf32> to vector<2x1xf32>
    %135 = tpu.reciprocal %134 {approx = true} : vector<2x1xf32> -> vector<2x1xf32>
    %136 = vector.broadcast %135 : vector<2x1xf32> to vector<2x128xf32>
    %137 = arith.mulf %132, %136 : vector<2x128xf32>
    %cst_69 = arith.constant 9.99999997E-7 : f32
    %138 = vector.broadcast %cst_69 : f32 to vector<2x128xf32>
    %139 = arith.addf %137, %138 : vector<2x128xf32>
    %c0_70 = arith.constant 0 : index
    %c0_71 = arith.constant 0 : index
    %140 = vector.load %arg8[%c0_70, %c0_71] : memref<2x128xf32, #tpu.memory_space<vmem>>, vector<2x128xf32>
    tpu.vector_store %arg8[%c0_70, %c0_71], %119 {strides = array<i32>} : memref<2x128xf32, #tpu.memory_space<vmem>>, vector<2x128xf32>,
    %c0_72 = arith.constant 0 : index
    %c0_73 = arith.constant 0 : index
    %141 = vector.load %arg9[%c0_72, %c0_73] : memref<2x128xf32, #tpu.memory_space<vmem>>, vector<2x128xf32>
    tpu.vector_store %arg9[%c0_72, %c0_73], %139 {strides = array<i32>} : memref<2x128xf32, #tpu.memory_space<vmem>>, vector<2x128xf32>,
    return
  }
  func.func @transform_0(%arg0: i32) -> (i32, i32, i32) {
    %c0_i32 = arith.constant 0 : i32
    %c0_i32_0 = arith.constant 0 : i32
    %c0_i32_1 = arith.constant 0 : i32
    return %arg0, %c0_i32, %c0_i32_0 : i32, i32, i32
  }
  func.func @transform_1(%arg0: i32) -> (i32, i32) {
    %c0_i32 = arith.constant 0 : i32
    %c0_i32_0 = arith.constant 0 : i32
    %c0_i32_1 = arith.constant 0 : i32
    return %c0_i32, %c0_i32_0 : i32, i32
  }
  func.func @transform_2(%arg0: i32) -> (i32, i32) {
    %c0_i32 = arith.constant 0 : i32
    %c0_i32_0 = arith.constant 0 : i32
    %c0_i32_1 = arith.constant 0 : i32
    return %c0_i32, %c0_i32_0 : i32, i32
  }
  func.func @transform_3(%arg0: i32) -> (i32, i32, i32) {
    %c0_i32 = arith.constant 0 : i32
    %c0_i32_0 = arith.constant 0 : i32
    %c0_i32_1 = arith.constant 0 : i32
    %c0_i32_2 = arith.constant 0 : i32
    return %c0_i32, %c0_i32_0, %c0_i32_1 : i32, i32, i32
  }
  func.func @transform_4(%arg0: i32) -> (i32, i32) {
    %c0_i32 = arith.constant 0 : i32
    %c0_i32_0 = arith.constant 0 : i32
    %c0_i32_1 = arith.constant 0 : i32
    return %c0_i32, %c0_i32_0 : i32, i32
  }
  func.func @transform_5(%arg0: i32) -> (i32, i32) {
    %c0_i32 = arith.constant 0 : i32
    %c0_i32_0 = arith.constant 0 : i32
    %c0_i32_1 = arith.constant 0 : i32
    return %c0_i32, %c0_i32_0 : i32, i32
  }
  func.func @transform_6(%arg0: i32) -> (i32, i32) {
    %c0_i32 = arith.constant 0 : i32
    %c0_i32_0 = arith.constant 0 : i32
    %c0_i32_1 = arith.constant 0 : i32
    return %c0_i32, %c0_i32_0 : i32, i32
  }
  func.func @transform_7(%arg0: i32) -> (i32, i32) {
    %c0_i32 = arith.constant 0 : i32
    %c0_i32_0 = arith.constant 0 : i32
    return %arg0, %c0_i32 : i32, i32
  }
  func.func @transform_8(%arg0: i32) -> (i32, i32) {
    %c0_i32 = arith.constant 0 : i32
    %c0_i32_0 = arith.constant 0 : i32
    return %arg0, %c0_i32 : i32, i32
  }
}

</mosaic_0001>

<llo_original>
// kernel: enc_svhn_forward.3
$region0: #{enc_svhn_forward.3}
  #allocation0 [shape = 'u32[]', space=smem, size = 0x4, offset = 0x4, fixed_abs, tag = 'smem constant byte address 0x4 - core index']
  #allocation1 [shape = 'u32[144,128]{1,0:T(1,128)}', space=vmem, size = 0x12000, scoped, tag = 'internal scratch']
  %s0 = inlined_call_operand.vmem [shape: bf16[512,128], index: 0, kind: input, shape index: {}]
  %s1 = inlined_call_operand.vmem [shape: bf16[128,128], index: 1, kind: input, shape index: {}]
  %s2 = inlined_call_operand.vmem [shape: f32[1,128], index: 2, kind: input, shape index: {}]
  %s3 = inlined_call_operand.vmem [shape: bf16[512,128], index: 3, kind: output, shape index: {}]
  %s4 = sld [smem:[#allocation0]]
  $region45: #{enc_svhn_forward.3} parent=0
    _
  %s6 = ssub.s32 1, %s4
  %s7 = scalar_select 0, %s6, %s4
  loop: start=0, step=1, limit=4
  $region2: #{enc_svhn_forward.3} parent=0 // loop_pre_header
    _
  $region3: #{enc_svhn_forward.3} parent=0 // loop_header
    %s9 = sphi 0, %s13
    %p10 = scmp.ge.s32.totalorder %s9, 4
    %s19 = sphi 0, %s21
    %s22 = sphi 0, %s19
    %s23 = sphi 0, %s22
    %s39 = sphi 0, %s23
    %s43 = sphi 0, %s43
    %s45 = sphi 0, %s43
    %s46 = sphi 0, %s45
    %s60 = sphi 0, %s46
    %s64 = sphi 0, %s64
    %s66 = sphi 0, %s64
    %s67 = sphi 0, %s66
    %s81 = sphi 0, %s67
    %s87 = sphi 0, %s89
    %s90 = sphi 0, %s87
    %s91 = sphi 0, %s90
    %s107 = sphi 0, %s91
  $region4: #{enc_svhn_forward.3} parent=0 // loop_header_branch
    %12 = sbr.rel (%p10) target = $region8
  $region5: #{enc_svhn_forward.3} parent=0 // loop_body
    %s14 = ssub.s32 %s9, 1
    %s15 = ssub.s32 %s9, 2
    %s16 = sadd.s32 %s9, 1
    %s17 = ssub.s32 %s9, %s16
    %p18 = scmp.eq.s32.totalorder %s17, 0
    %s20 = sadd.s32 %s19, 1
    %s21 = scalar_select %p18, %s19, %s20
    %p24 = pneg %p18
    %p25 = scmp.eq.s32.totalorder %s9, 1
    %p26 = por %p24, %p25
    %p27 = scmp.ne.s32.totalorder %s19, %s22
    %p28 = scmp.eq.s32.totalorder %s9, 0
    %p29 = por %p27, %p28
    %p30 = scmp.ne.s32.totalorder %s19, %s22
    %p31 = scmp.eq.s32.totalorder %s14, 1
    %p32 = por %p30, %p31
    %p33 = scmp.ne.s32.totalorder %s22, %s23
    %p34 = scmp.eq.s32.totalorder %s14, 0
    %p35 = por %p33, %p34
    %p36 = scmp.ne.s32.totalorder %s22, %s23
    %p37 = scmp.eq.s32.totalorder %s15, 1
    %p38 = por %p36, %p37
    %p40 = scmp.ne.s32.totalorder %s23, %s39
    %p41 = scmp.eq.s32.totalorder %s15, 0
    %p42 = por %p40, %p41
    %s44 = sadd.s32 %s43, 1
    %p47 = scmp.eq.s32.totalorder %s9, 1
    %p48 = scmp.ne.s32.totalorder %s43, %s45
    %p49 = scmp.eq.s32.totalorder %s9, 0
    %p50 = por %p48, %p49
    %p51 = scmp.ne.s32.totalorder %s43, %s45
    %p52 = scmp.eq.s32.totalorder %s14, 1
    %p53 = por %p51, %p52
    %p54 = scmp.ne.s32.totalorder %s45, %s46
    %p55 = scmp.eq.s32.totalorder %s14, 0
    %p56 = por %p54, %p55
    %p57 = scmp.ne.s32.totalorder %s45, %s46
    %p58 = scmp.eq.s32.totalorder %s15, 1
    %p59 = por %p57, %p58
    %p61 = scmp.ne.s32.totalorder %s46, %s60
    %p62 = scmp.eq.s32.totalorder %s15, 0
    %p63 = por %p61, %p62
    %s65 = sadd.s32 %s64, 1
    %p68 = scmp.eq.s32.totalorder %s9, 1
    %p69 = scmp.ne.s32.totalorder %s64, %s66
    %p70 = scmp.eq.s32.totalorder %s9, 0
    %p71 = por %p69, %p70
    %p72 = scmp.ne.s32.totalorder %s64, %s66
    %p73 = scmp.eq.s32.totalorder %s14, 1
    %p74 = por %p72, %p73
    %p75 = scmp.ne.s32.totalorder %s66, %s67
    %p76 = scmp.eq.s32.totalorder %s14, 0
    %p77 = por %p75, %p76
    %p78 = scmp.ne.s32.totalorder %s66, %s67
    %p79 = scmp.eq.s32.totalorder %s15, 1
    %p80 = por %p78, %p79
    %p82 = scmp.ne.s32.totalorder %s67, %s81
    %p83 = scmp.eq.s32.totalorder %s15, 0
    %p84 = por %p82, %p83
    %s85 = ssub.s32 %s9, %s16
    %p86 = scmp.eq.s32.totalorder %s85, 0
    %s88 = sadd.s32 %s87, 1
    %s89 = scalar_select %p86, %s87, %s88
    %p92 = pneg %p86
    %p93 = scmp.eq.s32.totalorder %s9, 1
    %p94 = por %p92, %p93
    %p95 = scmp.ne.s32.totalorder %s87, %s90
    %p96 = scmp.eq.s32.totalorder %s9, 0
    %p97 = por %p95, %p96
    %p98 = scmp.ne.s32.totalorder %s87, %s90
    %p99 = scmp.eq.s32.totalorder %s14, 1
    %p100 = por %p98, %p99
    %p101 = scmp.ne.s32.totalorder %s90, %s91
    %p102 = scmp.eq.s32.totalorder %s14, 0
    %p103 = por %p101, %p102
    %p104 = scmp.ne.s32.totalorder %s90, %s91
    %p105 = scmp.eq.s32.totalorder %s15, 1
    %p106 = por %p104, %p105
    %p108 = scmp.ne.s32.totalorder %s91, %s107
    %p109 = scmp.eq.s32.totalorder %s15, 0
    %p110 = por %p108, %p109
    %p111 = scmp.le.s32.totalorder 1, %s9
    %p112 = scmp.lt.s32.totalorder %s9, 3
    %p113 = pnand %p111, %p112
    %p114 = pneg %p113
    // Predicated region
    $region9: #{enc_svhn_forward.3} parent=5 // pred_check
      _
    $region10: #{enc_svhn_forward.3} parent=5 // pred_check_branch
      %116 = sbr.rel (%p113) target = $region12
    $region11: #{enc_svhn_forward.3} parent=5 // pred_region
      %s117 = ssub.s32 %s9, 1
      // Predicated region
      $region13: #{enc_svhn_forward.3} parent=11 // pred_check
        %p118 = pneg %p56
      $region14: #{enc_svhn_forward.3} parent=11 // pred_check_branch
        %120 = sbr.rel (%p118) target = $region16
      $region15: #{enc_svhn_forward.3} parent=11 // pred_region
        _
      $region16: #{enc_svhn_forward.3} parent=11 // pred_fallthru
        _
      // Predicated region
      $region17: #{enc_svhn_forward.3} parent=11 // pred_check
        %p121 = pneg %p77
      $region18: #{enc_svhn_forward.3} parent=11 // pred_check_branch
        %123 = sbr.rel (%p121) target = $region20
      $region19: #{enc_svhn_forward.3} parent=11 // pred_region
        _
      $region20: #{enc_svhn_forward.3} parent=11 // pred_fallthru
        _
    $region12: #{enc_svhn_forward.3} parent=5 // pred_fallthru
      _
    %p124 = scmp.lt.s32.totalorder %s9, 2
    // Predicated region
    $region21: #{enc_svhn_forward.3} parent=5 // pred_check
      %p125 = pneg %p124
    $region22: #{enc_svhn_forward.3} parent=5 // pred_check_branch
      %127 = sbr.rel (%p125) target = $region24
    $region23: #{enc_svhn_forward.3} parent=5 // pred_region
      // Predicated region
      $region25: #{enc_svhn_forward.3} parent=23 // pred_check
        %p128 = pneg %p29
      $region26: #{enc_svhn_forward.3} parent=23 // pred_check_branch
        %130 = sbr.rel (%p128) target = $region28
      $region27: #{enc_svhn_forward.3} parent=23 // pred_region
        %s131 = smul.u32 32, %s9
        %p132 = scmp.lt.s32.totalorder %s131, 63
        %s133 = scalar_select %p132, %s131, 63
        %s134 = smul.addr %s133, 4
        %s135 = scalar_lea.vmem %s0, %s134
        %s136 = smul.u32 32, %s9
      $region28: #{enc_svhn_forward.3} parent=23 // pred_fallthru
        _
    $region24: #{enc_svhn_forward.3} parent=5 // pred_fallthru
      _
    %p137 = scmp.le.s32.totalorder 1, %s9
    %p138 = scmp.lt.s32.totalorder %s9, 3
    %p139 = pnand %p137, %p138
    %p140 = pneg %p139
    // Predicated region
    $region29: #{enc_svhn_forward.3} parent=5 // pred_check
      _
    $region30: #{enc_svhn_forward.3} parent=5 // pred_check_branch
      %142 = sbr.rel (%p139) target = $region32
    $region31: #{enc_svhn_forward.3} parent=5 // pred_region
      %s143 = ssub.s32 %s9, 1
      %s144 = smul.u32 32, %s14
      %p145 = scmp.lt.s32.totalorder %s144, 63
      %s146 = scalar_select %p145, %s144, 63
      %s147 = smul.addr %s146, 4
      %s148 = scalar_lea.vmem %s0, %s147
      %p149 = pneg %p35
      %p150 = pneg %p32
      %p151 = pneg %p56
      %p152 = pneg %p53
      %p153 = pneg %p77
      %p154 = pneg %p74
      %p155 = pneg %p103
      %p156 = pneg %p100
      %s157 = smul.u32 32, %s14
      %p158 = scmp.lt.s32.totalorder %s157, 63
      %s159 = scalar_select %p158, %s157, 63
      %s160 = smul.addr %s159, 4
      %s161 = scalar_lea.vmem %s3, %s160
      %s162 = smul.u32 32, %s14
      %p163 = scmp.lt.s32.totalorder %s162, 63
      %s164 = scalar_select %p163, %s162, 63
      %s165 = smul.addr %s164, 4
      %s166 = scalar_lea.vmem %s0, %s165
      %s167 = smul.u32 32, %s14
      %s168 = smul.u32 32, %s14
      %p169 = scmp.lt.s32.totalorder %s168, 63
      %s170 = scalar_select %p169, %s168, 63
      %s171 = smul.addr %s170, 4
      %s172 = scalar_lea.vmem %s3, %s171
      %s173 = smul.u32 32, %s14
      %v175 = vld [vmem:[%s166] sm:$0xf]
      %v176 = vld [vmem:[%s166 + $0x4] sm:$0xf]
      %v177 = vld [vmem:[%s166 + $0x8] sm:$0xf]
      %v178 = vld [vmem:[%s166 + $0xc] sm:$0xf]
      %v179 = vld [vmem:[%s166 + $0x10] sm:$0xf]
      %v180 = vld [vmem:[%s166 + $0x14] sm:$0xf]
      %v181 = vld [vmem:[%s166 + $0x18] sm:$0xf]
      %v182 = vld [vmem:[%s166 + $0x1c] sm:$0xf]
      %v183 = vld [vmem:[%s166 + $0x20] sm:$0xf]
      %v184 = vld [vmem:[%s166 + $0x24] sm:$0xf]
      %v185 = vld [vmem:[%s166 + $0x28] sm:$0xf]
      %v186 = vld [vmem:[%s166 + $0x2c] sm:$0xf]
      %v187 = vld [vmem:[%s166 + $0x30] sm:$0xf]
      %v188 = vld [vmem:[%s166 + $0x34] sm:$0xf]
      %v189 = vld [vmem:[%s166 + $0x38] sm:$0xf]
      %v190 = vld [vmem:[%s166 + $0x3c] sm:$0xf]
      %v191 = vld [vmem:[%s166 + $0x40] sm:$0xf]
      %v192 = vld [vmem:[%s166 + $0x44] sm:$0xf]
      %v193 = vld [vmem:[%s166 + $0x48] sm:$0xf]
      %v194 = vld [vmem:[%s166 + $0x4c] sm:$0xf]
      %v195 = vld [vmem:[%s166 + $0x50] sm:$0xf]
      %v196 = vld [vmem:[%s166 + $0x54] sm:$0xf]
      %v197 = vld [vmem:[%s166 + $0x58] sm:$0xf]
      %v198 = vld [vmem:[%s166 + $0x5c] sm:$0xf]
      %v199 = vld [vmem:[%s166 + $0x60] sm:$0xf]
      %v200 = vld [vmem:[%s166 + $0x64] sm:$0xf]
      %v201 = vld [vmem:[%s166 + $0x68] sm:$0xf]
      %v202 = vld [vmem:[%s166 + $0x6c] sm:$0xf]
      %v203 = vld [vmem:[%s166 + $0x70] sm:$0xf]
      %v204 = vld [vmem:[%s166 + $0x74] sm:$0xf]
      %v205 = vld [vmem:[%s166 + $0x78] sm:$0xf]
      %v206 = vld [vmem:[%s166 + $0x7c] sm:$0xf]
      %v207 = vld [vmem:[%s1] sm:$0xf]
      %v208 = vld [vmem:[%s1 + $0x4] sm:$0xf]
      %v209 = vld [vmem:[%s1 + $0x8] sm:$0xf]
      %v210 = vld [vmem:[%s1 + $0xc] sm:$0xf]
      %v211 = vld [vmem:[%s1 + $0x10] sm:$0xf]
      %v212 = vld [vmem:[%s1 + $0x14] sm:$0xf]
      %v213 = vld [vmem:[%s1 + $0x18] sm:$0xf]
      %v214 = vld [vmem:[%s1 + $0x1c] sm:$0xf]
      %v215 = vld [vmem:[%s1 + $0x20] sm:$0xf]
      %v216 = vld [vmem:[%s1 + $0x24] sm:$0xf]
      %v217 = vld [vmem:[%s1 + $0x28] sm:$0xf]
      %v218 = vld [vmem:[%s1 + $0x2c] sm:$0xf]
      %v219 = vld [vmem:[%s1 + $0x30] sm:$0xf]
      %v220 = vld [vmem:[%s1 + $0x34] sm:$0xf]
      %v221 = vld [vmem:[%s1 + $0x38] sm:$0xf]
      %v222 = vld [vmem:[%s1 + $0x3c] sm:$0xf]
      %v223 = vld [vmem:[%s2] sm:$0x1]
      %v225 = vlaneseq
      %v226 = vshrl.u32 %v225, 7
      %v227 = vsub.s32 0, %v226
      %v228 = vrot.slane %v223, %v227
      %v262 = vunpack.c.l.b16 %v175
      %v263 = vunpack.c.l.b16 %v176
      %v264 = vunpack.c.l.b16 %v177
      %v265 = vunpack.c.l.b16 %v178
      %v266 = vunpack.c.l.b16 %v179
      %v267 = vunpack.c.l.b16 %v180
      %v268 = vunpack.c.l.b16 %v181
      %v269 = vunpack.c.l.b16 %v182
      %v270 = vunpack.c.l.b16 %v183
      %v271 = vunpack.c.l.b16 %v184
      %v272 = vunpack.c.l.b16 %v185
      %v273 = vunpack.c.l.b16 %v186
      %v274 = vunpack.c.l.b16 %v187
      %v275 = vunpack.c.l.b16 %v188
      %v276 = vunpack.c.l.b16 %v189
      %v277 = vunpack.c.l.b16 %v190
      %v278 = vunpack.c.l.b16 %v191
      %v279 = vunpack.c.l.b16 %v192
      %v280 = vunpack.c.l.b16 %v193
      %v281 = vunpack.c.l.b16 %v194
      %v282 = vunpack.c.l.b16 %v195
      %v283 = vunpack.c.l.b16 %v196
      %v284 = vunpack.c.l.b16 %v197
      %v285 = vunpack.c.l.b16 %v198
      %v286 = vunpack.c.l.b16 %v199
      %v287 = vunpack.c.l.b16 %v200
      %v288 = vunpack.c.l.b16 %v201
      %v289 = vunpack.c.l.b16 %v202
      %v290 = vunpack.c.l.b16 %v203
      %v291 = vunpack.c.l.b16 %v204
      %v292 = vunpack.c.l.b16 %v205
      %v293 = vunpack.c.l.b16 %v206
      %v294 = vpack.c.b16 %v263, %v262
      %v295 = vpack.c.b16 %v265, %v264
      %v296 = vpack.c.b16 %v267, %v266
      %v297 = vpack.c.b16 %v269, %v268
      %v298 = vpack.c.b16 %v271, %v270
      %v299 = vpack.c.b16 %v273, %v272
      %v300 = vpack.c.b16 %v275, %v274
      %v301 = vpack.c.b16 %v277, %v276
      %v302 = vpack.c.b16 %v279, %v278
      %v303 = vpack.c.b16 %v281, %v280
      %v304 = vpack.c.b16 %v283, %v282
      %v305 = vpack.c.b16 %v285, %v284
      %v306 = vpack.c.b16 %v287, %v286
      %v307 = vpack.c.b16 %v289, %v288
      %v308 = vpack.c.b16 %v291, %v290
      %v309 = vpack.c.b16 %v293, %v292
      %v342 = vunpack.c.l.b16 %v207
      %v343 = vunpack.c.l.b16 %v208
      %v344 = vunpack.c.l.b16 %v209
      %v345 = vunpack.c.l.b16 %v210
      %v346 = vunpack.c.l.b16 %v211
      %v347 = vunpack.c.l.b16 %v212
      %v348 = vunpack.c.l.b16 %v213
      %v349 = vunpack.c.l.b16 %v214
      %v350 = vunpack.c.l.b16 %v215
      %v351 = vunpack.c.l.b16 %v216
      %v352 = vunpack.c.l.b16 %v217
      %v353 = vunpack.c.l.b16 %v218
      %v354 = vunpack.c.l.b16 %v219
      %v355 = vunpack.c.l.b16 %v220
      %v356 = vunpack.c.l.b16 %v221
      %v357 = vunpack.c.l.b16 %v222
      %v358 = vpack.c.b16 %v343, %v342
      %v359 = vpack.c.b16 %v345, %v344
      %v360 = vpack.c.b16 %v347, %v346
      %v361 = vpack.c.b16 %v349, %v348
      %v362 = vpack.c.b16 %v351, %v350
      %v363 = vpack.c.b16 %v353, %v352
      %v364 = vpack.c.b16 %v355, %v354
      %v365 = vpack.c.b16 %v357, %v356
      %374 = vmatprep.subr.bf16.mxu0 0
      %375 = vmatpush1.bf16.msra.mxu0 %v365
      %376 = vmatprep.subr.bf16.mxu0 0
      %377 = vmatpush1.bf16.msra.mxu0 %v364
      %378 = vmatprep.subr.bf16.mxu0 0
      %379 = vmatpush1.bf16.msra.mxu0 %v363
      %380 = vmatprep.subr.bf16.mxu0 0
      %381 = vmatpush1.bf16.msra.mxu0 %v362
      %382 = vmatprep.subr.bf16.mxu0 0
      %383 = vmatpush1.bf16.msra.mxu0 %v361
      %384 = vmatprep.subr.bf16.mxu0 0
      %385 = vmatpush1.bf16.msra.mxu0 %v360
      %386 = vmatprep.subr.bf16.mxu0 0
      %387 = vmatpush1.bf16.msra.mxu0 %v359
      %388 = vmatprep.subr.bf16.mxu0 0
      %389 = vmatpush1.bf16.msra.mxu0 %v358
      %390 = vmatprep.subr.bf16.mxu0 0
      %391 = vmatpush2.bf16.msra.mxu0 0
      %392 = vmatprep.subr.bf16.mxu0 0
      %393 = vmatpush2.bf16.msra.mxu0 0
      %394 = vmatprep.subr.bf16.mxu0 0
      %395 = vmatpush2.bf16.msra.mxu0 0
      %396 = vmatprep.subr.bf16.mxu0 0
      %397 = vmatpush2.bf16.msra.mxu0 0
      %398 = vmatprep.subr.bf16.mxu0 0
      %399 = vmatpush2.bf16.msra.mxu0 0
      %400 = vmatprep.subr.bf16.mxu0 0
      %401 = vmatpush2.bf16.msra.mxu0 0
      %402 = vmatprep.subr.bf16.mxu0 0
      %403 = vmatpush2.bf16.msra.mxu0 0
      %404 = vmatprep.subr.bf16.mxu0 0
      %405 = vmatpush2.bf16.msra.mxu0 0
      %406 = vmatprep.mubr.bf16.mxu0 0
      %407 = vmatmul.mubr.bf16.gmra.mxu0 %v294
      %v408 = vpop.f32.mrf.mxu0
      %v409 = vadd.f32 %v228, %v408
      %v410 = vpop.f32.mrf.mxu0
      %v411 = vpop.f32.mrf.mxu0
      %v412 = vadd.f32 %v228, %v411
      %v413 = vpop.f32.mrf.mxu0
      %414 = vmatprep.mubr.bf16.mxu0 0
      %415 = vmatmul.mubr.bf16.gmra.mxu0 %v295
      %v416 = vpop.f32.mrf.mxu0
      %v417 = vadd.f32 %v228, %v416
      %v418 = vpop.f32.mrf.mxu0
      %v419 = vpop.f32.mrf.mxu0
      %v420 = vadd.f32 %v228, %v419
      %v421 = vpop.f32.mrf.mxu0
      %422 = vmatprep.mubr.bf16.mxu0 0
      %423 = vmatmul.mubr.bf16.gmra.mxu0 %v296
      %v424 = vpop.f32.mrf.mxu0
      %v425 = vadd.f32 %v228, %v424
      %v426 = vpop.f32.mrf.mxu0
      %v427 = vpop.f32.mrf.mxu0
      %v428 = vadd.f32 %v228, %v427
      %v429 = vpop.f32.mrf.mxu0
      %430 = vmatprep.mubr.bf16.mxu0 0
      %431 = vmatmul.mubr.bf16.gmra.mxu0 %v297
      %v432 = vpop.f32.mrf.mxu0
      %v433 = vadd.f32 %v228, %v432
      %v434 = vpop.f32.mrf.mxu0
      %v435 = vpop.f32.mrf.mxu0
      %v436 = vadd.f32 %v228, %v435
      %v437 = vpop.f32.mrf.mxu0
      %438 = vmatprep.mubr.bf16.mxu0 0
      %439 = vmatmul.mubr.bf16.gmra.mxu0 %v298
      %v440 = vpop.f32.mrf.mxu0
      %v441 = vadd.f32 %v228, %v440
      %v442 = vpop.f32.mrf.mxu0
      %v443 = vpop.f32.mrf.mxu0
      %v444 = vadd.f32 %v228, %v443
      %v445 = vpop.f32.mrf.mxu0
      %446 = vmatprep.mubr.bf16.mxu0 0
      %447 = vmatmul.mubr.bf16.gmra.mxu0 %v299
      %v448 = vpop.f32.mrf.mxu0
      %v449 = vadd.f32 %v228, %v448
      %v450 = vpop.f32.mrf.mxu0
      %v451 = vpop.f32.mrf.mxu0
      %v452 = vadd.f32 %v228, %v451
      %v453 = vpop.f32.mrf.mxu0
      %454 = vmatprep.mubr.bf16.mxu0 0
      %455 = vmatmul.mubr.bf16.gmra.mxu0 %v300
      %v456 = vpop.f32.mrf.mxu0
      %v457 = vadd.f32 %v228, %v456
      %v458 = vpop.f32.mrf.mxu0
      %v459 = vpop.f32.mrf.mxu0
      %v460 = vadd.f32 %v228, %v459
      %v461 = vpop.f32.mrf.mxu0
      %462 = vmatprep.mubr.bf16.mxu0 0
      %463 = vmatmul.mubr.bf16.gmra.mxu0 %v301
      %v464 = vpop.f32.mrf.mxu0
      %v465 = vadd.f32 %v228, %v464
      %v466 = vpop.f32.mrf.mxu0
      %v467 = vpop.f32.mrf.mxu0
      %v468 = vadd.f32 %v228, %v467
      %v469 = vpop.f32.mrf.mxu0
      %470 = vmatprep.mubr.bf16.mxu0 0
      %471 = vmatmul.mubr.bf16.gmra.mxu0 %v302
      %v472 = vpop.f32.mrf.mxu0
      %v473 = vadd.f32 %v228, %v472
      %v474 = vpop.f32.mrf.mxu0
      %v475 = vpop.f32.mrf.mxu0
      %v476 = vadd.f32 %v228, %v475
      %v477 = vpop.f32.mrf.mxu0
      %478 = vmatprep.mubr.bf16.mxu0 0
      %479 = vmatmul.mubr.bf16.gmra.mxu0 %v303
      %v480 = vpop.f32.mrf.mxu0
      %v481 = vadd.f32 %v228, %v480
      %v482 = vpop.f32.mrf.mxu0
      %v483 = vpop.f32.mrf.mxu0
      %v484 = vadd.f32 %v228, %v483
      %v485 = vpop.f32.mrf.mxu0
      %486 = vmatprep.mubr.bf16.mxu0 0
      %487 = vmatmul.mubr.bf16.gmra.mxu0 %v304
      %v488 = vpop.f32.mrf.mxu0
      %v489 = vadd.f32 %v228, %v488
      %v490 = vpop.f32.mrf.mxu0
      %v491 = vpop.f32.mrf.mxu0
      %v492 = vadd.f32 %v228, %v491
      %v493 = vpop.f32.mrf.mxu0
      %494 = vmatprep.mubr.bf16.mxu0 0
      %495 = vmatmul.mubr.bf16.gmra.mxu0 %v305
      %v496 = vpop.f32.mrf.mxu0
      %v497 = vadd.f32 %v228, %v496
      %v498 = vpop.f32.mrf.mxu0
      %v499 = vpop.f32.mrf.mxu0
      %v500 = vadd.f32 %v228, %v499
      %v501 = vpop.f32.mrf.mxu0
      %502 = vmatprep.mubr.bf16.mxu0 0
      %503 = vmatmul.mubr.bf16.gmra.mxu0 %v306
      %v504 = vpop.f32.mrf.mxu0
      %v505 = vadd.f32 %v228, %v504
      %v506 = vpop.f32.mrf.mxu0
      %v507 = vpop.f32.mrf.mxu0
      %v508 = vadd.f32 %v228, %v507
      %v509 = vpop.f32.mrf.mxu0
      %510 = vmatprep.mubr.bf16.mxu0 0
      %511 = vmatmul.mubr.bf16.gmra.mxu0 %v307
      %v512 = vpop.f32.mrf.mxu0
      %v513 = vadd.f32 %v228, %v512
      %v514 = vpop.f32.mrf.mxu0
      %v515 = vpop.f32.mrf.mxu0
      %v516 = vadd.f32 %v228, %v515
      %v517 = vpop.f32.mrf.mxu0
      %518 = vmatprep.mubr.bf16.mxu0 0
      %519 = vmatmul.mubr.bf16.gmra.mxu0 %v308
      %v520 = vpop.f32.mrf.mxu0
      %v521 = vadd.f32 %v228, %v520
      %v522 = vpop.f32.mrf.mxu0
      %v523 = vpop.f32.mrf.mxu0
      %v524 = vadd.f32 %v228, %v523
      %v525 = vpop.f32.mrf.mxu0
      %526 = vmatprep.mubr.bf16.mxu0 0
      %527 = vmatmul.mubr.bf16.gmra.mxu0 %v309
      %v528 = vpop.f32.mrf.mxu0
      %v529 = vadd.f32 %v228, %v528
      %v530 = vpop.f32.mrf.mxu0
      %v531 = vpop.f32.mrf.mxu0
      %v532 = vadd.f32 %v228, %v531
      %v533 = vpop.f32.mrf.mxu0
      %534 = vdwg.mxu0
      %v535 = vmax.f32 %v409, 0.0
      %v536 = vmax.f32 %v412, 0.0
      %v537 = vmax.f32 %v417, 0.0
      %v538 = vmax.f32 %v420, 0.0
      %v539 = vmax.f32 %v425, 0.0
      %v540 = vmax.f32 %v428, 0.0
      %v541 = vmax.f32 %v433, 0.0
      %v542 = vmax.f32 %v436, 0.0
      %v543 = vmax.f32 %v441, 0.0
      %v544 = vmax.f32 %v444, 0.0
      %v545 = vmax.f32 %v449, 0.0
      %v546 = vmax.f32 %v452, 0.0
      %v547 = vmax.f32 %v457, 0.0
      %v548 = vmax.f32 %v460, 0.0
      %v549 = vmax.f32 %v465, 0.0
      %v550 = vmax.f32 %v468, 0.0
      %v551 = vmax.f32 %v473, 0.0
      %v552 = vmax.f32 %v476, 0.0
      %v553 = vmax.f32 %v481, 0.0
      %v554 = vmax.f32 %v484, 0.0
      %v555 = vmax.f32 %v489, 0.0
      %v556 = vmax.f32 %v492, 0.0
      %v557 = vmax.f32 %v497, 0.0
      %v558 = vmax.f32 %v500, 0.0
      %v559 = vmax.f32 %v505, 0.0
      %v560 = vmax.f32 %v508, 0.0
      %v561 = vmax.f32 %v513, 0.0
      %v562 = vmax.f32 %v516, 0.0
      %v563 = vmax.f32 %v521, 0.0
      %v564 = vmax.f32 %v524, 0.0
      %v565 = vmax.f32 %v529, 0.0
      %v566 = vmax.f32 %v532, 0.0
      %v567 = vpack.c.bf16 %v536, %v535
      %v568 = vpack.c.bf16 %v538, %v537
      %v569 = vpack.c.bf16 %v540, %v539
      %v570 = vpack.c.bf16 %v542, %v541
      %v571 = vpack.c.bf16 %v544, %v543
      %v572 = vpack.c.bf16 %v546, %v545
      %v573 = vpack.c.bf16 %v548, %v547
      %v574 = vpack.c.bf16 %v550, %v549
      %v575 = vpack.c.bf16 %v552, %v551
      %v576 = vpack.c.bf16 %v554, %v553
      %v577 = vpack.c.bf16 %v556, %v555
      %v578 = vpack.c.bf16 %v558, %v557
      %v579 = vpack.c.bf16 %v560, %v559
      %v580 = vpack.c.bf16 %v562, %v561
      %v581 = vpack.c.bf16 %v564, %v563
      %v582 = vpack.c.bf16 %v566, %v565
      %v599 = vunpack.c.l.b16 %v567
      %v600 = vunpack.c.h.b16 %v567
      %v601 = vunpack.c.l.b16 %v568
      %v602 = vunpack.c.h.b16 %v568
      %v603 = vunpack.c.l.b16 %v569
      %v604 = vunpack.c.h.b16 %v569
      %v605 = vunpack.c.l.b16 %v570
      %v606 = vunpack.c.h.b16 %v570
      %v607 = vunpack.c.l.b16 %v571
      %v608 = vunpack.c.h.b16 %v571
      %v609 = vunpack.c.l.b16 %v572
      %v610 = vunpack.c.h.b16 %v572
      %v611 = vunpack.c.l.b16 %v573
      %v612 = vunpack.c.h.b16 %v573
      %v613 = vunpack.c.l.b16 %v574
      %v614 = vunpack.c.h.b16 %v574
      %v615 = vunpack.c.l.b16 %v575
      %v616 = vunpack.c.h.b16 %v575
      %v617 = vunpack.c.l.b16 %v576
      %v618 = vunpack.c.h.b16 %v576
      %v619 = vunpack.c.l.b16 %v577
      %v620 = vunpack.c.h.b16 %v577
      %v621 = vunpack.c.l.b16 %v578
      %v622 = vunpack.c.h.b16 %v578
      %v623 = vunpack.c.l.b16 %v579
      %v624 = vunpack.c.h.b16 %v579
      %v625 = vunpack.c.l.b16 %v580
      %v626 = vunpack.c.h.b16 %v580
      %v627 = vunpack.c.l.b16 %v581
      %v628 = vunpack.c.h.b16 %v581
      %v629 = vunpack.c.l.b16 %v582
      %v630 = vunpack.c.h.b16 %v582
      %v631 = vpack.c.b16 %v599, %v599
      %v632 = vpack.c.b16 %v600, %v600
      %v633 = vpack.c.b16 %v601, %v601
      %v634 = vpack.c.b16 %v602, %v602
      %v635 = vpack.c.b16 %v603, %v603
      %v636 = vpack.c.b16 %v604, %v604
      %v637 = vpack.c.b16 %v605, %v605
      %v638 = vpack.c.b16 %v606, %v606
      %v639 = vpack.c.b16 %v607, %v607
      %v640 = vpack.c.b16 %v608, %v608
      %v641 = vpack.c.b16 %v609, %v609
      %v642 = vpack.c.b16 %v610, %v610
      %v643 = vpack.c.b16 %v611, %v611
      %v644 = vpack.c.b16 %v612, %v612
      %v645 = vpack.c.b16 %v613, %v613
      %v646 = vpack.c.b16 %v614, %v614
      %v647 = vpack.c.b16 %v615, %v615
      %v648 = vpack.c.b16 %v616, %v616
      %v649 = vpack.c.b16 %v617, %v617
      %v650 = vpack.c.b16 %v618, %v618
      %v651 = vpack.c.b16 %v619, %v619
      %v652 = vpack.c.b16 %v620, %v620
      %v653 = vpack.c.b16 %v621, %v621
      %v654 = vpack.c.b16 %v622, %v622
      %v655 = vpack.c.b16 %v623, %v623
      %v656 = vpack.c.b16 %v624, %v624
      %v657 = vpack.c.b16 %v625, %v625
      %v658 = vpack.c.b16 %v626, %v626
      %v659 = vpack.c.b16 %v627, %v627
      %v660 = vpack.c.b16 %v628, %v628
      %v661 = vpack.c.b16 %v629, %v629
      %v662 = vpack.c.b16 %v630, %v630
      %695 = vst [vmem:[%s172] sm:$0xf] %v631
      %696 = vst [vmem:[%s172 + $0x4] sm:$0xf] %v632
      %697 = vst [vmem:[%s172 + $0x8] sm:$0xf] %v633
      %698 = vst [vmem:[%s172 + $0xc] sm:$0xf] %v634
      %699 = vst [vmem:[%s172 + $0x10] sm:$0xf] %v635
      %700 = vst [vmem:[%s172 + $0x14] sm:$0xf] %v636
      %701 = vst [vmem:[%s172 + $0x18] sm:$0xf] %v637
      %702 = vst [vmem:[%s172 + $0x1c] sm:$0xf] %v638
      %703 = vst [vmem:[%s172 + $0x20] sm:$0xf] %v639
      %704 = vst [vmem:[%s172 + $0x24] sm:$0xf] %v640
      %705 = vst [vmem:[%s172 + $0x28] sm:$0xf] %v641
      %706 = vst [vmem:[%s172 + $0x2c] sm:$0xf] %v642
      %707 = vst [vmem:[%s172 + $0x30] sm:$0xf] %v643
      %708 = vst [vmem:[%s172 + $0x34] sm:$0xf] %v644
      %709 = vst [vmem:[%s172 + $0x38] sm:$0xf] %v645
      %710 = vst [vmem:[%s172 + $0x3c] sm:$0xf] %v646
      %711 = vst [vmem:[%s172 + $0x40] sm:$0xf] %v647
      %712 = vst [vmem:[%s172 + $0x44] sm:$0xf] %v648
      %713 = vst [vmem:[%s172 + $0x48] sm:$0xf] %v649
      %714 = vst [vmem:[%s172 + $0x4c] sm:$0xf] %v650
      %715 = vst [vmem:[%s172 + $0x50] sm:$0xf] %v651
      %716 = vst [vmem:[%s172 + $0x54] sm:$0xf] %v652
      %717 = vst [vmem:[%s172 + $0x58] sm:$0xf] %v653
      %718 = vst [vmem:[%s172 + $0x5c] sm:$0xf] %v654
      %719 = vst [vmem:[%s172 + $0x60] sm:$0xf] %v655
      %720 = vst [vmem:[%s172 + $0x64] sm:$0xf] %v656
      %721 = vst [vmem:[%s172 + $0x68] sm:$0xf] %v657
      %722 = vst [vmem:[%s172 + $0x6c] sm:$0xf] %v658
      %723 = vst [vmem:[%s172 + $0x70] sm:$0xf] %v659
      %724 = vst [vmem:[%s172 + $0x74] sm:$0xf] %v660
      %725 = vst [vmem:[%s172 + $0x78] sm:$0xf] %v661
      %726 = vst [vmem:[%s172 + $0x7c] sm:$0xf] %v662
      %s727 = smul.u32 32, %s14
      %p728 = scmp.lt.s32.totalorder %s727, 63
      %s729 = scalar_select %p728, %s727, 63
      %s730 = smul.addr %s729, 4
      %s731 = scalar_lea.vmem %s3, %s730
      // Predicated region
      $region33: #{enc_svhn_forward.3} parent=31 // pred_check
        %p732 = pneg %p100
      $region34: #{enc_svhn_forward.3} parent=31 // pred_check_branch
        %734 = sbr.rel (%p732) target = $region36
      $region35: #{enc_svhn_forward.3} parent=31 // pred_region
        %s735 = smul.u32 32, %s14
      $region36: #{enc_svhn_forward.3} parent=31 // pred_fallthru
        _
    $region32: #{enc_svhn_forward.3} parent=5 // pred_fallthru
      _
    %p736 = scmp.le.s32.totalorder 2, %s9
    // Predicated region
    $region37: #{enc_svhn_forward.3} parent=5 // pred_check
      %p737 = pneg %p736
    $region38: #{enc_svhn_forward.3} parent=5 // pred_check_branch
      %739 = sbr.rel (%p737) target = $region40
    $region39: #{enc_svhn_forward.3} parent=5 // pred_region
      %s740 = ssub.s32 %s9, 2
      // Predicated region
      $region41: #{enc_svhn_forward.3} parent=39 // pred_check
        %p741 = pneg %p106
      $region42: #{enc_svhn_forward.3} parent=39 // pred_check_branch
        %743 = sbr.rel (%p741) target = $region44
      $region43: #{enc_svhn_forward.3} parent=39 // pred_region
        %s744 = smul.u32 32, %s15
        %p745 = scmp.lt.s32.totalorder %s744, 63
        %s746 = scalar_select %p745, %s744, 63
        %s747 = smul.addr %s746, 4
        %s748 = scalar_lea.vmem %s3, %s747
      $region44: #{enc_svhn_forward.3} parent=39 // pred_fallthru
        _
    $region40: #{enc_svhn_forward.3} parent=5 // pred_fallthru
      _
  $region6: #{enc_svhn_forward.3} parent=0 // loop_footer
    %s13 = sadd.s32 1, %s9
  $region7: #{enc_svhn_forward.3} parent=0 // loop_footer_branch
    %8 = sbr.rel target = $region3
  $region8: #{enc_svhn_forward.3} parent=0 // loop_exit
    _

// kernel: enc_svhn_forward.4
$region0: #{enc_svhn_forward.4}
  #allocation0 [shape = 'u32[]', space=smem, size = 0x4, offset = 0x4, fixed_abs, tag = 'smem constant byte address 0x4 - core index']
  #allocation1 [shape = 'u32[144,128]{1,0:T(1,128)}', space=vmem, size = 0x12000, scoped, tag = 'internal scratch']
  %s0 = inlined_call_operand.vmem [shape: bf16[128,512], index: 0, kind: input, shape index: {}]
  %s1 = inlined_call_operand.vmem [shape: bf16[512,128], index: 1, kind: input, shape index: {}]
  %s2 = inlined_call_operand.vmem [shape: f32[1,128], index: 2, kind: input, shape index: {}]
  %s3 = inlined_call_operand.vmem [shape: bf16[128,128], index: 3, kind: output, shape index: {}]
  %s4 = sld [smem:[#allocation0]]
  $region22: #{enc_svhn_forward.4} parent=0
    _
  %s6 = ssub.s32 1, %s4
  %s7 = scalar_select 0, %s6, %s4
  // Predicated region
  $region2: #{enc_svhn_forward.4} parent=0 // pred_check
    _
  $region3: #{enc_svhn_forward.4} parent=0 // pred_check_branch
    %9 = sbr.rel (0) target = $region5
  $region4: #{enc_svhn_forward.4} parent=0 // pred_region
    _
  $region5: #{enc_svhn_forward.4} parent=0 // pred_fallthru
    _
  // Predicated region
  $region6: #{enc_svhn_forward.4} parent=0 // pred_check
    _
  $region7: #{enc_svhn_forward.4} parent=0 // pred_check_branch
    %11 = sbr.rel (0) target = $region9
  $region8: #{enc_svhn_forward.4} parent=0 // pred_region
    _
  $region9: #{enc_svhn_forward.4} parent=0 // pred_fallthru
    _
  // Predicated region
  $region10: #{enc_svhn_forward.4} parent=0 // pred_check
    _
  $region11: #{enc_svhn_forward.4} parent=0 // pred_check_branch
    %13 = sbr.rel (0) target = $region13
  $region12: #{enc_svhn_forward.4} parent=0 // pred_region
    _
  $region13: #{enc_svhn_forward.4} parent=0 // pred_fallthru
    _
  %v15 = vld [vmem:[%s0] sm:$0xff]
  %v16 = vld [vmem:[%s0 + $0x8] sm:$0xff]
  %v17 = vld [vmem:[%s0 + $0x10] sm:$0xff]
  %v18 = vld [vmem:[%s0 + $0x18] sm:$0xff]
  %v19 = vld [vmem:[%s0 + $0x20] sm:$0xff]
  %v20 = vld [vmem:[%s0 + $0x28] sm:$0xff]
  %v21 = vld [vmem:[%s0 + $0x30] sm:$0xff]
  %v22 = vld [vmem:[%s0 + $0x38] sm:$0xff]
  %v23 = vld [vmem:[%s0 + $0x40] sm:$0xff]
  %v24 = vld [vmem:[%s0 + $0x48] sm:$0xff]
  %v25 = vld [vmem:[%s0 + $0x50] sm:$0xff]
  %v26 = vld [vmem:[%s0 + $0x58] sm:$0xff]
  %v27 = vld [vmem:[%s0 + $0x60] sm:$0xff]
  %v28 = vld [vmem:[%s0 + $0x68] sm:$0xff]
  %v29 = vld [vmem:[%s0 + $0x70] sm:$0xff]
  %v30 = vld [vmem:[%s0 + $0x78] sm:$0xff]
  %v31 = vld [vmem:[%s0 + $0x80] sm:$0xff]
  %v32 = vld [vmem:[%s0 + $0x88] sm:$0xff]
  %v33 = vld [vmem:[%s0 + $0x90] sm:$0xff]
  %v34 = vld [vmem:[%s0 + $0x98] sm:$0xff]
  %v35 = vld [vmem:[%s0 + $0xa0] sm:$0xff]
  %v36 = vld [vmem:[%s0 + $0xa8] sm:$0xff]
  %v37 = vld [vmem:[%s0 + $0xb0] sm:$0xff]
  %v38 = vld [vmem:[%s0 + $0xb8] sm:$0xff]
  %v39 = vld [vmem:[%s0 + $0xc0] sm:$0xff]
  %v40 = vld [vmem:[%s0 + $0xc8] sm:$0xff]
  %v41 = vld [vmem:[%s0 + $0xd0] sm:$0xff]
  %v42 = vld [vmem:[%s0 + $0xd8] sm:$0xff]
  %v43 = vld [vmem:[%s0 + $0xe0] sm:$0xff]
  %v44 = vld [vmem:[%s0 + $0xe8] sm:$0xff]
  %v45 = vld [vmem:[%s0 + $0xf0] sm:$0xff]
  %v46 = vld [vmem:[%s0 + $0xf8] sm:$0xff]
  %v47 = vld [vmem:[%s1] sm:$0xf]
  %v48 = vld [vmem:[%s1 + $0x4] sm:$0xf]
  %v49 = vld [vmem:[%s1 + $0x8] sm:$0xf]
  %v50 = vld [vmem:[%s1 + $0xc] sm:$0xf]
  %v51 = vld [vmem:[%s1 + $0x10] sm:$0xf]
  %v52 = vld [vmem:[%s1 + $0x14] sm:$0xf]
  %v53 = vld [vmem:[%s1 + $0x18] sm:$0xf]
  %v54 = vld [vmem:[%s1 + $0x1c] sm:$0xf]
  %v55 = vld [vmem:[%s1 + $0x20] sm:$0xf]
  %v56 = vld [vmem:[%s1 + $0x24] sm:$0xf]
  %v57 = vld [vmem:[%s1 + $0x28] sm:$0xf]
  %v58 = vld [vmem:[%s1 + $0x2c] sm:$0xf]
  %v59 = vld [vmem:[%s1 + $0x30] sm:$0xf]
  %v60 = vld [vmem:[%s1 + $0x34] sm:$0xf]
  %v61 = vld [vmem:[%s1 + $0x38] sm:$0xf]
  %v62 = vld [vmem:[%s1 + $0x3c] sm:$0xf]
  %v63 = vld [vmem:[%s1 + $0x40] sm:$0xf]
  %v64 = vld [vmem:[%s1 + $0x44] sm:$0xf]
  %v65 = vld [vmem:[%s1 + $0x48] sm:$0xf]
  %v66 = vld [vmem:[%s1 + $0x4c] sm:$0xf]
  %v67 = vld [vmem:[%s1 + $0x50] sm:$0xf]
  %v68 = vld [vmem:[%s1 + $0x54] sm:$0xf]
  %v69 = vld [vmem:[%s1 + $0x58] sm:$0xf]
  %v70 = vld [vmem:[%s1 + $0x5c] sm:$0xf]
  %v71 = vld [vmem:[%s1 + $0x60] sm:$0xf]
  %v72 = vld [vmem:[%s1 + $0x64] sm:$0xf]
  %v73 = vld [vmem:[%s1 + $0x68] sm:$0xf]
  %v74 = vld [vmem:[%s1 + $0x6c] sm:$0xf]
  %v75 = vld [vmem:[%s1 + $0x70] sm:$0xf]
  %v76 = vld [vmem:[%s1 + $0x74] sm:$0xf]
  %v77 = vld [vmem:[%s1 + $0x78] sm:$0xf]
  %v78 = vld [vmem:[%s1 + $0x7c] sm:$0xf]
  %v79 = vld [vmem:[%s1 + $0x80] sm:$0xf]
  %v80 = vld [vmem:[%s1 + $0x84] sm:$0xf]
  %v81 = vld [vmem:[%s1 + $0x88] sm:$0xf]
  %v82 = vld [vmem:[%s1 + $0x8c] sm:$0xf]
  %v83 = vld [vmem:[%s1 + $0x90] sm:$0xf]
  %v84 = vld [vmem:[%s1 + $0x94] sm:$0xf]
  %v85 = vld [vmem:[%s1 + $0x98] sm:$0xf]
  %v86 = vld [vmem:[%s1 + $0x9c] sm:$0xf]
  %v87 = vld [vmem:[%s1 + $0xa0] sm:$0xf]
  %v88 = vld [vmem:[%s1 + $0xa4] sm:$0xf]
  %v89 = vld [vmem:[%s1 + $0xa8] sm:$0xf]
  %v90 = vld [vmem:[%s1 + $0xac] sm:$0xf]
  %v91 = vld [vmem:[%s1 + $0xb0] sm:$0xf]
  %v92 = vld [vmem:[%s1 + $0xb4] sm:$0xf]
  %v93 = vld [vmem:[%s1 + $0xb8] sm:$0xf]
  %v94 = vld [vmem:[%s1 + $0xbc] sm:$0xf]
  %v95 = vld [vmem:[%s1 + $0xc0] sm:$0xf]
  %v96 = vld [vmem:[%s1 + $0xc4] sm:$0xf]
  %v97 = vld [vmem:[%s1 + $0xc8] sm:$0xf]
  %v98 = vld [vmem:[%s1 + $0xcc] sm:$0xf]
  %v99 = vld [vmem:[%s1 + $0xd0] sm:$0xf]
  %v100 = vld [vmem:[%s1 + $0xd4] sm:$0xf]
  %v101 = vld [vmem:[%s1 + $0xd8] sm:$0xf]
  %v102 = vld [vmem:[%s1 + $0xdc] sm:$0xf]
  %v103 = vld [vmem:[%s1 + $0xe0] sm:$0xf]
  %v104 = vld [vmem:[%s1 + $0xe4] sm:$0xf]
  %v105 = vld [vmem:[%s1 + $0xe8] sm:$0xf]
  %v106 = vld [vmem:[%s1 + $0xec] sm:$0xf]
  %v107 = vld [vmem:[%s1 + $0xf0] sm:$0xf]
  %v108 = vld [vmem:[%s1 + $0xf4] sm:$0xf]
  %v109 = vld [vmem:[%s1 + $0xf8] sm:$0xf]
  %v110 = vld [vmem:[%s1 + $0xfc] sm:$0xf]
  %v111 = vld [vmem:[%s2] sm:$0x1]
  %v113 = vlaneseq
  %v114 = vshrl.u32 %v113, 7
  %v115 = vsub.s32 0, %v114
  %v116 = vrot.slane %v111, %v115
  %v150 = vunpack.c.l.b16 %v15
  %v151 = vunpack.c.h.b16 %v15
  %v152 = vunpack.c.l.b16 %v16
  %v153 = vunpack.c.h.b16 %v16
  %v154 = vunpack.c.l.b16 %v17
  %v155 = vunpack.c.h.b16 %v17
  %v156 = vunpack.c.l.b16 %v18
  %v157 = vunpack.c.h.b16 %v18
  %v158 = vunpack.c.l.b16 %v19
  %v159 = vunpack.c.h.b16 %v19
  %v160 = vunpack.c.l.b16 %v20
  %v161 = vunpack.c.h.b16 %v20
  %v162 = vunpack.c.l.b16 %v21
  %v163 = vunpack.c.h.b16 %v21
  %v164 = vunpack.c.l.b16 %v22
  %v165 = vunpack.c.h.b16 %v22
  %v166 = vunpack.c.l.b16 %v23
  %v167 = vunpack.c.h.b16 %v23
  %v168 = vunpack.c.l.b16 %v24
  %v169 = vunpack.c.h.b16 %v24
  %v170 = vunpack.c.l.b16 %v25
  %v171 = vunpack.c.h.b16 %v25
  %v172 = vunpack.c.l.b16 %v26
  %v173 = vunpack.c.h.b16 %v26
  %v174 = vunpack.c.l.b16 %v27
  %v175 = vunpack.c.h.b16 %v27
  %v176 = vunpack.c.l.b16 %v28
  %v177 = vunpack.c.h.b16 %v28
  %v178 = vunpack.c.l.b16 %v29
  %v179 = vunpack.c.h.b16 %v29
  %v180 = vunpack.c.l.b16 %v30
  %v181 = vunpack.c.h.b16 %v30
  %v182 = vunpack.c.l.b16 %v31
  %v183 = vunpack.c.h.b16 %v31
  %v184 = vunpack.c.l.b16 %v32
  %v185 = vunpack.c.h.b16 %v32
  %v186 = vunpack.c.l.b16 %v33
  %v187 = vunpack.c.h.b16 %v33
  %v188 = vunpack.c.l.b16 %v34
  %v189 = vunpack.c.h.b16 %v34
  %v190 = vunpack.c.l.b16 %v35
  %v191 = vunpack.c.h.b16 %v35
  %v192 = vunpack.c.l.b16 %v36
  %v193 = vunpack.c.h.b16 %v36
  %v194 = vunpack.c.l.b16 %v37
  %v195 = vunpack.c.h.b16 %v37
  %v196 = vunpack.c.l.b16 %v38
  %v197 = vunpack.c.h.b16 %v38
  %v198 = vunpack.c.l.b16 %v39
  %v199 = vunpack.c.h.b16 %v39
  %v200 = vunpack.c.l.b16 %v40
  %v201 = vunpack.c.h.b16 %v40
  %v202 = vunpack.c.l.b16 %v41
  %v203 = vunpack.c.h.b16 %v41
  %v204 = vunpack.c.l.b16 %v42
  %v205 = vunpack.c.h.b16 %v42
  %v206 = vunpack.c.l.b16 %v43
  %v207 = vunpack.c.h.b16 %v43
  %v208 = vunpack.c.l.b16 %v44
  %v209 = vunpack.c.h.b16 %v44
  %v210 = vunpack.c.l.b16 %v45
  %v211 = vunpack.c.h.b16 %v45
  %v212 = vunpack.c.l.b16 %v46
  %v213 = vunpack.c.h.b16 %v46
  %v214 = vpack.c.b16 %v154, %v150
  %v215 = vpack.c.b16 %v155, %v151
  %v216 = vpack.c.b16 %v156, %v152
  %v217 = vpack.c.b16 %v157, %v153
  %v218 = vpack.c.b16 %v162, %v158
  %v219 = vpack.c.b16 %v163, %v159
  %v220 = vpack.c.b16 %v164, %v160
  %v221 = vpack.c.b16 %v165, %v161
  %v222 = vpack.c.b16 %v170, %v166
  %v223 = vpack.c.b16 %v171, %v167
  %v224 = vpack.c.b16 %v172, %v168
  %v225 = vpack.c.b16 %v173, %v169
  %v226 = vpack.c.b16 %v178, %v174
  %v227 = vpack.c.b16 %v179, %v175
  %v228 = vpack.c.b16 %v180, %v176
  %v229 = vpack.c.b16 %v181, %v177
  %v230 = vpack.c.b16 %v186, %v182
  %v231 = vpack.c.b16 %v187, %v183
  %v232 = vpack.c.b16 %v188, %v184
  %v233 = vpack.c.b16 %v189, %v185
  %v234 = vpack.c.b16 %v194, %v190
  %v235 = vpack.c.b16 %v195, %v191
  %v236 = vpack.c.b16 %v196, %v192
  %v237 = vpack.c.b16 %v197, %v193
  %v238 = vpack.c.b16 %v202, %v198
  %v239 = vpack.c.b16 %v203, %v199
  %v240 = vpack.c.b16 %v204, %v200
  %v241 = vpack.c.b16 %v205, %v201
  %v242 = vpack.c.b16 %v210, %v206
  %v243 = vpack.c.b16 %v211, %v207
  %v244 = vpack.c.b16 %v212, %v208
  %v245 = vpack.c.b16 %v213, %v209
  %v342 = vunpack.c.l.b16 %v47
  %v343 = vunpack.c.l.b16 %v48
  %v344 = vunpack.c.l.b16 %v49
  %v345 = vunpack.c.l.b16 %v50
  %v346 = vunpack.c.l.b16 %v51
  %v347 = vunpack.c.l.b16 %v52
  %v348 = vunpack.c.l.b16 %v53
  %v349 = vunpack.c.l.b16 %v54
  %v350 = vunpack.c.l.b16 %v55
  %v351 = vunpack.c.l.b16 %v56
  %v352 = vunpack.c.l.b16 %v57
  %v353 = vunpack.c.l.b16 %v58
  %v354 = vunpack.c.l.b16 %v59
  %v355 = vunpack.c.l.b16 %v60
  %v356 = vunpack.c.l.b16 %v61
  %v357 = vunpack.c.l.b16 %v62
  %v358 = vunpack.c.l.b16 %v63
  %v359 = vunpack.c.l.b16 %v64
  %v360 = vunpack.c.l.b16 %v65
  %v361 = vunpack.c.l.b16 %v66
  %v362 = vunpack.c.l.b16 %v67
  %v363 = vunpack.c.l.b16 %v68
  %v364 = vunpack.c.l.b16 %v69
  %v365 = vunpack.c.l.b16 %v70
  %v366 = vunpack.c.l.b16 %v71
  %v367 = vunpack.c.l.b16 %v72
  %v368 = vunpack.c.l.b16 %v73
  %v369 = vunpack.c.l.b16 %v74
  %v370 = vunpack.c.l.b16 %v75
  %v371 = vunpack.c.l.b16 %v76
  %v372 = vunpack.c.l.b16 %v77
  %v373 = vunpack.c.l.b16 %v78
  %v374 = vunpack.c.l.b16 %v79
  %v375 = vunpack.c.l.b16 %v80
  %v376 = vunpack.c.l.b16 %v81
  %v377 = vunpack.c.l.b16 %v82
  %v378 = vunpack.c.l.b16 %v83
  %v379 = vunpack.c.l.b16 %v84
  %v380 = vunpack.c.l.b16 %v85
  %v381 = vunpack.c.l.b16 %v86
  %v382 = vunpack.c.l.b16 %v87
  %v383 = vunpack.c.l.b16 %v88
  %v384 = vunpack.c.l.b16 %v89
  %v385 = vunpack.c.l.b16 %v90
  %v386 = vunpack.c.l.b16 %v91
  %v387 = vunpack.c.l.b16 %v92
  %v388 = vunpack.c.l.b16 %v93
  %v389 = vunpack.c.l.b16 %v94
  %v390 = vunpack.c.l.b16 %v95
  %v391 = vunpack.c.l.b16 %v96
  %v392 = vunpack.c.l.b16 %v97
  %v393 = vunpack.c.l.b16 %v98
  %v394 = vunpack.c.l.b16 %v99
  %v395 = vunpack.c.l.b16 %v100
  %v396 = vunpack.c.l.b16 %v101
  %v397 = vunpack.c.l.b16 %v102
  %v398 = vunpack.c.l.b16 %v103
  %v399 = vunpack.c.l.b16 %v104
  %v400 = vunpack.c.l.b16 %v105
  %v401 = vunpack.c.l.b16 %v106
  %v402 = vunpack.c.l.b16 %v107
  %v403 = vunpack.c.l.b16 %v108
  %v404 = vunpack.c.l.b16 %v109
  %v405 = vunpack.c.l.b16 %v110
  %v406 = vpack.c.b16 %v343, %v342
  %v407 = vpack.c.b16 %v345, %v344
  %v408 = vpack.c.b16 %v347, %v346
  %v409 = vpack.c.b16 %v349, %v348
  %v410 = vpack.c.b16 %v351, %v350
  %v411 = vpack.c.b16 %v353, %v352
  %v412 = vpack.c.b16 %v355, %v354
  %v413 = vpack.c.b16 %v357, %v356
  %v414 = vpack.c.b16 %v359, %v358
  %v415 = vpack.c.b16 %v361, %v360
  %v416 = vpack.c.b16 %v363, %v362
  %v417 = vpack.c.b16 %v365, %v364
  %v418 = vpack.c.b16 %v367, %v366
  %v419 = vpack.c.b16 %v369, %v368
  %v420 = vpack.c.b16 %v371, %v370
  %v421 = vpack.c.b16 %v373, %v372
  %v422 = vpack.c.b16 %v375, %v374
  %v423 = vpack.c.b16 %v377, %v376
  %v424 = vpack.c.b16 %v379, %v378
  %v425 = vpack.c.b16 %v381, %v380
  %v426 = vpack.c.b16 %v383, %v382
  %v427 = vpack.c.b16 %v385, %v384
  %v428 = vpack.c.b16 %v387, %v386
  %v429 = vpack.c.b16 %v389, %v388
  %v430 = vpack.c.b16 %v391, %v390
  %v431 = vpack.c.b16 %v393, %v392
  %v432 = vpack.c.b16 %v395, %v394
  %v433 = vpack.c.b16 %v397, %v396
  %v434 = vpack.c.b16 %v399, %v398
  %v435 = vpack.c.b16 %v401, %v400
  %v436 = vpack.c.b16 %v403, %v402
  %v437 = vpack.c.b16 %v405, %v404
  %470 = vmatprep.subr.bf16.mxu0 0
  %471 = vmatpush1.bf16.msra.mxu0 %v413
  %472 = vmatprep.subr.bf16.mxu0 0
  %473 = vmatpush1.bf16.msra.mxu0 %v412
  %474 = vmatprep.subr.bf16.mxu0 0
  %475 = vmatpush1.bf16.msra.mxu0 %v411
  %476 = vmatprep.subr.bf16.mxu0 0
  %477 = vmatpush1.bf16.msra.mxu0 %v410
  %478 = vmatprep.subr.bf16.mxu0 0
  %479 = vmatpush1.bf16.msra.mxu0 %v409
  %480 = vmatprep.subr.bf16.mxu0 0
  %481 = vmatpush1.bf16.msra.mxu0 %v408
  %482 = vmatprep.subr.bf16.mxu0 0
  %483 = vmatpush1.bf16.msra.mxu0 %v407
  %484 = vmatprep.subr.bf16.mxu0 0
  %485 = vmatpush1.bf16.msra.mxu0 %v406
  %486 = vmatprep.subr.bf16.mxu0 0
  %487 = vmatpush2.bf16.msra.mxu0 %v421
  %488 = vmatprep.subr.bf16.mxu0 0
  %489 = vmatpush2.bf16.msra.mxu0 %v420
  %490 = vmatprep.subr.bf16.mxu0 0
  %491 = vmatpush2.bf16.msra.mxu0 %v419
  %492 = vmatprep.subr.bf16.mxu0 0
  %493 = vmatpush2.bf16.msra.mxu0 %v418
  %494 = vmatprep.subr.bf16.mxu0 0
  %495 = vmatpush2.bf16.msra.mxu0 %v417
  %496 = vmatprep.subr.bf16.mxu0 0
  %497 = vmatpush2.bf16.msra.mxu0 %v416
  %498 = vmatprep.subr.bf16.mxu0 0
  %499 = vmatpush2.bf16.msra.mxu0 %v415
  %500 = vmatprep.subr.bf16.mxu0 0
  %501 = vmatpush2.bf16.msra.mxu0 %v414
  %502 = vmatprep.mubr.bf16.mxu0 %v215
  %503 = vmatmul.mubr.bf16.gmra.mxu0 %v214
  %v504 = vpop.f32.mrf.mxu0
  %v505 = vadd.f32 %v116, %v504
  %v506 = vpop.f32.mrf.mxu0
  %v507 = vpop.f32.mrf.mxu0
  %v508 = vadd.f32 %v116, %v507
  %v509 = vpop.f32.mrf.mxu0
  %510 = vmatprep.mubr.bf16.mxu0 %v219
  %511 = vmatmul.mubr.bf16.gmra.mxu0 %v218
  %v512 = vpop.f32.mrf.mxu0
  %v513 = vadd.f32 %v116, %v512
  %v514 = vpop.f32.mrf.mxu0
  %v515 = vpop.f32.mrf.mxu0
  %v516 = vadd.f32 %v116, %v515
  %v517 = vpop.f32.mrf.mxu0
  %518 = vmatprep.mubr.bf16.mxu0 %v223
  %519 = vmatmul.mubr.bf16.gmra.mxu0 %v222
  %v520 = vpop.f32.mrf.mxu0
  %v521 = vadd.f32 %v116, %v520
  %v522 = vpop.f32.mrf.mxu0
  %v523 = vpop.f32.mrf.mxu0
  %v524 = vadd.f32 %v116, %v523
  %v525 = vpop.f32.mrf.mxu0
  %526 = vmatprep.mubr.bf16.mxu0 %v227
  %527 = vmatmul.mubr.bf16.gmra.mxu0 %v226
  %v528 = vpop.f32.mrf.mxu0
  %v529 = vadd.f32 %v116, %v528
  %v530 = vpop.f32.mrf.mxu0
  %v531 = vpop.f32.mrf.mxu0
  %v532 = vadd.f32 %v116, %v531
  %v533 = vpop.f32.mrf.mxu0
  %534 = vmatprep.mubr.bf16.mxu0 %v231
  %535 = vmatmul.mubr.bf16.gmra.mxu0 %v230
  %v536 = vpop.f32.mrf.mxu0
  %v537 = vadd.f32 %v116, %v536
  %v538 = vpop.f32.mrf.mxu0
  %v539 = vpop.f32.mrf.mxu0
  %v540 = vadd.f32 %v116, %v539
  %v541 = vpop.f32.mrf.mxu0
  %542 = vmatprep.mubr.bf16.mxu0 %v235
  %543 = vmatmul.mubr.bf16.gmra.mxu0 %v234
  %v544 = vpop.f32.mrf.mxu0
  %v545 = vadd.f32 %v116, %v544
  %v546 = vpop.f32.mrf.mxu0
  %v547 = vpop.f32.mrf.mxu0
  %v548 = vadd.f32 %v116, %v547
  %v549 = vpop.f32.mrf.mxu0
  %550 = vmatprep.mubr.bf16.mxu0 %v239
  %551 = vmatmul.mubr.bf16.gmra.mxu0 %v238
  %v552 = vpop.f32.mrf.mxu0
  %v553 = vadd.f32 %v116, %v552
  %v554 = vpop.f32.mrf.mxu0
  %v555 = vpop.f32.mrf.mxu0
  %v556 = vadd.f32 %v116, %v555
  %v557 = vpop.f32.mrf.mxu0
  %558 = vmatprep.mubr.bf16.mxu0 %v243
  %559 = vmatmul.mubr.bf16.gmra.mxu0 %v242
  %v560 = vpop.f32.mrf.mxu0
  %v561 = vadd.f32 %v116, %v560
  %v562 = vpop.f32.mrf.mxu0
  %v563 = vpop.f32.mrf.mxu0
  %v564 = vadd.f32 %v116, %v563
  %v565 = vpop.f32.mrf.mxu0
  %566 = vdwg.mxu0
  %567 = vmatprep.subr.bf16.mxu0 0
  %568 = vmatpush1.bf16.msra.mxu0 %v429
  %569 = vmatprep.subr.bf16.mxu0 0
  %570 = vmatpush1.bf16.msra.mxu0 %v428
  %571 = vmatprep.subr.bf16.mxu0 0
  %572 = vmatpush1.bf16.msra.mxu0 %v427
  %573 = vmatprep.subr.bf16.mxu0 0
  %574 = vmatpush1.bf16.msra.mxu0 %v426
  %575 = vmatprep.subr.bf16.mxu0 0
  %576 = vmatpush1.bf16.msra.mxu0 %v425
  %577 = vmatprep.subr.bf16.mxu0 0
  %578 = vmatpush1.bf16.msra.mxu0 %v424
  %579 = vmatprep.subr.bf16.mxu0 0
  %580 = vmatpush1.bf16.msra.mxu0 %v423
  %581 = vmatprep.subr.bf16.mxu0 0
  %582 = vmatpush1.bf16.msra.mxu0 %v422
  %583 = vmatprep.subr.bf16.mxu0 0
  %584 = vmatpush2.bf16.msra.mxu0 %v437
  %585 = vmatprep.subr.bf16.mxu0 0
  %586 = vmatpush2.bf16.msra.mxu0 %v436
  %587 = vmatprep.subr.bf16.mxu0 0
  %588 = vmatpush2.bf16.msra.mxu0 %v435
  %589 = vmatprep.subr.bf16.mxu0 0
  %590 = vmatpush2.bf16.msra.mxu0 %v434
  %591 = vmatprep.subr.bf16.mxu0 0
  %592 = vmatpush2.bf16.msra.mxu0 %v433
  %593 = vmatprep.subr.bf16.mxu0 0
  %594 = vmatpush2.bf16.msra.mxu0 %v432
  %595 = vmatprep.subr.bf16.mxu0 0
  %596 = vmatpush2.bf16.msra.mxu0 %v431
  %597 = vmatprep.subr.bf16.mxu0 0
  %598 = vmatpush2.bf16.msra.mxu0 %v430
  %599 = vmatprep.mubr.bf16.mxu0 %v217
  %600 = vmatmul.mubr.bf16.gmra.mxu0 %v216
  %v601 = vpop.f32.mrf.mxu0
  %v602 = vadd.f32 %v505, %v601
  %v603 = vpop.f32.mrf.mxu0
  %v604 = vpop.f32.mrf.mxu0
  %v605 = vadd.f32 %v508, %v604
  %v606 = vpop.f32.mrf.mxu0
  %607 = vmatprep.mubr.bf16.mxu0 %v221
  %608 = vmatmul.mubr.bf16.gmra.mxu0 %v220
  %v609 = vpop.f32.mrf.mxu0
  %v610 = vadd.f32 %v513, %v609
  %v611 = vpop.f32.mrf.mxu0
  %v612 = vpop.f32.mrf.mxu0
  %v613 = vadd.f32 %v516, %v612
  %v614 = vpop.f32.mrf.mxu0
  %615 = vmatprep.mubr.bf16.mxu0 %v225
  %616 = vmatmul.mubr.bf16.gmra.mxu0 %v224
  %v617 = vpop.f32.mrf.mxu0
  %v618 = vadd.f32 %v521, %v617
  %v619 = vpop.f32.mrf.mxu0
  %v620 = vpop.f32.mrf.mxu0
  %v621 = vadd.f32 %v524, %v620
  %v622 = vpop.f32.mrf.mxu0
  %623 = vmatprep.mubr.bf16.mxu0 %v229
  %624 = vmatmul.mubr.bf16.gmra.mxu0 %v228
  %v625 = vpop.f32.mrf.mxu0
  %v626 = vadd.f32 %v529, %v625
  %v627 = vpop.f32.mrf.mxu0
  %v628 = vpop.f32.mrf.mxu0
  %v629 = vadd.f32 %v532, %v628
  %v630 = vpop.f32.mrf.mxu0
  %631 = vmatprep.mubr.bf16.mxu0 %v233
  %632 = vmatmul.mubr.bf16.gmra.mxu0 %v232
  %v633 = vpop.f32.mrf.mxu0
  %v634 = vadd.f32 %v537, %v633
  %v635 = vpop.f32.mrf.mxu0
  %v636 = vpop.f32.mrf.mxu0
  %v637 = vadd.f32 %v540, %v636
  %v638 = vpop.f32.mrf.mxu0
  %639 = vmatprep.mubr.bf16.mxu0 %v237
  %640 = vmatmul.mubr.bf16.gmra.mxu0 %v236
  %v641 = vpop.f32.mrf.mxu0
  %v642 = vadd.f32 %v545, %v641
  %v643 = vpop.f32.mrf.mxu0
  %v644 = vpop.f32.mrf.mxu0
  %v645 = vadd.f32 %v548, %v644
  %v646 = vpop.f32.mrf.mxu0
  %647 = vmatprep.mubr.bf16.mxu0 %v241
  %648 = vmatmul.mubr.bf16.gmra.mxu0 %v240
  %v649 = vpop.f32.mrf.mxu0
  %v650 = vadd.f32 %v553, %v649
  %v651 = vpop.f32.mrf.mxu0
  %v652 = vpop.f32.mrf.mxu0
  %v653 = vadd.f32 %v556, %v652
  %v654 = vpop.f32.mrf.mxu0
  %655 = vmatprep.mubr.bf16.mxu0 %v245
  %656 = vmatmul.mubr.bf16.gmra.mxu0 %v244
  %v657 = vpop.f32.mrf.mxu0
  %v658 = vadd.f32 %v561, %v657
  %v659 = vpop.f32.mrf.mxu0
  %v660 = vpop.f32.mrf.mxu0
  %v661 = vadd.f32 %v564, %v660
  %v662 = vpop.f32.mrf.mxu0
  %663 = vdwg.mxu0
  %v664 = vmax.f32 %v602, 0.0
  %v665 = vmax.f32 %v605, 0.0
  %v666 = vmax.f32 %v610, 0.0
  %v667 = vmax.f32 %v613, 0.0
  %v668 = vmax.f32 %v618, 0.0
  %v669 = vmax.f32 %v621, 0.0
  %v670 = vmax.f32 %v626, 0.0
  %v671 = vmax.f32 %v629, 0.0
  %v672 = vmax.f32 %v634, 0.0
  %v673 = vmax.f32 %v637, 0.0
  %v674 = vmax.f32 %v642, 0.0
  %v675 = vmax.f32 %v645, 0.0
  %v676 = vmax.f32 %v650, 0.0
  %v677 = vmax.f32 %v653, 0.0
  %v678 = vmax.f32 %v658, 0.0
  %v679 = vmax.f32 %v661, 0.0
  %v680 = vpack.c.bf16 %v665, %v664
  %v681 = vpack.c.bf16 %v667, %v666
  %v682 = vpack.c.bf16 %v669, %v668
  %v683 = vpack.c.bf16 %v671, %v670
  %v684 = vpack.c.bf16 %v673, %v672
  %v685 = vpack.c.bf16 %v675, %v674
  %v686 = vpack.c.bf16 %v677, %v676
  %v687 = vpack.c.bf16 %v679, %v678
  %v696 = vunpack.c.l.b16 %v680
  %v697 = vunpack.c.h.b16 %v680
  %v698 = vunpack.c.l.b16 %v681
  %v699 = vunpack.c.h.b16 %v681
  %v700 = vunpack.c.l.b16 %v682
  %v701 = vunpack.c.h.b16 %v682
  %v702 = vunpack.c.l.b16 %v683
  %v703 = vunpack.c.h.b16 %v683
  %v704 = vunpack.c.l.b16 %v684
  %v705 = vunpack.c.h.b16 %v684
  %v706 = vunpack.c.l.b16 %v685
  %v707 = vunpack.c.h.b16 %v685
  %v708 = vunpack.c.l.b16 %v686
  %v709 = vunpack.c.h.b16 %v686
  %v710 = vunpack.c.l.b16 %v687
  %v711 = vunpack.c.h.b16 %v687
  %v712 = vpack.c.b16 %v696, %v696
  %v713 = vpack.c.b16 %v697, %v697
  %v714 = vpack.c.b16 %v698, %v698
  %v715 = vpack.c.b16 %v699, %v699
  %v716 = vpack.c.b16 %v700, %v700
  %v717 = vpack.c.b16 %v701, %v701
  %v718 = vpack.c.b16 %v702, %v702
  %v719 = vpack.c.b16 %v703, %v703
  %v720 = vpack.c.b16 %v704, %v704
  %v721 = vpack.c.b16 %v705, %v705
  %v722 = vpack.c.b16 %v706, %v706
  %v723 = vpack.c.b16 %v707, %v707
  %v724 = vpack.c.b16 %v708, %v708
  %v725 = vpack.c.b16 %v709, %v709
  %v726 = vpack.c.b16 %v710, %v710
  %v727 = vpack.c.b16 %v711, %v711
  %744 = vst [vmem:[%s3] sm:$0xf] %v712
  %745 = vst [vmem:[%s3 + $0x4] sm:$0xf] %v713
  %746 = vst [vmem:[%s3 + $0x8] sm:$0xf] %v714
  %747 = vst [vmem:[%s3 + $0xc] sm:$0xf] %v715
  %748 = vst [vmem:[%s3 + $0x10] sm:$0xf] %v716
  %749 = vst [vmem:[%s3 + $0x14] sm:$0xf] %v717
  %750 = vst [vmem:[%s3 + $0x18] sm:$0xf] %v718
  %751 = vst [vmem:[%s3 + $0x1c] sm:$0xf] %v719
  %752 = vst [vmem:[%s3 + $0x20] sm:$0xf] %v720
  %753 = vst [vmem:[%s3 + $0x24] sm:$0xf] %v721
  %754 = vst [vmem:[%s3 + $0x28] sm:$0xf] %v722
  %755 = vst [vmem:[%s3 + $0x2c] sm:$0xf] %v723
  %756 = vst [vmem:[%s3 + $0x30] sm:$0xf] %v724
  %757 = vst [vmem:[%s3 + $0x34] sm:$0xf] %v725
  %758 = vst [vmem:[%s3 + $0x38] sm:$0xf] %v726
  %759 = vst [vmem:[%s3 + $0x3c] sm:$0xf] %v727
  // Predicated region
  $region14: #{enc_svhn_forward.4} parent=0 // pred_check
    _
  $region15: #{enc_svhn_forward.4} parent=0 // pred_check_branch
    %761 = sbr.rel (0) target = $region17
  $region16: #{enc_svhn_forward.4} parent=0 // pred_region
    _
  $region17: #{enc_svhn_forward.4} parent=0 // pred_fallthru
    _
  // Predicated region
  $region18: #{enc_svhn_forward.4} parent=0 // pred_check
    _
  $region19: #{enc_svhn_forward.4} parent=0 // pred_check_branch
    %763 = sbr.rel (0) target = $region21
  $region20: #{enc_svhn_forward.4} parent=0 // pred_region
    _
  $region21: #{enc_svhn_forward.4} parent=0 // pred_fallthru
    _

// kernel: enc_svhn_forward.5
$region0: #{enc_svhn_forward.5}
  #allocation0 [shape = 'u32[]', space=smem, size = 0x4, offset = 0x4, fixed_abs, tag = 'smem constant byte address 0x4 - core index']
  #allocation1 [shape = 'u32[144,128]{1,0:T(1,128)}', space=vmem, size = 0x12000, scoped, tag = 'internal scratch']
  %s0 = inlined_call_operand.vmem [shape: bf16[2,16,1024], index: 0, kind: input, shape index: {}]
  %s1 = inlined_call_operand.vmem [shape: bf16[1024,128], index: 1, kind: input, shape index: {}]
  %s2 = inlined_call_operand.vmem [shape: f32[1,128], index: 2, kind: input, shape index: {}]
  %s3 = inlined_call_operand.vmem [shape: bf16[16,128,128], index: 3, kind: input, shape index: {}]
  %s4 = inlined_call_operand.vmem [shape: f32[1,128], index: 4, kind: input, shape index: {}]
  %s5 = inlined_call_operand.vmem [shape: bf16[128,256], index: 5, kind: input, shape index: {}]
  %s6 = inlined_call_operand.vmem [shape: f32[1,256], index: 6, kind: input, shape index: {}]
  %s7 = inlined_call_operand.hbm [shape: f32[2,128], index: 7, kind: output, shape index: {0}]
  %s8 = inlined_call_operand.hbm [shape: f32[2,128], index: 8, kind: output, shape index: {1}]
  %9 = xla_tuple %s7, %s8
  %s10 = sld [smem:[#allocation0]]
  $region46: #{enc_svhn_forward.5} parent=0
    _
  %s12 = ssub.s32 1, %s10
  %s13 = scalar_select 0, %s12, %s10
  $region1: #{enc_svhn_forward.5} parent=0
    #allocation2 [shape = 'u8[1024]{0}', space=vmem, size = 0x400, scoped, tag = 'output window, operand 0, single buffered']
    #allocation3 [shape = 's32[1]{0}', space=sflag, size = 0x4, scoped, tag = 'scoped memory for enc_svhn_forward.5']
    #allocation4 [shape = 'u8[1024]{0}', space=vmem, size = 0x400, scoped, tag = 'output window, operand 1, single buffered']
    #allocation5 [shape = 's32[1]{0}', space=sflag, size = 0x4, scoped, tag = 'scoped memory for enc_svhn_forward.5']
    %14 = vsyncpa [#allocation3], 0
    %15 = vsyncpa [#allocation5], 0
    // Predicated region
    $region2: #{enc_svhn_forward.5} parent=1 // pred_check
      _
    $region3: #{enc_svhn_forward.5} parent=1 // pred_check_branch
      %17 = sbr.rel (0) target = $region5
    $region4: #{enc_svhn_forward.5} parent=1 // pred_region
      _
    $region5: #{enc_svhn_forward.5} parent=1 // pred_fallthru
      _
    // Predicated region
    $region6: #{enc_svhn_forward.5} parent=1 // pred_check
      _
    $region7: #{enc_svhn_forward.5} parent=1 // pred_check_branch
      %19 = sbr.rel (0) target = $region9
    $region8: #{enc_svhn_forward.5} parent=1 // pred_region
      _
    $region9: #{enc_svhn_forward.5} parent=1 // pred_fallthru
      _
    // Predicated region
    $region10: #{enc_svhn_forward.5} parent=1 // pred_check
      _
    $region11: #{enc_svhn_forward.5} parent=1 // pred_check_branch
      %21 = sbr.rel (0) target = $region13
    $region12: #{enc_svhn_forward.5} parent=1 // pred_region
      _
    $region13: #{enc_svhn_forward.5} parent=1 // pred_fallthru
      _
    // Predicated region
    $region14: #{enc_svhn_forward.5} parent=1 // pred_check
      _
    $region15: #{enc_svhn_forward.5} parent=1 // pred_check_branch
      %23 = sbr.rel (0) target = $region17
    $region16: #{enc_svhn_forward.5} parent=1 // pred_region
      _
    $region17: #{enc_svhn_forward.5} parent=1 // pred_fallthru
      _
    // Predicated region
    $region18: #{enc_svhn_forward.5} parent=1 // pred_check
      _
    $region19: #{enc_svhn_forward.5} parent=1 // pred_check_branch
      %25 = sbr.rel (0) target = $region21
    $region20: #{enc_svhn_forward.5} parent=1 // pred_region
      _
    $region21: #{enc_svhn_forward.5} parent=1 // pred_fallthru
      _
    // Predicated region
    $region22: #{enc_svhn_forward.5} parent=1 // pred_check
      _
    $region23: #{enc_svhn_forward.5} parent=1 // pred_check_branch
      %27 = sbr.rel (0) target = $region25
    $region24: #{enc_svhn_forward.5} parent=1 // pred_region
      _
    $region25: #{enc_svhn_forward.5} parent=1 // pred_fallthru
      _
    // Predicated region
    $region26: #{enc_svhn_forward.5} parent=1 // pred_check
      _
    $region27: #{enc_svhn_forward.5} parent=1 // pred_check_branch
      %29 = sbr.rel (0) target = $region29
    $region28: #{enc_svhn_forward.5} parent=1 // pred_region
      _
    $region29: #{enc_svhn_forward.5} parent=1 // pred_fallthru
      _
    %v31 = vld [vmem:[%s0] sm:$0xff]
    %v32 = vld [vmem:[%s0 + $0x8] sm:$0xff]
    %v33 = vld [vmem:[%s0 + $0x10] sm:$0xff]
    %v34 = vld [vmem:[%s0 + $0x18] sm:$0xff]
    %v35 = vld [vmem:[%s0 + $0x20] sm:$0xff]
    %v36 = vld [vmem:[%s0 + $0x28] sm:$0xff]
    %v37 = vld [vmem:[%s0 + $0x30] sm:$0xff]
    %v38 = vld [vmem:[%s0 + $0x38] sm:$0xff]
    %v39 = vld [vmem:[%s0 + $0x40] sm:$0xff]
    %v40 = vld [vmem:[%s0 + $0x48] sm:$0xff]
    %v41 = vld [vmem:[%s0 + $0x50] sm:$0xff]
    %v42 = vld [vmem:[%s0 + $0x58] sm:$0xff]
    %v43 = vld [vmem:[%s0 + $0x60] sm:$0xff]
    %v44 = vld [vmem:[%s0 + $0x68] sm:$0xff]
    %v45 = vld [vmem:[%s0 + $0x70] sm:$0xff]
    %v46 = vld [vmem:[%s0 + $0x78] sm:$0xff]
    %v47 = vld [vmem:[%s1] sm:$0xf]
    %v48 = vld [vmem:[%s1 + $0x4] sm:$0xf]
    %v49 = vld [vmem:[%s1 + $0x8] sm:$0xf]
    %v50 = vld [vmem:[%s1 + $0xc] sm:$0xf]
    %v51 = vld [vmem:[%s1 + $0x10] sm:$0xf]
    %v52 = vld [vmem:[%s1 + $0x14] sm:$0xf]
    %v53 = vld [vmem:[%s1 + $0x18] sm:$0xf]
    %v54 = vld [vmem:[%s1 + $0x1c] sm:$0xf]
    %v55 = vld [vmem:[%s1 + $0x20] sm:$0xf]
    %v56 = vld [vmem:[%s1 + $0x24] sm:$0xf]
    %v57 = vld [vmem:[%s1 + $0x28] sm:$0xf]
    %v58 = vld [vmem:[%s1 + $0x2c] sm:$0xf]
    %v59 = vld [vmem:[%s1 + $0x30] sm:$0xf]
    %v60 = vld [vmem:[%s1 + $0x34] sm:$0xf]
    %v61 = vld [vmem:[%s1 + $0x38] sm:$0xf]
    %v62 = vld [vmem:[%s1 + $0x3c] sm:$0xf]
    %v63 = vld [vmem:[%s1 + $0x40] sm:$0xf]
    %v64 = vld [vmem:[%s1 + $0x44] sm:$0xf]
    %v65 = vld [vmem:[%s1 + $0x48] sm:$0xf]
    %v66 = vld [vmem:[%s1 + $0x4c] sm:$0xf]
    %v67 = vld [vmem:[%s1 + $0x50] sm:$0xf]
    %v68 = vld [vmem:[%s1 + $0x54] sm:$0xf]
    %v69 = vld [vmem:[%s1 + $0x58] sm:$0xf]
    %v70 = vld [vmem:[%s1 + $0x5c] sm:$0xf]
    %v71 = vld [vmem:[%s1 + $0x60] sm:$0xf]
    %v72 = vld [vmem:[%s1 + $0x64] sm:$0xf]
    %v73 = vld [vmem:[%s1 + $0x68] sm:$0xf]
    %v74 = vld [vmem:[%s1 + $0x6c] sm:$0xf]
    %v75 = vld [vmem:[%s1 + $0x70] sm:$0xf]
    %v76 = vld [vmem:[%s1 + $0x74] sm:$0xf]
    %v77 = vld [vmem:[%s1 + $0x78] sm:$0xf]
    %v78 = vld [vmem:[%s1 + $0x7c] sm:$0xf]
    %v79 = vld [vmem:[%s1 + $0x80] sm:$0xf]
    %v80 = vld [vmem:[%s1 + $0x84] sm:$0xf]
    %v81 = vld [vmem:[%s1 + $0x88] sm:$0xf]
    %v82 = vld [vmem:[%s1 + $0x8c] sm:$0xf]
    %v83 = vld [vmem:[%s1 + $0x90] sm:$0xf]
    %v84 = vld [vmem:[%s1 + $0x94] sm:$0xf]
    %v85 = vld [vmem:[%s1 + $0x98] sm:$0xf]
    %v86 = vld [vmem:[%s1 + $0x9c] sm:$0xf]
    %v87 = vld [vmem:[%s1 + $0xa0] sm:$0xf]
    %v88 = vld [vmem:[%s1 + $0xa4] sm:$0xf]
    %v89 = vld [vmem:[%s1 + $0xa8] sm:$0xf]
    %v90 = vld [vmem:[%s1 + $0xac] sm:$0xf]
    %v91 = vld [vmem:[%s1 + $0xb0] sm:$0xf]
    %v92 = vld [vmem:[%s1 + $0xb4] sm:$0xf]
    %v93 = vld [vmem:[%s1 + $0xb8] sm:$0xf]
    %v94 = vld [vmem:[%s1 + $0xbc] sm:$0xf]
    %v95 = vld [vmem:[%s1 + $0xc0] sm:$0xf]
    %v96 = vld [vmem:[%s1 + $0xc4] sm:$0xf]
    %v97 = vld [vmem:[%s1 + $0xc8] sm:$0xf]
    %v98 = vld [vmem:[%s1 + $0xcc] sm:$0xf]
    %v99 = vld [vmem:[%s1 + $0xd0] sm:$0xf]
    %v100 = vld [vmem:[%s1 + $0xd4] sm:$0xf]
    %v101 = vld [vmem:[%s1 + $0xd8] sm:$0xf]
    %v102 = vld [vmem:[%s1 + $0xdc] sm:$0xf]
    %v103 = vld [vmem:[%s1 + $0xe0] sm:$0xf]
    %v104 = vld [vmem:[%s1 + $0xe4] sm:$0xf]
    %v105 = vld [vmem:[%s1 + $0xe8] sm:$0xf]
    %v106 = vld [vmem:[%s1 + $0xec] sm:$0xf]
    %v107 = vld [vmem:[%s1 + $0xf0] sm:$0xf]
    %v108 = vld [vmem:[%s1 + $0xf4] sm:$0xf]
    %v109 = vld [vmem:[%s1 + $0xf8] sm:$0xf]
    %v110 = vld [vmem:[%s1 + $0xfc] sm:$0xf]
    %v111 = vld [vmem:[%s1 + $0x100] sm:$0xf]
    %v112 = vld [vmem:[%s1 + $0x104] sm:$0xf]
    %v113 = vld [vmem:[%s1 + $0x108] sm:$0xf]
    %v114 = vld [vmem:[%s1 + $0x10c] sm:$0xf]
    %v115 = vld [vmem:[%s1 + $0x110] sm:$0xf]
    %v116 = vld [vmem:[%s1 + $0x114] sm:$0xf]
    %v117 = vld [vmem:[%s1 + $0x118] sm:$0xf]
    %v118 = vld [vmem:[%s1 + $0x11c] sm:$0xf]
    %v119 = vld [vmem:[%s1 + $0x120] sm:$0xf]
    %v120 = vld [vmem:[%s1 + $0x124] sm:$0xf]
    %v121 = vld [vmem:[%s1 + $0x128] sm:$0xf]
    %v122 = vld [vmem:[%s1 + $0x12c] sm:$0xf]
    %v123 = vld [vmem:[%s1 + $0x130] sm:$0xf]
    %v124 = vld [vmem:[%s1 + $0x134] sm:$0xf]
    %v125 = vld [vmem:[%s1 + $0x138] sm:$0xf]
    %v126 = vld [vmem:[%s1 + $0x13c] sm:$0xf]
    %v127 = vld [vmem:[%s1 + $0x140] sm:$0xf]
    %v128 = vld [vmem:[%s1 + $0x144] sm:$0xf]
    %v129 = vld [vmem:[%s1 + $0x148] sm:$0xf]
    %v130 = vld [vmem:[%s1 + $0x14c] sm:$0xf]
    %v131 = vld [vmem:[%s1 + $0x150] sm:$0xf]
    %v132 = vld [vmem:[%s1 + $0x154] sm:$0xf]
    %v133 = vld [vmem:[%s1 + $0x158] sm:$0xf]
    %v134 = vld [vmem:[%s1 + $0x15c] sm:$0xf]
    %v135 = vld [vmem:[%s1 + $0x160] sm:$0xf]
    %v136 = vld [vmem:[%s1 + $0x164] sm:$0xf]
    %v137 = vld [vmem:[%s1 + $0x168] sm:$0xf]
    %v138 = vld [vmem:[%s1 + $0x16c] sm:$0xf]
    %v139 = vld [vmem:[%s1 + $0x170] sm:$0xf]
    %v140 = vld [vmem:[%s1 + $0x174] sm:$0xf]
    %v141 = vld [vmem:[%s1 + $0x178] sm:$0xf]
    %v142 = vld [vmem:[%s1 + $0x17c] sm:$0xf]
    %v143 = vld [vmem:[%s1 + $0x180] sm:$0xf]
    %v144 = vld [vmem:[%s1 + $0x184] sm:$0xf]
    %v145 = vld [vmem:[%s1 + $0x188] sm:$0xf]
    %v146 = vld [vmem:[%s1 + $0x18c] sm:$0xf]
    %v147 = vld [vmem:[%s1 + $0x190] sm:$0xf]
    %v148 = vld [vmem:[%s1 + $0x194] sm:$0xf]
    %v149 = vld [vmem:[%s1 + $0x198] sm:$0xf]
    %v150 = vld [vmem:[%s1 + $0x19c] sm:$0xf]
    %v151 = vld [vmem:[%s1 + $0x1a0] sm:$0xf]
    %v152 = vld [vmem:[%s1 + $0x1a4] sm:$0xf]
    %v153 = vld [vmem:[%s1 + $0x1a8] sm:$0xf]
    %v154 = vld [vmem:[%s1 + $0x1ac] sm:$0xf]
    %v155 = vld [vmem:[%s1 + $0x1b0] sm:$0xf]
    %v156 = vld [vmem:[%s1 + $0x1b4] sm:$0xf]
    %v157 = vld [vmem:[%s1 + $0x1b8] sm:$0xf]
    %v158 = vld [vmem:[%s1 + $0x1bc] sm:$0xf]
    %v159 = vld [vmem:[%s1 + $0x1c0] sm:$0xf]
    %v160 = vld [vmem:[%s1 + $0x1c4] sm:$0xf]
    %v161 = vld [vmem:[%s1 + $0x1c8] sm:$0xf]
    %v162 = vld [vmem:[%s1 + $0x1cc] sm:$0xf]
    %v163 = vld [vmem:[%s1 + $0x1d0] sm:$0xf]
    %v164 = vld [vmem:[%s1 + $0x1d4] sm:$0xf]
    %v165 = vld [vmem:[%s1 + $0x1d8] sm:$0xf]
    %v166 = vld [vmem:[%s1 + $0x1dc] sm:$0xf]
    %v167 = vld [vmem:[%s1 + $0x1e0] sm:$0xf]
    %v168 = vld [vmem:[%s1 + $0x1e4] sm:$0xf]
    %v169 = vld [vmem:[%s1 + $0x1e8] sm:$0xf]
    %v170 = vld [vmem:[%s1 + $0x1ec] sm:$0xf]
    %v171 = vld [vmem:[%s1 + $0x1f0] sm:$0xf]
    %v172 = vld [vmem:[%s1 + $0x1f4] sm:$0xf]
    %v173 = vld [vmem:[%s1 + $0x1f8] sm:$0xf]
    %v174 = vld [vmem:[%s1 + $0x1fc] sm:$0xf]
    %v175 = vld [vmem:[%s2] sm:$0x1]
    %v177 = vlaneseq
    %v178 = vshrl.u32 %v177, 7
    %v179 = vsub.s32 0, %v178
    %v180 = vrot.slane %v175, %v179
    %v198 = vunpack.c.l.b16 %v31
    %v199 = vunpack.c.h.b16 %v31
    %v200 = vunpack.c.l.b16 %v32
    %v201 = vunpack.c.h.b16 %v32
    %v202 = vunpack.c.l.b16 %v33
    %v203 = vunpack.c.h.b16 %v33
    %v204 = vunpack.c.l.b16 %v34
    %v205 = vunpack.c.h.b16 %v34
    %v206 = vunpack.c.l.b16 %v35
    %v207 = vunpack.c.h.b16 %v35
    %v208 = vunpack.c.l.b16 %v36
    %v209 = vunpack.c.h.b16 %v36
    %v210 = vunpack.c.l.b16 %v37
    %v211 = vunpack.c.h.b16 %v37
    %v212 = vunpack.c.l.b16 %v38
    %v213 = vunpack.c.h.b16 %v38
    %v214 = vunpack.c.l.b16 %v39
    %v215 = vunpack.c.h.b16 %v39
    %v216 = vunpack.c.l.b16 %v40
    %v217 = vunpack.c.h.b16 %v40
    %v218 = vunpack.c.l.b16 %v41
    %v219 = vunpack.c.h.b16 %v41
    %v220 = vunpack.c.l.b16 %v42
    %v221 = vunpack.c.h.b16 %v42
    %v222 = vunpack.c.l.b16 %v43
    %v223 = vunpack.c.h.b16 %v43
    %v224 = vunpack.c.l.b16 %v44
    %v225 = vunpack.c.h.b16 %v44
    %v226 = vunpack.c.l.b16 %v45
    %v227 = vunpack.c.h.b16 %v45
    %v228 = vunpack.c.l.b16 %v46
    %v229 = vunpack.c.h.b16 %v46
    %v230 = vpack.c.b16 %v206, %v198
    %v231 = vpack.c.b16 %v207, %v199
    %v232 = vpack.c.b16 %v208, %v200
    %v233 = vpack.c.b16 %v209, %v201
    %v234 = vpack.c.b16 %v210, %v202
    %v235 = vpack.c.b16 %v211, %v203
    %v236 = vpack.c.b16 %v212, %v204
    %v237 = vpack.c.b16 %v213, %v205
    %v238 = vpack.c.b16 %v222, %v214
    %v239 = vpack.c.b16 %v223, %v215
    %v240 = vpack.c.b16 %v224, %v216
    %v241 = vpack.c.b16 %v225, %v217
    %v242 = vpack.c.b16 %v226, %v218
    %v243 = vpack.c.b16 %v227, %v219
    %v244 = vpack.c.b16 %v228, %v220
    %v245 = vpack.c.b16 %v229, %v221
    %v390 = vunpack.c.l.b16 %v47
    %v391 = vunpack.c.l.b16 %v48
    %v392 = vunpack.c.l.b16 %v49
    %v393 = vunpack.c.l.b16 %v50
    %v394 = vunpack.c.l.b16 %v51
    %v395 = vunpack.c.l.b16 %v52
    %v396 = vunpack.c.l.b16 %v53
    %v397 = vunpack.c.l.b16 %v54
    %v398 = vunpack.c.l.b16 %v55
    %v399 = vunpack.c.l.b16 %v56
    %v400 = vunpack.c.l.b16 %v57
    %v401 = vunpack.c.l.b16 %v58
    %v402 = vunpack.c.l.b16 %v59
    %v403 = vunpack.c.l.b16 %v60
    %v404 = vunpack.c.l.b16 %v61
    %v405 = vunpack.c.l.b16 %v62
    %v406 = vunpack.c.l.b16 %v63
    %v407 = vunpack.c.l.b16 %v64
    %v408 = vunpack.c.l.b16 %v65
    %v409 = vunpack.c.l.b16 %v66
    %v410 = vunpack.c.l.b16 %v67
    %v411 = vunpack.c.l.b16 %v68
    %v412 = vunpack.c.l.b16 %v69
    %v413 = vunpack.c.l.b16 %v70
    %v414 = vunpack.c.l.b16 %v71
    %v415 = vunpack.c.l.b16 %v72
    %v416 = vunpack.c.l.b16 %v73
    %v417 = vunpack.c.l.b16 %v74
    %v418 = vunpack.c.l.b16 %v75
    %v419 = vunpack.c.l.b16 %v76
    %v420 = vunpack.c.l.b16 %v77
    %v421 = vunpack.c.l.b16 %v78
    %v422 = vunpack.c.l.b16 %v79
    %v423 = vunpack.c.l.b16 %v80
    %v424 = vunpack.c.l.b16 %v81
    %v425 = vunpack.c.l.b16 %v82
    %v426 = vunpack.c.l.b16 %v83
    %v427 = vunpack.c.l.b16 %v84
    %v428 = vunpack.c.l.b16 %v85
    %v429 = vunpack.c.l.b16 %v86
    %v430 = vunpack.c.l.b16 %v87
    %v431 = vunpack.c.l.b16 %v88
    %v432 = vunpack.c.l.b16 %v89
    %v433 = vunpack.c.l.b16 %v90
    %v434 = vunpack.c.l.b16 %v91
    %v435 = vunpack.c.l.b16 %v92
    %v436 = vunpack.c.l.b16 %v93
    %v437 = vunpack.c.l.b16 %v94
    %v438 = vunpack.c.l.b16 %v95
    %v439 = vunpack.c.l.b16 %v96
    %v440 = vunpack.c.l.b16 %v97
    %v441 = vunpack.c.l.b16 %v98
    %v442 = vunpack.c.l.b16 %v99
    %v443 = vunpack.c.l.b16 %v100
    %v444 = vunpack.c.l.b16 %v101
    %v445 = vunpack.c.l.b16 %v102
    %v446 = vunpack.c.l.b16 %v103
    %v447 = vunpack.c.l.b16 %v104
    %v448 = vunpack.c.l.b16 %v105
    %v449 = vunpack.c.l.b16 %v106
    %v450 = vunpack.c.l.b16 %v107
    %v451 = vunpack.c.l.b16 %v108
    %v452 = vunpack.c.l.b16 %v109
    %v453 = vunpack.c.l.b16 %v110
    %v454 = vunpack.c.l.b16 %v111
    %v455 = vunpack.c.l.b16 %v112
    %v456 = vunpack.c.l.b16 %v113
    %v457 = vunpack.c.l.b16 %v114
    %v458 = vunpack.c.l.b16 %v115
    %v459 = vunpack.c.l.b16 %v116
    %v460 = vunpack.c.l.b16 %v117
    %v461 = vunpack.c.l.b16 %v118
    %v462 = vunpack.c.l.b16 %v119
    %v463 = vunpack.c.l.b16 %v120
    %v464 = vunpack.c.l.b16 %v121
    %v465 = vunpack.c.l.b16 %v122
    %v466 = vunpack.c.l.b16 %v123
    %v467 = vunpack.c.l.b16 %v124
    %v468 = vunpack.c.l.b16 %v125
    %v469 = vunpack.c.l.b16 %v126
    %v470 = vunpack.c.l.b16 %v127
    %v471 = vunpack.c.l.b16 %v128
    %v472 = vunpack.c.l.b16 %v129
    %v473 = vunpack.c.l.b16 %v130
    %v474 = vunpack.c.l.b16 %v131
    %v475 = vunpack.c.l.b16 %v132
    %v476 = vunpack.c.l.b16 %v133
    %v477 = vunpack.c.l.b16 %v134
    %v478 = vunpack.c.l.b16 %v135
    %v479 = vunpack.c.l.b16 %v136
    %v480 = vunpack.c.l.b16 %v137
    %v481 = vunpack.c.l.b16 %v138
    %v482 = vunpack.c.l.b16 %v139
    %v483 = vunpack.c.l.b16 %v140
    %v484 = vunpack.c.l.b16 %v141
    %v485 = vunpack.c.l.b16 %v142
    %v486 = vunpack.c.l.b16 %v143
    %v487 = vunpack.c.l.b16 %v144
    %v488 = vunpack.c.l.b16 %v145
    %v489 = vunpack.c.l.b16 %v146
    %v490 = vunpack.c.l.b16 %v147
    %v491 = vunpack.c.l.b16 %v148
    %v492 = vunpack.c.l.b16 %v149
    %v493 = vunpack.c.l.b16 %v150
    %v494 = vunpack.c.l.b16 %v151
    %v495 = vunpack.c.l.b16 %v152
    %v496 = vunpack.c.l.b16 %v153
    %v497 = vunpack.c.l.b16 %v154
    %v498 = vunpack.c.l.b16 %v155
    %v499 = vunpack.c.l.b16 %v156
    %v500 = vunpack.c.l.b16 %v157
    %v501 = vunpack.c.l.b16 %v158
    %v502 = vunpack.c.l.b16 %v159
    %v503 = vunpack.c.l.b16 %v160
    %v504 = vunpack.c.l.b16 %v161
    %v505 = vunpack.c.l.b16 %v162
    %v506 = vunpack.c.l.b16 %v163
    %v507 = vunpack.c.l.b16 %v164
    %v508 = vunpack.c.l.b16 %v165
    %v509 = vunpack.c.l.b16 %v166
    %v510 = vunpack.c.l.b16 %v167
    %v511 = vunpack.c.l.b16 %v168
    %v512 = vunpack.c.l.b16 %v169
    %v513 = vunpack.c.l.b16 %v170
    %v514 = vunpack.c.l.b16 %v171
    %v515 = vunpack.c.l.b16 %v172
    %v516 = vunpack.c.l.b16 %v173
    %v517 = vunpack.c.l.b16 %v174
    %v518 = vpack.c.b16 %v391, %v390
    %v519 = vpack.c.b16 %v393, %v392
    %v520 = vpack.c.b16 %v395, %v394
    %v521 = vpack.c.b16 %v397, %v396
    %v522 = vpack.c.b16 %v399, %v398
    %v523 = vpack.c.b16 %v401, %v400
    %v524 = vpack.c.b16 %v403, %v402
    %v525 = vpack.c.b16 %v405, %v404
    %v526 = vpack.c.b16 %v407, %v406
    %v527 = vpack.c.b16 %v409, %v408
    %v528 = vpack.c.b16 %v411, %v410
    %v529 = vpack.c.b16 %v413, %v412
    %v530 = vpack.c.b16 %v415, %v414
    %v531 = vpack.c.b16 %v417, %v416
    %v532 = vpack.c.b16 %v419, %v418
    %v533 = vpack.c.b16 %v421, %v420
    %v534 = vpack.c.b16 %v423, %v422
    %v535 = vpack.c.b16 %v425, %v424
    %v536 = vpack.c.b16 %v427, %v426
    %v537 = vpack.c.b16 %v429, %v428
    %v538 = vpack.c.b16 %v431, %v430
    %v539 = vpack.c.b16 %v433, %v432
    %v540 = vpack.c.b16 %v435, %v434
    %v541 = vpack.c.b16 %v437, %v436
    %v542 = vpack.c.b16 %v439, %v438
    %v543 = vpack.c.b16 %v441, %v440
    %v544 = vpack.c.b16 %v443, %v442
    %v545 = vpack.c.b16 %v445, %v444
    %v546 = vpack.c.b16 %v447, %v446
    %v547 = vpack.c.b16 %v449, %v448
    %v548 = vpack.c.b16 %v451, %v450
    %v549 = vpack.c.b16 %v453, %v452
    %v550 = vpack.c.b16 %v455, %v454
    %v551 = vpack.c.b16 %v457, %v456
    %v552 = vpack.c.b16 %v459, %v458
    %v553 = vpack.c.b16 %v461, %v460
    %v554 = vpack.c.b16 %v463, %v462
    %v555 = vpack.c.b16 %v465, %v464
    %v556 = vpack.c.b16 %v467, %v466
    %v557 = vpack.c.b16 %v469, %v468
    %v558 = vpack.c.b16 %v471, %v470
    %v559 = vpack.c.b16 %v473, %v472
    %v560 = vpack.c.b16 %v475, %v474
    %v561 = vpack.c.b16 %v477, %v476
    %v562 = vpack.c.b16 %v479, %v478
    %v563 = vpack.c.b16 %v481, %v480
    %v564 = vpack.c.b16 %v483, %v482
    %v565 = vpack.c.b16 %v485, %v484
    %v566 = vpack.c.b16 %v487, %v486
    %v567 = vpack.c.b16 %v489, %v488
    %v568 = vpack.c.b16 %v491, %v490
    %v569 = vpack.c.b16 %v493, %v492
    %v570 = vpack.c.b16 %v495, %v494
    %v571 = vpack.c.b16 %v497, %v496
    %v572 = vpack.c.b16 %v499, %v498
    %v573 = vpack.c.b16 %v501, %v500
    %v574 = vpack.c.b16 %v503, %v502
    %v575 = vpack.c.b16 %v505, %v504
    %v576 = vpack.c.b16 %v507, %v506
    %v577 = vpack.c.b16 %v509, %v508
    %v578 = vpack.c.b16 %v511, %v510
    %v579 = vpack.c.b16 %v513, %v512
    %v580 = vpack.c.b16 %v515, %v514
    %v581 = vpack.c.b16 %v517, %v516
    %646 = vmatprep.subr.bf16.mxu0 0
    %647 = vmatpush1.bf16.msra.mxu0 %v525
    %648 = vmatprep.subr.bf16.mxu0 0
    %649 = vmatpush1.bf16.msra.mxu0 %v524
    %650 = vmatprep.subr.bf16.mxu0 0
    %651 = vmatpush1.bf16.msra.mxu0 %v523
    %652 = vmatprep.subr.bf16.mxu0 0
    %653 = vmatpush1.bf16.msra.mxu0 %v522
    %654 = vmatprep.subr.bf16.mxu0 0
    %655 = vmatpush1.bf16.msra.mxu0 %v521
    %656 = vmatprep.subr.bf16.mxu0 0
    %657 = vmatpush1.bf16.msra.mxu0 %v520
    %658 = vmatprep.subr.bf16.mxu0 0
    %659 = vmatpush1.bf16.msra.mxu0 %v519
    %660 = vmatprep.subr.bf16.mxu0 0
    %661 = vmatpush1.bf16.msra.mxu0 %v518
    %662 = vmatprep.subr.bf16.mxu0 0
    %663 = vmatpush2.bf16.msra.mxu0 %v533
    %664 = vmatprep.subr.bf16.mxu0 0
    %665 = vmatpush2.bf16.msra.mxu0 %v532
    %666 = vmatprep.subr.bf16.mxu0 0
    %667 = vmatpush2.bf16.msra.mxu0 %v531
    %668 = vmatprep.subr.bf16.mxu0 0
    %669 = vmatpush2.bf16.msra.mxu0 %v530
    %670 = vmatprep.subr.bf16.mxu0 0
    %671 = vmatpush2.bf16.msra.mxu0 %v529
    %672 = vmatprep.subr.bf16.mxu0 0
    %673 = vmatpush2.bf16.msra.mxu0 %v528
    %674 = vmatprep.subr.bf16.mxu0 0
    %675 = vmatpush2.bf16.msra.mxu0 %v527
    %676 = vmatprep.subr.bf16.mxu0 0
    %677 = vmatpush2.bf16.msra.mxu0 %v526
    %678 = vmatprep.mubr.bf16.mxu0 %v231
    %679 = vmatmul.mubr.bf16.gmra.mxu0 %v230
    %v680 = vpop.f32.mrf.mxu0
    %v681 = vadd.f32 %v180, %v680
    %v682 = vpop.f32.mrf.mxu0
    %v683 = vpop.f32.mrf.mxu0
    %v684 = vadd.f32 %v180, %v683
    %v685 = vpop.f32.mrf.mxu0
    %686 = vmatprep.mubr.bf16.mxu0 %v239
    %687 = vmatmul.mubr.bf16.gmra.mxu0 %v238
    %v688 = vpop.f32.mrf.mxu0
    %v689 = vadd.f32 %v180, %v688
    %v690 = vpop.f32.mrf.mxu0
    %v691 = vpop.f32.mrf.mxu0
    %v692 = vadd.f32 %v180, %v691
    %v693 = vpop.f32.mrf.mxu0
    %694 = vdwg.mxu0
    %695 = vmatprep.subr.bf16.mxu0 0
    %696 = vmatpush1.bf16.msra.mxu0 %v541
    %697 = vmatprep.subr.bf16.mxu0 0
    %698 = vmatpush1.bf16.msra.mxu0 %v540
    %699 = vmatprep.subr.bf16.mxu0 0
    %700 = vmatpush1.bf16.msra.mxu0 %v539
    %701 = vmatprep.subr.bf16.mxu0 0
    %702 = vmatpush1.bf16.msra.mxu0 %v538
    %703 = vmatprep.subr.bf16.mxu0 0
    %704 = vmatpush1.bf16.msra.mxu0 %v537
    %705 = vmatprep.subr.bf16.mxu0 0
    %706 = vmatpush1.bf16.msra.mxu0 %v536
    %707 = vmatprep.subr.bf16.mxu0 0
    %708 = vmatpush1.bf16.msra.mxu0 %v535
    %709 = vmatprep.subr.bf16.mxu0 0
    %710 = vmatpush1.bf16.msra.mxu0 %v534
    %711 = vmatprep.subr.bf16.mxu0 0
    %712 = vmatpush2.bf16.msra.mxu0 %v549
    %713 = vmatprep.subr.bf16.mxu0 0
    %714 = vmatpush2.bf16.msra.mxu0 %v548
    %715 = vmatprep.subr.bf16.mxu0 0
    %716 = vmatpush2.bf16.msra.mxu0 %v547
    %717 = vmatprep.subr.bf16.mxu0 0
    %718 = vmatpush2.bf16.msra.mxu0 %v546
    %719 = vmatprep.subr.bf16.mxu0 0
    %720 = vmatpush2.bf16.msra.mxu0 %v545
    %721 = vmatprep.subr.bf16.mxu0 0
    %722 = vmatpush2.bf16.msra.mxu0 %v544
    %723 = vmatprep.subr.bf16.mxu0 0
    %724 = vmatpush2.bf16.msra.mxu0 %v543
    %725 = vmatprep.subr.bf16.mxu0 0
    %726 = vmatpush2.bf16.msra.mxu0 %v542
    %727 = vmatprep.mubr.bf16.mxu0 %v233
    %728 = vmatmul.mubr.bf16.gmra.mxu0 %v232
    %v729 = vpop.f32.mrf.mxu0
    %v730 = vadd.f32 %v681, %v729
    %v731 = vpop.f32.mrf.mxu0
    %v732 = vpop.f32.mrf.mxu0
    %v733 = vadd.f32 %v684, %v732
    %v734 = vpop.f32.mrf.mxu0
    %735 = vmatprep.mubr.bf16.mxu0 %v241
    %736 = vmatmul.mubr.bf16.gmra.mxu0 %v240
    %v737 = vpop.f32.mrf.mxu0
    %v738 = vadd.f32 %v689, %v737
    %v739 = vpop.f32.mrf.mxu0
    %v740 = vpop.f32.mrf.mxu0
    %v741 = vadd.f32 %v692, %v740
    %v742 = vpop.f32.mrf.mxu0
    %743 = vdwg.mxu0
    %744 = vmatprep.subr.bf16.mxu0 0
    %745 = vmatpush1.bf16.msra.mxu0 %v557
    %746 = vmatprep.subr.bf16.mxu0 0
    %747 = vmatpush1.bf16.msra.mxu0 %v556
    %748 = vmatprep.subr.bf16.mxu0 0
    %749 = vmatpush1.bf16.msra.mxu0 %v555
    %750 = vmatprep.subr.bf16.mxu0 0
    %751 = vmatpush1.bf16.msra.mxu0 %v554
    %752 = vmatprep.subr.bf16.mxu0 0
    %753 = vmatpush1.bf16.msra.mxu0 %v553
    %754 = vmatprep.subr.bf16.mxu0 0
    %755 = vmatpush1.bf16.msra.mxu0 %v552
    %756 = vmatprep.subr.bf16.mxu0 0
    %757 = vmatpush1.bf16.msra.mxu0 %v551
    %758 = vmatprep.subr.bf16.mxu0 0
    %759 = vmatpush1.bf16.msra.mxu0 %v550
    %760 = vmatprep.subr.bf16.mxu0 0
    %761 = vmatpush2.bf16.msra.mxu0 %v565
    %762 = vmatprep.subr.bf16.mxu0 0
    %763 = vmatpush2.bf16.msra.mxu0 %v564
    %764 = vmatprep.subr.bf16.mxu0 0
    %765 = vmatpush2.bf16.msra.mxu0 %v563
    %766 = vmatprep.subr.bf16.mxu0 0
    %767 = vmatpush2.bf16.msra.mxu0 %v562
    %768 = vmatprep.subr.bf16.mxu0 0
    %769 = vmatpush2.bf16.msra.mxu0 %v561
    %770 = vmatprep.subr.bf16.mxu0 0
    %771 = vmatpush2.bf16.msra.mxu0 %v560
    %772 = vmatprep.subr.bf16.mxu0 0
    %773 = vmatpush2.bf16.msra.mxu0 %v559
    %774 = vmatprep.subr.bf16.mxu0 0
    %775 = vmatpush2.bf16.msra.mxu0 %v558
    %776 = vmatprep.mubr.bf16.mxu0 %v235
    %777 = vmatmul.mubr.bf16.gmra.mxu0 %v234
    %v778 = vpop.f32.mrf.mxu0
    %v779 = vadd.f32 %v730, %v778
    %v780 = vpop.f32.mrf.mxu0
    %v781 = vpop.f32.mrf.mxu0
    %v782 = vadd.f32 %v733, %v781
    %v783 = vpop.f32.mrf.mxu0
    %784 = vmatprep.mubr.bf16.mxu0 %v243
    %785 = vmatmul.mubr.bf16.gmra.mxu0 %v242
    %v786 = vpop.f32.mrf.mxu0
    %v787 = vadd.f32 %v738, %v786
    %v788 = vpop.f32.mrf.mxu0
    %v789 = vpop.f32.mrf.mxu0
    %v790 = vadd.f32 %v741, %v789
    %v791 = vpop.f32.mrf.mxu0
    %792 = vdwg.mxu0
    %793 = vmatprep.subr.bf16.mxu0 0
    %794 = vmatpush1.bf16.msra.mxu0 %v573
    %795 = vmatprep.subr.bf16.mxu0 0
    %796 = vmatpush1.bf16.msra.mxu0 %v572
    %797 = vmatprep.subr.bf16.mxu0 0
    %798 = vmatpush1.bf16.msra.mxu0 %v571
    %799 = vmatprep.subr.bf16.mxu0 0
    %800 = vmatpush1.bf16.msra.mxu0 %v570
    %801 = vmatprep.subr.bf16.mxu0 0
    %802 = vmatpush1.bf16.msra.mxu0 %v569
    %803 = vmatprep.subr.bf16.mxu0 0
    %804 = vmatpush1.bf16.msra.mxu0 %v568
    %805 = vmatprep.subr.bf16.mxu0 0
    %806 = vmatpush1.bf16.msra.mxu0 %v567
    %807 = vmatprep.subr.bf16.mxu0 0
    %808 = vmatpush1.bf16.msra.mxu0 %v566
    %809 = vmatprep.subr.bf16.mxu0 0
    %810 = vmatpush2.bf16.msra.mxu0 %v581
    %811 = vmatprep.subr.bf16.mxu0 0
    %812 = vmatpush2.bf16.msra.mxu0 %v580
    %813 = vmatprep.subr.bf16.mxu0 0
    %814 = vmatpush2.bf16.msra.mxu0 %v579
    %815 = vmatprep.subr.bf16.mxu0 0
    %816 = vmatpush2.bf16.msra.mxu0 %v578
    %817 = vmatprep.subr.bf16.mxu0 0
    %818 = vmatpush2.bf16.msra.mxu0 %v577
    %819 = vmatprep.subr.bf16.mxu0 0
    %820 = vmatpush2.bf16.msra.mxu0 %v576
    %821 = vmatprep.subr.bf16.mxu0 0
    %822 = vmatpush2.bf16.msra.mxu0 %v575
    %823 = vmatprep.subr.bf16.mxu0 0
    %824 = vmatpush2.bf16.msra.mxu0 %v574
    %825 = vmatprep.mubr.bf16.mxu0 %v237
    %826 = vmatmul.mubr.bf16.gmra.mxu0 %v236
    %v827 = vpop.f32.mrf.mxu0
    %v828 = vadd.f32 %v779, %v827
    %v829 = vpop.f32.mrf.mxu0
    %v830 = vpop.f32.mrf.mxu0
    %v831 = vadd.f32 %v782, %v830
    %v832 = vpop.f32.mrf.mxu0
    %833 = vmatprep.mubr.bf16.mxu0 %v245
    %834 = vmatmul.mubr.bf16.gmra.mxu0 %v244
    %v835 = vpop.f32.mrf.mxu0
    %v836 = vadd.f32 %v787, %v835
    %v837 = vpop.f32.mrf.mxu0
    %v838 = vpop.f32.mrf.mxu0
    %v839 = vadd.f32 %v790, %v838
    %v840 = vpop.f32.mrf.mxu0
    %841 = vdwg.mxu0
    %v842 = vmax.f32 %v828, 0.0
    %v843 = vmax.f32 %v831, 0.0
    %v844 = vmax.f32 %v836, 0.0
    %v845 = vmax.f32 %v839, 0.0
    %v846 = vpack.c.bf16 %v843, %v842
    %v847 = vpack.c.bf16 %v845, %v844
    %v848 = vld [vmem:[%s3] sm:$0xf]
    %v849 = vld [vmem:[%s3 + $0x4] sm:$0xf]
    %v850 = vld [vmem:[%s3 + $0x8] sm:$0xf]
    %v851 = vld [vmem:[%s3 + $0xc] sm:$0xf]
    %v852 = vld [vmem:[%s3 + $0x10] sm:$0xf]
    %v853 = vld [vmem:[%s3 + $0x14] sm:$0xf]
    %v854 = vld [vmem:[%s3 + $0x18] sm:$0xf]
    %v855 = vld [vmem:[%s3 + $0x1c] sm:$0xf]
    %v856 = vld [vmem:[%s3 + $0x20] sm:$0xf]
    %v857 = vld [vmem:[%s3 + $0x24] sm:$0xf]
    %v858 = vld [vmem:[%s3 + $0x28] sm:$0xf]
    %v859 = vld [vmem:[%s3 + $0x2c] sm:$0xf]
    %v860 = vld [vmem:[%s3 + $0x30] sm:$0xf]
    %v861 = vld [vmem:[%s3 + $0x34] sm:$0xf]
    %v862 = vld [vmem:[%s3 + $0x38] sm:$0xf]
    %v863 = vld [vmem:[%s3 + $0x3c] sm:$0xf]
    %s864 = scalar_lea.vmem %s3, 64
    %v865 = vld [vmem:[%s864] sm:$0xf]
    %v866 = vld [vmem:[%s864 + $0x4] sm:$0xf]
    %v867 = vld [vmem:[%s864 + $0x8] sm:$0xf]
    %v868 = vld [vmem:[%s864 + $0xc] sm:$0xf]
    %v869 = vld [vmem:[%s864 + $0x10] sm:$0xf]
    %v870 = vld [vmem:[%s864 + $0x14] sm:$0xf]
    %v871 = vld [vmem:[%s864 + $0x18] sm:$0xf]
    %v872 = vld [vmem:[%s864 + $0x1c] sm:$0xf]
    %v873 = vld [vmem:[%s864 + $0x20] sm:$0xf]
    %v874 = vld [vmem:[%s864 + $0x24] sm:$0xf]
    %v875 = vld [vmem:[%s864 + $0x28] sm:$0xf]
    %v876 = vld [vmem:[%s864 + $0x2c] sm:$0xf]
    %v877 = vld [vmem:[%s864 + $0x30] sm:$0xf]
    %v878 = vld [vmem:[%s864 + $0x34] sm:$0xf]
    %v879 = vld [vmem:[%s864 + $0x38] sm:$0xf]
    %v880 = vld [vmem:[%s864 + $0x3c] sm:$0xf]
    %v883 = vunpack.c.l.b16 %v846
    %v884 = vunpack.c.l.b16 %v847
    %v885 = vrot.slane %v883, 1
    %vm886 = vcmask 1041409
    %v887 = vsel %vm886, %v884, %v885
    %v888 = vpack.c.b16 %v887, %v887
    %v906 = vunpack.c.l.b16 %v865
    %v907 = vunpack.c.l.b16 %v866
    %v908 = vunpack.c.l.b16 %v867
    %v909 = vunpack.c.l.b16 %v868
    %v910 = vunpack.c.l.b16 %v869
    %v911 = vunpack.c.l.b16 %v870
    %v912 = vunpack.c.l.b16 %v871
    %v913 = vunpack.c.l.b16 %v872
    %v914 = vunpack.c.l.b16 %v873
    %v915 = vunpack.c.l.b16 %v874
    %v916 = vunpack.c.l.b16 %v875
    %v917 = vunpack.c.l.b16 %v876
    %v918 = vunpack.c.l.b16 %v877
    %v919 = vunpack.c.l.b16 %v878
    %v920 = vunpack.c.l.b16 %v879
    %v921 = vunpack.c.l.b16 %v880
    %v922 = vpack.c.b16 %v907, %v906
    %v923 = vpack.c.b16 %v909, %v908
    %v924 = vpack.c.b16 %v911, %v910
    %v925 = vpack.c.b16 %v913, %v912
    %v926 = vpack.c.b16 %v915, %v914
    %v927 = vpack.c.b16 %v917, %v916
    %v928 = vpack.c.b16 %v919, %v918
    %v929 = vpack.c.b16 %v921, %v920
    %938 = vmatprep.subr.bf16.mxu0 0
    %939 = vmatpush1.bf16.msra.mxu0 %v929
    %940 = vmatprep.subr.bf16.mxu0 0
    %941 = vmatpush1.bf16.msra.mxu0 %v928
    %942 = vmatprep.subr.bf16.mxu0 0
    %943 = vmatpush1.bf16.msra.mxu0 %v927
    %944 = vmatprep.subr.bf16.mxu0 0
    %945 = vmatpush1.bf16.msra.mxu0 %v926
    %946 = vmatprep.subr.bf16.mxu0 0
    %947 = vmatpush1.bf16.msra.mxu0 %v925
    %948 = vmatprep.subr.bf16.mxu0 0
    %949 = vmatpush1.bf16.msra.mxu0 %v924
    %950 = vmatprep.subr.bf16.mxu0 0
    %951 = vmatpush1.bf16.msra.mxu0 %v923
    %952 = vmatprep.subr.bf16.mxu0 0
    %953 = vmatpush1.bf16.msra.mxu0 %v922
    %954 = vmatprep.subr.bf16.mxu0 0
    %955 = vmatpush2.bf16.msra.mxu0 0
    %956 = vmatprep.subr.bf16.mxu0 0
    %957 = vmatpush2.bf16.msra.mxu0 0
    %958 = vmatprep.subr.bf16.mxu0 0
    %959 = vmatpush2.bf16.msra.mxu0 0
    %960 = vmatprep.subr.bf16.mxu0 0
    %961 = vmatpush2.bf16.msra.mxu0 0
    %962 = vmatprep.subr.bf16.mxu0 0
    %963 = vmatpush2.bf16.msra.mxu0 0
    %964 = vmatprep.subr.bf16.mxu0 0
    %965 = vmatpush2.bf16.msra.mxu0 0
    %966 = vmatprep.subr.bf16.mxu0 0
    %967 = vmatpush2.bf16.msra.mxu0 0
    %968 = vmatprep.subr.bf16.mxu0 0
    %969 = vmatpush2.bf16.msra.mxu0 0
    %970 = vmatprep.mubr.bf16.mxu0 0
    %971 = vmatmul.mubr.bf16.gmra.mxu0 %v888
    %v972 = vpop.f32.mrf.mxu0
    %v973 = vadd.f32 0.0, %v972
    %v974 = vpop.f32.mrf.mxu0
    %v975 = vpop.f32.mrf.mxu0
    %v976 = vpop.f32.mrf.mxu0
    %977 = vdwg.mxu0
    %v978 = vrot.slane %v884, 7
    %v979 = vsel %vm886, %v978, %v883
    %v980 = vpack.c.b16 %v979, %v979
    %v998 = vunpack.c.l.b16 %v848
    %v999 = vunpack.c.l.b16 %v849
    %v1000 = vunpack.c.l.b16 %v850
    %v1001 = vunpack.c.l.b16 %v851
    %v1002 = vunpack.c.l.b16 %v852
    %v1003 = vunpack.c.l.b16 %v853
    %v1004 = vunpack.c.l.b16 %v854
    %v1005 = vunpack.c.l.b16 %v855
    %v1006 = vunpack.c.l.b16 %v856
    %v1007 = vunpack.c.l.b16 %v857
    %v1008 = vunpack.c.l.b16 %v858
    %v1009 = vunpack.c.l.b16 %v859
    %v1010 = vunpack.c.l.b16 %v860
    %v1011 = vunpack.c.l.b16 %v861
    %v1012 = vunpack.c.l.b16 %v862
    %v1013 = vunpack.c.l.b16 %v863
    %v1014 = vpack.c.b16 %v999, %v998
    %v1015 = vpack.c.b16 %v1001, %v1000
    %v1016 = vpack.c.b16 %v1003, %v1002
    %v1017 = vpack.c.b16 %v1005, %v1004
    %v1018 = vpack.c.b16 %v1007, %v1006
    %v1019 = vpack.c.b16 %v1009, %v1008
    %v1020 = vpack.c.b16 %v1011, %v1010
    %v1021 = vpack.c.b16 %v1013, %v1012
    %1030 = vmatprep.subr.bf16.mxu0 0
    %1031 = vmatpush1.bf16.msra.mxu0 %v1021
    %1032 = vmatprep.subr.bf16.mxu0 0
    %1033 = vmatpush1.bf16.msra.mxu0 %v1020
    %1034 = vmatprep.subr.bf16.mxu0 0
    %1035 = vmatpush1.bf16.msra.mxu0 %v1019
    %1036 = vmatprep.subr.bf16.mxu0 0
    %1037 = vmatpush1.bf16.msra.mxu0 %v1018
    %1038 = vmatprep.subr.bf16.mxu0 0
    %1039 = vmatpush1.bf16.msra.mxu0 %v1017
    %1040 = vmatprep.subr.bf16.mxu0 0
    %1041 = vmatpush1.bf16.msra.mxu0 %v1016
    %1042 = vmatprep.subr.bf16.mxu0 0
    %1043 = vmatpush1.bf16.msra.mxu0 %v1015
    %1044 = vmatprep.subr.bf16.mxu0 0
    %1045 = vmatpush1.bf16.msra.mxu0 %v1014
    %1046 = vmatprep.subr.bf16.mxu0 0
    %1047 = vmatpush2.bf16.msra.mxu0 0
    %1048 = vmatprep.subr.bf16.mxu0 0
    %1049 = vmatpush2.bf16.msra.mxu0 0
    %1050 = vmatprep.subr.bf16.mxu0 0
    %1051 = vmatpush2.bf16.msra.mxu0 0
    %1052 = vmatprep.subr.bf16.mxu0 0
    %1053 = vmatpush2.bf16.msra.mxu0 0
    %1054 = vmatprep.subr.bf16.mxu0 0
    %1055 = vmatpush2.bf16.msra.mxu0 0
    %1056 = vmatprep.subr.bf16.mxu0 0
    %1057 = vmatpush2.bf16.msra.mxu0 0
    %1058 = vmatprep.subr.bf16.mxu0 0
    %1059 = vmatpush2.bf16.msra.mxu0 0
    %1060 = vmatprep.subr.bf16.mxu0 0
    %1061 = vmatpush2.bf16.msra.mxu0 0
    %1062 = vmatprep.mubr.bf16.mxu0 0
    %1063 = vmatmul.mubr.bf16.gmra.mxu0 %v980
    %v1064 = vpop.f32.mrf.mxu0
    %v1065 = vadd.f32 %v973, %v1064
    %v1066 = vpop.f32.mrf.mxu0
    %v1067 = vpop.f32.mrf.mxu0
    %v1068 = vpop.f32.mrf.mxu0
    %1069 = vdwg.mxu0
    %s1070 = scalar_lea.vmem %s3, 128
    %v1071 = vld [vmem:[%s1070] sm:$0xf]
    %v1072 = vld [vmem:[%s1070 + $0x4] sm:$0xf]
    %v1073 = vld [vmem:[%s1070 + $0x8] sm:$0xf]
    %v1074 = vld [vmem:[%s1070 + $0xc] sm:$0xf]
    %v1075 = vld [vmem:[%s1070 + $0x10] sm:$0xf]
    %v1076 = vld [vmem:[%s1070 + $0x14] sm:$0xf]
    %v1077 = vld [vmem:[%s1070 + $0x18] sm:$0xf]
    %v1078 = vld [vmem:[%s1070 + $0x1c] sm:$0xf]
    %v1079 = vld [vmem:[%s1070 + $0x20] sm:$0xf]
    %v1080 = vld [vmem:[%s1070 + $0x24] sm:$0xf]
    %v1081 = vld [vmem:[%s1070 + $0x28] sm:$0xf]
    %v1082 = vld [vmem:[%s1070 + $0x2c] sm:$0xf]
    %v1083 = vld [vmem:[%s1070 + $0x30] sm:$0xf]
    %v1084 = vld [vmem:[%s1070 + $0x34] sm:$0xf]
    %v1085 = vld [vmem:[%s1070 + $0x38] sm:$0xf]
    %v1086 = vld [vmem:[%s1070 + $0x3c] sm:$0xf]
    %v1087 = vrot.slane %v883, 2
    %v1088 = vrot.slane %v884, 1
    %v1089 = vsel %vm886, %v1088, %v1087
    %v1090 = vpack.c.b16 %v1089, %v1089
    %v1108 = vunpack.c.l.b16 %v1071
    %v1109 = vunpack.c.l.b16 %v1072
    %v1110 = vunpack.c.l.b16 %v1073
    %v1111 = vunpack.c.l.b16 %v1074
    %v1112 = vunpack.c.l.b16 %v1075
    %v1113 = vunpack.c.l.b16 %v1076
    %v1114 = vunpack.c.l.b16 %v1077
    %v1115 = vunpack.c.l.b16 %v1078
    %v1116 = vunpack.c.l.b16 %v1079
    %v1117 = vunpack.c.l.b16 %v1080
    %v1118 = vunpack.c.l.b16 %v1081
    %v1119 = vunpack.c.l.b16 %v1082
    %v1120 = vunpack.c.l.b16 %v1083
    %v1121 = vunpack.c.l.b16 %v1084
    %v1122 = vunpack.c.l.b16 %v1085
    %v1123 = vunpack.c.l.b16 %v1086
    %v1124 = vpack.c.b16 %v1109, %v1108
    %v1125 = vpack.c.b16 %v1111, %v1110
    %v1126 = vpack.c.b16 %v1113, %v1112
    %v1127 = vpack.c.b16 %v1115, %v1114
    %v1128 = vpack.c.b16 %v1117, %v1116
    %v1129 = vpack.c.b16 %v1119, %v1118
    %v1130 = vpack.c.b16 %v1121, %v1120
    %v1131 = vpack.c.b16 %v1123, %v1122
    %1140 = vmatprep.subr.bf16.mxu0 0
    %1141 = vmatpush1.bf16.msra.mxu0 %v1131
    %1142 = vmatprep.subr.bf16.mxu0 0
    %1143 = vmatpush1.bf16.msra.mxu0 %v1130
    %1144 = vmatprep.subr.bf16.mxu0 0
    %1145 = vmatpush1.bf16.msra.mxu0 %v1129
    %1146 = vmatprep.subr.bf16.mxu0 0
    %1147 = vmatpush1.bf16.msra.mxu0 %v1128
    %1148 = vmatprep.subr.bf16.mxu0 0
    %1149 = vmatpush1.bf16.msra.mxu0 %v1127
    %1150 = vmatprep.subr.bf16.mxu0 0
    %1151 = vmatpush1.bf16.msra.mxu0 %v1126
    %1152 = vmatprep.subr.bf16.mxu0 0
    %1153 = vmatpush1.bf16.msra.mxu0 %v1125
    %1154 = vmatprep.subr.bf16.mxu0 0
    %1155 = vmatpush1.bf16.msra.mxu0 %v1124
    %1156 = vmatprep.subr.bf16.mxu0 0
    %1157 = vmatpush2.bf16.msra.mxu0 0
    %1158 = vmatprep.subr.bf16.mxu0 0
    %1159 = vmatpush2.bf16.msra.mxu0 0
    %1160 = vmatprep.subr.bf16.mxu0 0
    %1161 = vmatpush2.bf16.msra.mxu0 0
    %1162 = vmatprep.subr.bf16.mxu0 0
    %1163 = vmatpush2.bf16.msra.mxu0 0
    %1164 = vmatprep.subr.bf16.mxu0 0
    %1165 = vmatpush2.bf16.msra.mxu0 0
    %1166 = vmatprep.subr.bf16.mxu0 0
    %1167 = vmatpush2.bf16.msra.mxu0 0
    %1168 = vmatprep.subr.bf16.mxu0 0
    %1169 = vmatpush2.bf16.msra.mxu0 0
    %1170 = vmatprep.subr.bf16.mxu0 0
    %1171 = vmatpush2.bf16.msra.mxu0 0
    %1172 = vmatprep.mubr.bf16.mxu0 0
    %1173 = vmatmul.mubr.bf16.gmra.mxu0 %v1090
    %v1174 = vpop.f32.mrf.mxu0
    %v1175 = vadd.f32 0.0, %v1174
    %v1176 = vpop.f32.mrf.mxu0
    %v1177 = vpop.f32.mrf.mxu0
    %v1178 = vpop.f32.mrf.mxu0
    %1179 = vdwg.mxu0
    %v1180 = vadd.f32 %v1065, %v1175
    %s1181 = scalar_lea.vmem %s3, 192
    %v1182 = vld [vmem:[%s1181] sm:$0xf]
    %v1183 = vld [vmem:[%s1181 + $0x4] sm:$0xf]
    %v1184 = vld [vmem:[%s1181 + $0x8] sm:$0xf]
    %v1185 = vld [vmem:[%s1181 + $0xc] sm:$0xf]
    %v1186 = vld [vmem:[%s1181 + $0x10] sm:$0xf]
    %v1187 = vld [vmem:[%s1181 + $0x14] sm:$0xf]
    %v1188 = vld [vmem:[%s1181 + $0x18] sm:$0xf]
    %v1189 = vld [vmem:[%s1181 + $0x1c] sm:$0xf]
    %v1190 = vld [vmem:[%s1181 + $0x20] sm:$0xf]
    %v1191 = vld [vmem:[%s1181 + $0x24] sm:$0xf]
    %v1192 = vld [vmem:[%s1181 + $0x28] sm:$0xf]
    %v1193 = vld [vmem:[%s1181 + $0x2c] sm:$0xf]
    %v1194 = vld [vmem:[%s1181 + $0x30] sm:$0xf]
    %v1195 = vld [vmem:[%s1181 + $0x34] sm:$0xf]
    %v1196 = vld [vmem:[%s1181 + $0x38] sm:$0xf]
    %v1197 = vld [vmem:[%s1181 + $0x3c] sm:$0xf]
    %v1198 = vrot.slane %v883, 3
    %v1199 = vrot.slane %v884, 2
    %v1200 = vsel %vm886, %v1199, %v1198
    %v1201 = vpack.c.b16 %v1200, %v1200
    %v1219 = vunpack.c.l.b16 %v1182
    %v1220 = vunpack.c.l.b16 %v1183
    %v1221 = vunpack.c.l.b16 %v1184
    %v1222 = vunpack.c.l.b16 %v1185
    %v1223 = vunpack.c.l.b16 %v1186
    %v1224 = vunpack.c.l.b16 %v1187
    %v1225 = vunpack.c.l.b16 %v1188
    %v1226 = vunpack.c.l.b16 %v1189
    %v1227 = vunpack.c.l.b16 %v1190
    %v1228 = vunpack.c.l.b16 %v1191
    %v1229 = vunpack.c.l.b16 %v1192
    %v1230 = vunpack.c.l.b16 %v1193
    %v1231 = vunpack.c.l.b16 %v1194
    %v1232 = vunpack.c.l.b16 %v1195
    %v1233 = vunpack.c.l.b16 %v1196
    %v1234 = vunpack.c.l.b16 %v1197
    %v1235 = vpack.c.b16 %v1220, %v1219
    %v1236 = vpack.c.b16 %v1222, %v1221
    %v1237 = vpack.c.b16 %v1224, %v1223
    %v1238 = vpack.c.b16 %v1226, %v1225
    %v1239 = vpack.c.b16 %v1228, %v1227
    %v1240 = vpack.c.b16 %v1230, %v1229
    %v1241 = vpack.c.b16 %v1232, %v1231
    %v1242 = vpack.c.b16 %v1234, %v1233
    %1251 = vmatprep.subr.bf16.mxu0 0
    %1252 = vmatpush1.bf16.msra.mxu0 %v1242
    %1253 = vmatprep.subr.bf16.mxu0 0
    %1254 = vmatpush1.bf16.msra.mxu0 %v1241
    %1255 = vmatprep.subr.bf16.mxu0 0
    %1256 = vmatpush1.bf16.msra.mxu0 %v1240
    %1257 = vmatprep.subr.bf16.mxu0 0
    %1258 = vmatpush1.bf16.msra.mxu0 %v1239
    %1259 = vmatprep.subr.bf16.mxu0 0
    %1260 = vmatpush1.bf16.msra.mxu0 %v1238
    %1261 = vmatprep.subr.bf16.mxu0 0
    %1262 = vmatpush1.bf16.msra.mxu0 %v1237
    %1263 = vmatprep.subr.bf16.mxu0 0
    %1264 = vmatpush1.bf16.msra.mxu0 %v1236
    %1265 = vmatprep.subr.bf16.mxu0 0
    %1266 = vmatpush1.bf16.msra.mxu0 %v1235
    %1267 = vmatprep.subr.bf16.mxu0 0
    %1268 = vmatpush2.bf16.msra.mxu0 0
    %1269 = vmatprep.subr.bf16.mxu0 0
    %1270 = vmatpush2.bf16.msra.mxu0 0
    %1271 = vmatprep.subr.bf16.mxu0 0
    %1272 = vmatpush2.bf16.msra.mxu0 0
    %1273 = vmatprep.subr.bf16.mxu0 0
    %1274 = vmatpush2.bf16.msra.mxu0 0
    %1275 = vmatprep.subr.bf16.mxu0 0
    %1276 = vmatpush2.bf16.msra.mxu0 0
    %1277 = vmatprep.subr.bf16.mxu0 0
    %1278 = vmatpush2.bf16.msra.mxu0 0
    %1279 = vmatprep.subr.bf16.mxu0 0
    %1280 = vmatpush2.bf16.msra.mxu0 0
    %1281 = vmatprep.subr.bf16.mxu0 0
    %1282 = vmatpush2.bf16.msra.mxu0 0
    %1283 = vmatprep.mubr.bf16.mxu0 0
    %1284 = vmatmul.mubr.bf16.gmra.mxu0 %v1201
    %v1285 = vpop.f32.mrf.mxu0
    %v1286 = vadd.f32 0.0, %v1285
    %v1287 = vpop.f32.mrf.mxu0
    %v1288 = vpop.f32.mrf.mxu0
    %v1289 = vpop.f32.mrf.mxu0
    %1290 = vdwg.mxu0
    %v1291 = vadd.f32 %v1180, %v1286
    %s1292 = scalar_lea.vmem %s3, 256
    %v1293 = vld [vmem:[%s1292] sm:$0xf]
    %v1294 = vld [vmem:[%s1292 + $0x4] sm:$0xf]
    %v1295 = vld [vmem:[%s1292 + $0x8] sm:$0xf]
    %v1296 = vld [vmem:[%s1292 + $0xc] sm:$0xf]
    %v1297 = vld [vmem:[%s1292 + $0x10] sm:$0xf]
    %v1298 = vld [vmem:[%s1292 + $0x14] sm:$0xf]
    %v1299 = vld [vmem:[%s1292 + $0x18] sm:$0xf]
    %v1300 = vld [vmem:[%s1292 + $0x1c] sm:$0xf]
    %v1301 = vld [vmem:[%s1292 + $0x20] sm:$0xf]
    %v1302 = vld [vmem:[%s1292 + $0x24] sm:$0xf]
    %v1303 = vld [vmem:[%s1292 + $0x28] sm:$0xf]
    %v1304 = vld [vmem:[%s1292 + $0x2c] sm:$0xf]
    %v1305 = vld [vmem:[%s1292 + $0x30] sm:$0xf]
    %v1306 = vld [vmem:[%s1292 + $0x34] sm:$0xf]
    %v1307 = vld [vmem:[%s1292 + $0x38] sm:$0xf]
    %v1308 = vld [vmem:[%s1292 + $0x3c] sm:$0xf]
    %v1309 = vrot.slane %v883, 4
    %v1310 = vrot.slane %v884, 3
    %v1311 = vsel %vm886, %v1310, %v1309
    %v1312 = vpack.c.b16 %v1311, %v1311
    %v1330 = vunpack.c.l.b16 %v1293
    %v1331 = vunpack.c.l.b16 %v1294
    %v1332 = vunpack.c.l.b16 %v1295
    %v1333 = vunpack.c.l.b16 %v1296
    %v1334 = vunpack.c.l.b16 %v1297
    %v1335 = vunpack.c.l.b16 %v1298
    %v1336 = vunpack.c.l.b16 %v1299
    %v1337 = vunpack.c.l.b16 %v1300
    %v1338 = vunpack.c.l.b16 %v1301
    %v1339 = vunpack.c.l.b16 %v1302
    %v1340 = vunpack.c.l.b16 %v1303
    %v1341 = vunpack.c.l.b16 %v1304
    %v1342 = vunpack.c.l.b16 %v1305
    %v1343 = vunpack.c.l.b16 %v1306
    %v1344 = vunpack.c.l.b16 %v1307
    %v1345 = vunpack.c.l.b16 %v1308
    %v1346 = vpack.c.b16 %v1331, %v1330
    %v1347 = vpack.c.b16 %v1333, %v1332
    %v1348 = vpack.c.b16 %v1335, %v1334
    %v1349 = vpack.c.b16 %v1337, %v1336
    %v1350 = vpack.c.b16 %v1339, %v1338
    %v1351 = vpack.c.b16 %v1341, %v1340
    %v1352 = vpack.c.b16 %v1343, %v1342
    %v1353 = vpack.c.b16 %v1345, %v1344
    %1362 = vmatprep.subr.bf16.mxu0 0
    %1363 = vmatpush1.bf16.msra.mxu0 %v1353
    %1364 = vmatprep.subr.bf16.mxu0 0
    %1365 = vmatpush1.bf16.msra.mxu0 %v1352
    %1366 = vmatprep.subr.bf16.mxu0 0
    %1367 = vmatpush1.bf16.msra.mxu0 %v1351
    %1368 = vmatprep.subr.bf16.mxu0 0
    %1369 = vmatpush1.bf16.msra.mxu0 %v1350
    %1370 = vmatprep.subr.bf16.mxu0 0
    %1371 = vmatpush1.bf16.msra.mxu0 %v1349
    %1372 = vmatprep.subr.bf16.mxu0 0
    %1373 = vmatpush1.bf16.msra.mxu0 %v1348
    %1374 = vmatprep.subr.bf16.mxu0 0
    %1375 = vmatpush1.bf16.msra.mxu0 %v1347
    %1376 = vmatprep.subr.bf16.mxu0 0
    %1377 = vmatpush1.bf16.msra.mxu0 %v1346
    %1378 = vmatprep.subr.bf16.mxu0 0
    %1379 = vmatpush2.bf16.msra.mxu0 0
    %1380 = vmatprep.subr.bf16.mxu0 0
    %1381 = vmatpush2.bf16.msra.mxu0 0
    %1382 = vmatprep.subr.bf16.mxu0 0
    %1383 = vmatpush2.bf16.msra.mxu0 0
    %1384 = vmatprep.subr.bf16.mxu0 0
    %1385 = vmatpush2.bf16.msra.mxu0 0
    %1386 = vmatprep.subr.bf16.mxu0 0
    %1387 = vmatpush2.bf16.msra.mxu0 0
    %1388 = vmatprep.subr.bf16.mxu0 0
    %1389 = vmatpush2.bf16.msra.mxu0 0
    %1390 = vmatprep.subr.bf16.mxu0 0
    %1391 = vmatpush2.bf16.msra.mxu0 0
    %1392 = vmatprep.subr.bf16.mxu0 0
    %1393 = vmatpush2.bf16.msra.mxu0 0
    %1394 = vmatprep.mubr.bf16.mxu0 0
    %1395 = vmatmul.mubr.bf16.gmra.mxu0 %v1312
    %v1396 = vpop.f32.mrf.mxu0
    %v1397 = vadd.f32 0.0, %v1396
    %v1398 = vpop.f32.mrf.mxu0
    %v1399 = vpop.f32.mrf.mxu0
    %v1400 = vpop.f32.mrf.mxu0
    %1401 = vdwg.mxu0
    %v1402 = vadd.f32 %v1291, %v1397
    %s1403 = scalar_lea.vmem %s3, 320
    %v1404 = vld [vmem:[%s1403] sm:$0xf]
    %v1405 = vld [vmem:[%s1403 + $0x4] sm:$0xf]
    %v1406 = vld [vmem:[%s1403 + $0x8] sm:$0xf]
    %v1407 = vld [vmem:[%s1403 + $0xc] sm:$0xf]
    %v1408 = vld [vmem:[%s1403 + $0x10] sm:$0xf]
    %v1409 = vld [vmem:[%s1403 + $0x14] sm:$0xf]
    %v1410 = vld [vmem:[%s1403 + $0x18] sm:$0xf]
    %v1411 = vld [vmem:[%s1403 + $0x1c] sm:$0xf]
    %v1412 = vld [vmem:[%s1403 + $0x20] sm:$0xf]
    %v1413 = vld [vmem:[%s1403 + $0x24] sm:$0xf]
    %v1414 = vld [vmem:[%s1403 + $0x28] sm:$0xf]
    %v1415 = vld [vmem:[%s1403 + $0x2c] sm:$0xf]
    %v1416 = vld [vmem:[%s1403 + $0x30] sm:$0xf]
    %v1417 = vld [vmem:[%s1403 + $0x34] sm:$0xf]
    %v1418 = vld [vmem:[%s1403 + $0x38] sm:$0xf]
    %v1419 = vld [vmem:[%s1403 + $0x3c] sm:$0xf]
    %v1420 = vrot.slane %v883, 5
    %v1421 = vrot.slane %v884, 4
    %v1422 = vsel %vm886, %v1421, %v1420
    %v1423 = vpack.c.b16 %v1422, %v1422
    %v1441 = vunpack.c.l.b16 %v1404
    %v1442 = vunpack.c.l.b16 %v1405
    %v1443 = vunpack.c.l.b16 %v1406
    %v1444 = vunpack.c.l.b16 %v1407
    %v1445 = vunpack.c.l.b16 %v1408
    %v1446 = vunpack.c.l.b16 %v1409
    %v1447 = vunpack.c.l.b16 %v1410
    %v1448 = vunpack.c.l.b16 %v1411
    %v1449 = vunpack.c.l.b16 %v1412
    %v1450 = vunpack.c.l.b16 %v1413
    %v1451 = vunpack.c.l.b16 %v1414
    %v1452 = vunpack.c.l.b16 %v1415
    %v1453 = vunpack.c.l.b16 %v1416
    %v1454 = vunpack.c.l.b16 %v1417
    %v1455 = vunpack.c.l.b16 %v1418
    %v1456 = vunpack.c.l.b16 %v1419
    %v1457 = vpack.c.b16 %v1442, %v1441
    %v1458 = vpack.c.b16 %v1444, %v1443
    %v1459 = vpack.c.b16 %v1446, %v1445
    %v1460 = vpack.c.b16 %v1448, %v1447
    %v1461 = vpack.c.b16 %v1450, %v1449
    %v1462 = vpack.c.b16 %v1452, %v1451
    %v1463 = vpack.c.b16 %v1454, %v1453
    %v1464 = vpack.c.b16 %v1456, %v1455
    %1473 = vmatprep.subr.bf16.mxu0 0
    %1474 = vmatpush1.bf16.msra.mxu0 %v1464
    %1475 = vmatprep.subr.bf16.mxu0 0
    %1476 = vmatpush1.bf16.msra.mxu0 %v1463
    %1477 = vmatprep.subr.bf16.mxu0 0
    %1478 = vmatpush1.bf16.msra.mxu0 %v1462
    %1479 = vmatprep.subr.bf16.mxu0 0
    %1480 = vmatpush1.bf16.msra.mxu0 %v1461
    %1481 = vmatprep.subr.bf16.mxu0 0
    %1482 = vmatpush1.bf16.msra.mxu0 %v1460
    %1483 = vmatprep.subr.bf16.mxu0 0
    %1484 = vmatpush1.bf16.msra.mxu0 %v1459
    %1485 = vmatprep.subr.bf16.mxu0 0
    %1486 = vmatpush1.bf16.msra.mxu0 %v1458
    %1487 = vmatprep.subr.bf16.mxu0 0
    %1488 = vmatpush1.bf16.msra.mxu0 %v1457
    %1489 = vmatprep.subr.bf16.mxu0 0
    %1490 = vmatpush2.bf16.msra.mxu0 0
    %1491 = vmatprep.subr.bf16.mxu0 0
    %1492 = vmatpush2.bf16.msra.mxu0 0
    %1493 = vmatprep.subr.bf16.mxu0 0
    %1494 = vmatpush2.bf16.msra.mxu0 0
    %1495 = vmatprep.subr.bf16.mxu0 0
    %1496 = vmatpush2.bf16.msra.mxu0 0
    %1497 = vmatprep.subr.bf16.mxu0 0
    %1498 = vmatpush2.bf16.msra.mxu0 0
    %1499 = vmatprep.subr.bf16.mxu0 0
    %1500 = vmatpush2.bf16.msra.mxu0 0
    %1501 = vmatprep.subr.bf16.mxu0 0
    %1502 = vmatpush2.bf16.msra.mxu0 0
    %1503 = vmatprep.subr.bf16.mxu0 0
    %1504 = vmatpush2.bf16.msra.mxu0 0
    %1505 = vmatprep.mubr.bf16.mxu0 0
    %1506 = vmatmul.mubr.bf16.gmra.mxu0 %v1423
    %v1507 = vpop.f32.mrf.mxu0
    %v1508 = vadd.f32 0.0, %v1507
    %v1509 = vpop.f32.mrf.mxu0
    %v1510 = vpop.f32.mrf.mxu0
    %v1511 = vpop.f32.mrf.mxu0
    %1512 = vdwg.mxu0
    %v1513 = vadd.f32 %v1402, %v1508
    %s1514 = scalar_lea.vmem %s3, 384
    %v1515 = vld [vmem:[%s1514] sm:$0xf]
    %v1516 = vld [vmem:[%s1514 + $0x4] sm:$0xf]
    %v1517 = vld [vmem:[%s1514 + $0x8] sm:$0xf]
    %v1518 = vld [vmem:[%s1514 + $0xc] sm:$0xf]
    %v1519 = vld [vmem:[%s1514 + $0x10] sm:$0xf]
    %v1520 = vld [vmem:[%s1514 + $0x14] sm:$0xf]
    %v1521 = vld [vmem:[%s1514 + $0x18] sm:$0xf]
    %v1522 = vld [vmem:[%s1514 + $0x1c] sm:$0xf]
    %v1523 = vld [vmem:[%s1514 + $0x20] sm:$0xf]
    %v1524 = vld [vmem:[%s1514 + $0x24] sm:$0xf]
    %v1525 = vld [vmem:[%s1514 + $0x28] sm:$0xf]
    %v1526 = vld [vmem:[%s1514 + $0x2c] sm:$0xf]
    %v1527 = vld [vmem:[%s1514 + $0x30] sm:$0xf]
    %v1528 = vld [vmem:[%s1514 + $0x34] sm:$0xf]
    %v1529 = vld [vmem:[%s1514 + $0x38] sm:$0xf]
    %v1530 = vld [vmem:[%s1514 + $0x3c] sm:$0xf]
    %v1531 = vrot.slane %v883, 6
    %v1532 = vrot.slane %v884, 5
    %v1533 = vsel %vm886, %v1532, %v1531
    %v1534 = vpack.c.b16 %v1533, %v1533
    %v1552 = vunpack.c.l.b16 %v1515
    %v1553 = vunpack.c.l.b16 %v1516
    %v1554 = vunpack.c.l.b16 %v1517
    %v1555 = vunpack.c.l.b16 %v1518
    %v1556 = vunpack.c.l.b16 %v1519
    %v1557 = vunpack.c.l.b16 %v1520
    %v1558 = vunpack.c.l.b16 %v1521
    %v1559 = vunpack.c.l.b16 %v1522
    %v1560 = vunpack.c.l.b16 %v1523
    %v1561 = vunpack.c.l.b16 %v1524
    %v1562 = vunpack.c.l.b16 %v1525
    %v1563 = vunpack.c.l.b16 %v1526
    %v1564 = vunpack.c.l.b16 %v1527
    %v1565 = vunpack.c.l.b16 %v1528
    %v1566 = vunpack.c.l.b16 %v1529
    %v1567 = vunpack.c.l.b16 %v1530
    %v1568 = vpack.c.b16 %v1553, %v1552
    %v1569 = vpack.c.b16 %v1555, %v1554
    %v1570 = vpack.c.b16 %v1557, %v1556
    %v1571 = vpack.c.b16 %v1559, %v1558
    %v1572 = vpack.c.b16 %v1561, %v1560
    %v1573 = vpack.c.b16 %v1563, %v1562
    %v1574 = vpack.c.b16 %v1565, %v1564
    %v1575 = vpack.c.b16 %v1567, %v1566
    %1584 = vmatprep.subr.bf16.mxu0 0
    %1585 = vmatpush1.bf16.msra.mxu0 %v1575
    %1586 = vmatprep.subr.bf16.mxu0 0
    %1587 = vmatpush1.bf16.msra.mxu0 %v1574
    %1588 = vmatprep.subr.bf16.mxu0 0
    %1589 = vmatpush1.bf16.msra.mxu0 %v1573
    %1590 = vmatprep.subr.bf16.mxu0 0
    %1591 = vmatpush1.bf16.msra.mxu0 %v1572
    %1592 = vmatprep.subr.bf16.mxu0 0
    %1593 = vmatpush1.bf16.msra.mxu0 %v1571
    %1594 = vmatprep.subr.bf16.mxu0 0
    %1595 = vmatpush1.bf16.msra.mxu0 %v1570
    %1596 = vmatprep.subr.bf16.mxu0 0
    %1597 = vmatpush1.bf16.msra.mxu0 %v1569
    %1598 = vmatprep.subr.bf16.mxu0 0
    %1599 = vmatpush1.bf16.msra.mxu0 %v1568
    %1600 = vmatprep.subr.bf16.mxu0 0
    %1601 = vmatpush2.bf16.msra.mxu0 0
    %1602 = vmatprep.subr.bf16.mxu0 0
    %1603 = vmatpush2.bf16.msra.mxu0 0
    %1604 = vmatprep.subr.bf16.mxu0 0
    %1605 = vmatpush2.bf16.msra.mxu0 0
    %1606 = vmatprep.subr.bf16.mxu0 0
    %1607 = vmatpush2.bf16.msra.mxu0 0
    %1608 = vmatprep.subr.bf16.mxu0 0
    %1609 = vmatpush2.bf16.msra.mxu0 0
    %1610 = vmatprep.subr.bf16.mxu0 0
    %1611 = vmatpush2.bf16.msra.mxu0 0
    %1612 = vmatprep.subr.bf16.mxu0 0
    %1613 = vmatpush2.bf16.msra.mxu0 0
    %1614 = vmatprep.subr.bf16.mxu0 0
    %1615 = vmatpush2.bf16.msra.mxu0 0
    %1616 = vmatprep.mubr.bf16.mxu0 0
    %1617 = vmatmul.mubr.bf16.gmra.mxu0 %v1534
    %v1618 = vpop.f32.mrf.mxu0
    %v1619 = vadd.f32 0.0, %v1618
    %v1620 = vpop.f32.mrf.mxu0
    %v1621 = vpop.f32.mrf.mxu0
    %v1622 = vpop.f32.mrf.mxu0
    %1623 = vdwg.mxu0
    %v1624 = vadd.f32 %v1513, %v1619
    %s1625 = scalar_lea.vmem %s3, 448
    %v1626 = vld [vmem:[%s1625] sm:$0xf]
    %v1627 = vld [vmem:[%s1625 + $0x4] sm:$0xf]
    %v1628 = vld [vmem:[%s1625 + $0x8] sm:$0xf]
    %v1629 = vld [vmem:[%s1625 + $0xc] sm:$0xf]
    %v1630 = vld [vmem:[%s1625 + $0x10] sm:$0xf]
    %v1631 = vld [vmem:[%s1625 + $0x14] sm:$0xf]
    %v1632 = vld [vmem:[%s1625 + $0x18] sm:$0xf]
    %v1633 = vld [vmem:[%s1625 + $0x1c] sm:$0xf]
    %v1634 = vld [vmem:[%s1625 + $0x20] sm:$0xf]
    %v1635 = vld [vmem:[%s1625 + $0x24] sm:$0xf]
    %v1636 = vld [vmem:[%s1625 + $0x28] sm:$0xf]
    %v1637 = vld [vmem:[%s1625 + $0x2c] sm:$0xf]
    %v1638 = vld [vmem:[%s1625 + $0x30] sm:$0xf]
    %v1639 = vld [vmem:[%s1625 + $0x34] sm:$0xf]
    %v1640 = vld [vmem:[%s1625 + $0x38] sm:$0xf]
    %v1641 = vld [vmem:[%s1625 + $0x3c] sm:$0xf]
    %v1642 = vrot.slane %v883, 7
    %v1643 = vrot.slane %v884, 6
    %v1644 = vsel %vm886, %v1643, %v1642
    %v1645 = vpack.c.b16 %v1644, %v1644
    %v1663 = vunpack.c.l.b16 %v1626
    %v1664 = vunpack.c.l.b16 %v1627
    %v1665 = vunpack.c.l.b16 %v1628
    %v1666 = vunpack.c.l.b16 %v1629
    %v1667 = vunpack.c.l.b16 %v1630
    %v1668 = vunpack.c.l.b16 %v1631
    %v1669 = vunpack.c.l.b16 %v1632
    %v1670 = vunpack.c.l.b16 %v1633
    %v1671 = vunpack.c.l.b16 %v1634
    %v1672 = vunpack.c.l.b16 %v1635
    %v1673 = vunpack.c.l.b16 %v1636
    %v1674 = vunpack.c.l.b16 %v1637
    %v1675 = vunpack.c.l.b16 %v1638
    %v1676 = vunpack.c.l.b16 %v1639
    %v1677 = vunpack.c.l.b16 %v1640
    %v1678 = vunpack.c.l.b16 %v1641
    %v1679 = vpack.c.b16 %v1664, %v1663
    %v1680 = vpack.c.b16 %v1666, %v1665
    %v1681 = vpack.c.b16 %v1668, %v1667
    %v1682 = vpack.c.b16 %v1670, %v1669
    %v1683 = vpack.c.b16 %v1672, %v1671
    %v1684 = vpack.c.b16 %v1674, %v1673
    %v1685 = vpack.c.b16 %v1676, %v1675
    %v1686 = vpack.c.b16 %v1678, %v1677
    %1695 = vmatprep.subr.bf16.mxu0 0
    %1696 = vmatpush1.bf16.msra.mxu0 %v1686
    %1697 = vmatprep.subr.bf16.mxu0 0
    %1698 = vmatpush1.bf16.msra.mxu0 %v1685
    %1699 = vmatprep.subr.bf16.mxu0 0
    %1700 = vmatpush1.bf16.msra.mxu0 %v1684
    %1701 = vmatprep.subr.bf16.mxu0 0
    %1702 = vmatpush1.bf16.msra.mxu0 %v1683
    %1703 = vmatprep.subr.bf16.mxu0 0
    %1704 = vmatpush1.bf16.msra.mxu0 %v1682
    %1705 = vmatprep.subr.bf16.mxu0 0
    %1706 = vmatpush1.bf16.msra.mxu0 %v1681
    %1707 = vmatprep.subr.bf16.mxu0 0
    %1708 = vmatpush1.bf16.msra.mxu0 %v1680
    %1709 = vmatprep.subr.bf16.mxu0 0
    %1710 = vmatpush1.bf16.msra.mxu0 %v1679
    %1711 = vmatprep.subr.bf16.mxu0 0
    %1712 = vmatpush2.bf16.msra.mxu0 0
    %1713 = vmatprep.subr.bf16.mxu0 0
    %1714 = vmatpush2.bf16.msra.mxu0 0
    %1715 = vmatprep.subr.bf16.mxu0 0
    %1716 = vmatpush2.bf16.msra.mxu0 0
    %1717 = vmatprep.subr.bf16.mxu0 0
    %1718 = vmatpush2.bf16.msra.mxu0 0
    %1719 = vmatprep.subr.bf16.mxu0 0
    %1720 = vmatpush2.bf16.msra.mxu0 0
    %1721 = vmatprep.subr.bf16.mxu0 0
    %1722 = vmatpush2.bf16.msra.mxu0 0
    %1723 = vmatprep.subr.bf16.mxu0 0
    %1724 = vmatpush2.bf16.msra.mxu0 0
    %1725 = vmatprep.subr.bf16.mxu0 0
    %1726 = vmatpush2.bf16.msra.mxu0 0
    %1727 = vmatprep.mubr.bf16.mxu0 0
    %1728 = vmatmul.mubr.bf16.gmra.mxu0 %v1645
    %v1729 = vpop.f32.mrf.mxu0
    %v1730 = vadd.f32 0.0, %v1729
    %v1731 = vpop.f32.mrf.mxu0
    %v1732 = vpop.f32.mrf.mxu0
    %v1733 = vpop.f32.mrf.mxu0
    %1734 = vdwg.mxu0
    %v1735 = vadd.f32 %v1624, %v1730
    %s1736 = scalar_lea.vmem %s3, 512
    %v1737 = vld [vmem:[%s1736] sm:$0xf]
    %v1738 = vld [vmem:[%s1736 + $0x4] sm:$0xf]
    %v1739 = vld [vmem:[%s1736 + $0x8] sm:$0xf]
    %v1740 = vld [vmem:[%s1736 + $0xc] sm:$0xf]
    %v1741 = vld [vmem:[%s1736 + $0x10] sm:$0xf]
    %v1742 = vld [vmem:[%s1736 + $0x14] sm:$0xf]
    %v1743 = vld [vmem:[%s1736 + $0x18] sm:$0xf]
    %v1744 = vld [vmem:[%s1736 + $0x1c] sm:$0xf]
    %v1745 = vld [vmem:[%s1736 + $0x20] sm:$0xf]
    %v1746 = vld [vmem:[%s1736 + $0x24] sm:$0xf]
    %v1747 = vld [vmem:[%s1736 + $0x28] sm:$0xf]
    %v1748 = vld [vmem:[%s1736 + $0x2c] sm:$0xf]
    %v1749 = vld [vmem:[%s1736 + $0x30] sm:$0xf]
    %v1750 = vld [vmem:[%s1736 + $0x34] sm:$0xf]
    %v1751 = vld [vmem:[%s1736 + $0x38] sm:$0xf]
    %v1752 = vld [vmem:[%s1736 + $0x3c] sm:$0xf]
    %v1753 = vunpack.c.h.b16 %v846
    %v1754 = vunpack.c.h.b16 %v847
    %v1755 = vrot.slane %v1754, 7
    %v1756 = vsel %vm886, %v1755, %v1753
    %v1757 = vpack.c.b16 %v1756, %v1756
    %v1775 = vunpack.c.l.b16 %v1737
    %v1776 = vunpack.c.l.b16 %v1738
    %v1777 = vunpack.c.l.b16 %v1739
    %v1778 = vunpack.c.l.b16 %v1740
    %v1779 = vunpack.c.l.b16 %v1741
    %v1780 = vunpack.c.l.b16 %v1742
    %v1781 = vunpack.c.l.b16 %v1743
    %v1782 = vunpack.c.l.b16 %v1744
    %v1783 = vunpack.c.l.b16 %v1745
    %v1784 = vunpack.c.l.b16 %v1746
    %v1785 = vunpack.c.l.b16 %v1747
    %v1786 = vunpack.c.l.b16 %v1748
    %v1787 = vunpack.c.l.b16 %v1749
    %v1788 = vunpack.c.l.b16 %v1750
    %v1789 = vunpack.c.l.b16 %v1751
    %v1790 = vunpack.c.l.b16 %v1752
    %v1791 = vpack.c.b16 %v1776, %v1775
    %v1792 = vpack.c.b16 %v1778, %v1777
    %v1793 = vpack.c.b16 %v1780, %v1779
    %v1794 = vpack.c.b16 %v1782, %v1781
    %v1795 = vpack.c.b16 %v1784, %v1783
    %v1796 = vpack.c.b16 %v1786, %v1785
    %v1797 = vpack.c.b16 %v1788, %v1787
    %v1798 = vpack.c.b16 %v1790, %v1789
    %1807 = vmatprep.subr.bf16.mxu0 0
    %1808 = vmatpush1.bf16.msra.mxu0 %v1798
    %1809 = vmatprep.subr.bf16.mxu0 0
    %1810 = vmatpush1.bf16.msra.mxu0 %v1797
    %1811 = vmatprep.subr.bf16.mxu0 0
    %1812 = vmatpush1.bf16.msra.mxu0 %v1796
    %1813 = vmatprep.subr.bf16.mxu0 0
    %1814 = vmatpush1.bf16.msra.mxu0 %v1795
    %1815 = vmatprep.subr.bf16.mxu0 0
    %1816 = vmatpush1.bf16.msra.mxu0 %v1794
    %1817 = vmatprep.subr.bf16.mxu0 0
    %1818 = vmatpush1.bf16.msra.mxu0 %v1793
    %1819 = vmatprep.subr.bf16.mxu0 0
    %1820 = vmatpush1.bf16.msra.mxu0 %v1792
    %1821 = vmatprep.subr.bf16.mxu0 0
    %1822 = vmatpush1.bf16.msra.mxu0 %v1791
    %1823 = vmatprep.subr.bf16.mxu0 0
    %1824 = vmatpush2.bf16.msra.mxu0 0
    %1825 = vmatprep.subr.bf16.mxu0 0
    %1826 = vmatpush2.bf16.msra.mxu0 0
    %1827 = vmatprep.subr.bf16.mxu0 0
    %1828 = vmatpush2.bf16.msra.mxu0 0
    %1829 = vmatprep.subr.bf16.mxu0 0
    %1830 = vmatpush2.bf16.msra.mxu0 0
    %1831 = vmatprep.subr.bf16.mxu0 0
    %1832 = vmatpush2.bf16.msra.mxu0 0
    %1833 = vmatprep.subr.bf16.mxu0 0
    %1834 = vmatpush2.bf16.msra.mxu0 0
    %1835 = vmatprep.subr.bf16.mxu0 0
    %1836 = vmatpush2.bf16.msra.mxu0 0
    %1837 = vmatprep.subr.bf16.mxu0 0
    %1838 = vmatpush2.bf16.msra.mxu0 0
    %1839 = vmatprep.mubr.bf16.mxu0 0
    %1840 = vmatmul.mubr.bf16.gmra.mxu0 %v1757
    %v1841 = vpop.f32.mrf.mxu0
    %v1842 = vadd.f32 0.0, %v1841
    %v1843 = vpop.f32.mrf.mxu0
    %v1844 = vpop.f32.mrf.mxu0
    %v1845 = vpop.f32.mrf.mxu0
    %1846 = vdwg.mxu0
    %v1847 = vadd.f32 %v1735, %v1842
    %s1848 = scalar_lea.vmem %s3, 576
    %v1849 = vld [vmem:[%s1848] sm:$0xf]
    %v1850 = vld [vmem:[%s1848 + $0x4] sm:$0xf]
    %v1851 = vld [vmem:[%s1848 + $0x8] sm:$0xf]
    %v1852 = vld [vmem:[%s1848 + $0xc] sm:$0xf]
    %v1853 = vld [vmem:[%s1848 + $0x10] sm:$0xf]
    %v1854 = vld [vmem:[%s1848 + $0x14] sm:$0xf]
    %v1855 = vld [vmem:[%s1848 + $0x18] sm:$0xf]
    %v1856 = vld [vmem:[%s1848 + $0x1c] sm:$0xf]
    %v1857 = vld [vmem:[%s1848 + $0x20] sm:$0xf]
    %v1858 = vld [vmem:[%s1848 + $0x24] sm:$0xf]
    %v1859 = vld [vmem:[%s1848 + $0x28] sm:$0xf]
    %v1860 = vld [vmem:[%s1848 + $0x2c] sm:$0xf]
    %v1861 = vld [vmem:[%s1848 + $0x30] sm:$0xf]
    %v1862 = vld [vmem:[%s1848 + $0x34] sm:$0xf]
    %v1863 = vld [vmem:[%s1848 + $0x38] sm:$0xf]
    %v1864 = vld [vmem:[%s1848 + $0x3c] sm:$0xf]
    %v1865 = vrot.slane %v1753, 1
    %v1866 = vsel %vm886, %v1754, %v1865
    %v1867 = vpack.c.b16 %v1866, %v1866
    %v1885 = vunpack.c.l.b16 %v1849
    %v1886 = vunpack.c.l.b16 %v1850
    %v1887 = vunpack.c.l.b16 %v1851
    %v1888 = vunpack.c.l.b16 %v1852
    %v1889 = vunpack.c.l.b16 %v1853
    %v1890 = vunpack.c.l.b16 %v1854
    %v1891 = vunpack.c.l.b16 %v1855
    %v1892 = vunpack.c.l.b16 %v1856
    %v1893 = vunpack.c.l.b16 %v1857
    %v1894 = vunpack.c.l.b16 %v1858
    %v1895 = vunpack.c.l.b16 %v1859
    %v1896 = vunpack.c.l.b16 %v1860
    %v1897 = vunpack.c.l.b16 %v1861
    %v1898 = vunpack.c.l.b16 %v1862
    %v1899 = vunpack.c.l.b16 %v1863
    %v1900 = vunpack.c.l.b16 %v1864
    %v1901 = vpack.c.b16 %v1886, %v1885
    %v1902 = vpack.c.b16 %v1888, %v1887
    %v1903 = vpack.c.b16 %v1890, %v1889
    %v1904 = vpack.c.b16 %v1892, %v1891
    %v1905 = vpack.c.b16 %v1894, %v1893
    %v1906 = vpack.c.b16 %v1896, %v1895
    %v1907 = vpack.c.b16 %v1898, %v1897
    %v1908 = vpack.c.b16 %v1900, %v1899
    %1917 = vmatprep.subr.bf16.mxu0 0
    %1918 = vmatpush1.bf16.msra.mxu0 %v1908
    %1919 = vmatprep.subr.bf16.mxu0 0
    %1920 = vmatpush1.bf16.msra.mxu0 %v1907
    %1921 = vmatprep.subr.bf16.mxu0 0
    %1922 = vmatpush1.bf16.msra.mxu0 %v1906
    %1923 = vmatprep.subr.bf16.mxu0 0
    %1924 = vmatpush1.bf16.msra.mxu0 %v1905
    %1925 = vmatprep.subr.bf16.mxu0 0
    %1926 = vmatpush1.bf16.msra.mxu0 %v1904
    %1927 = vmatprep.subr.bf16.mxu0 0
    %1928 = vmatpush1.bf16.msra.mxu0 %v1903
    %1929 = vmatprep.subr.bf16.mxu0 0
    %1930 = vmatpush1.bf16.msra.mxu0 %v1902
    %1931 = vmatprep.subr.bf16.mxu0 0
    %1932 = vmatpush1.bf16.msra.mxu0 %v1901
    %1933 = vmatprep.subr.bf16.mxu0 0
    %1934 = vmatpush2.bf16.msra.mxu0 0
    %1935 = vmatprep.subr.bf16.mxu0 0
    %1936 = vmatpush2.bf16.msra.mxu0 0
    %1937 = vmatprep.subr.bf16.mxu0 0
    %1938 = vmatpush2.bf16.msra.mxu0 0
    %1939 = vmatprep.subr.bf16.mxu0 0
    %1940 = vmatpush2.bf16.msra.mxu0 0
    %1941 = vmatprep.subr.bf16.mxu0 0
    %1942 = vmatpush2.bf16.msra.mxu0 0
    %1943 = vmatprep.subr.bf16.mxu0 0
    %1944 = vmatpush2.bf16.msra.mxu0 0
    %1945 = vmatprep.subr.bf16.mxu0 0
    %1946 = vmatpush2.bf16.msra.mxu0 0
    %1947 = vmatprep.subr.bf16.mxu0 0
    %1948 = vmatpush2.bf16.msra.mxu0 0
    %1949 = vmatprep.mubr.bf16.mxu0 0
    %1950 = vmatmul.mubr.bf16.gmra.mxu0 %v1867
    %v1951 = vpop.f32.mrf.mxu0
    %v1952 = vadd.f32 0.0, %v1951
    %v1953 = vpop.f32.mrf.mxu0
    %v1954 = vpop.f32.mrf.mxu0
    %v1955 = vpop.f32.mrf.mxu0
    %1956 = vdwg.mxu0
    %v1957 = vadd.f32 %v1847, %v1952
    %s1958 = scalar_lea.vmem %s3, 640
    %v1959 = vld [vmem:[%s1958] sm:$0xf]
    %v1960 = vld [vmem:[%s1958 + $0x4] sm:$0xf]
    %v1961 = vld [vmem:[%s1958 + $0x8] sm:$0xf]
    %v1962 = vld [vmem:[%s1958 + $0xc] sm:$0xf]
    %v1963 = vld [vmem:[%s1958 + $0x10] sm:$0xf]
    %v1964 = vld [vmem:[%s1958 + $0x14] sm:$0xf]
    %v1965 = vld [vmem:[%s1958 + $0x18] sm:$0xf]
    %v1966 = vld [vmem:[%s1958 + $0x1c] sm:$0xf]
    %v1967 = vld [vmem:[%s1958 + $0x20] sm:$0xf]
    %v1968 = vld [vmem:[%s1958 + $0x24] sm:$0xf]
    %v1969 = vld [vmem:[%s1958 + $0x28] sm:$0xf]
    %v1970 = vld [vmem:[%s1958 + $0x2c] sm:$0xf]
    %v1971 = vld [vmem:[%s1958 + $0x30] sm:$0xf]
    %v1972 = vld [vmem:[%s1958 + $0x34] sm:$0xf]
    %v1973 = vld [vmem:[%s1958 + $0x38] sm:$0xf]
    %v1974 = vld [vmem:[%s1958 + $0x3c] sm:$0xf]
    %v1975 = vrot.slane %v1753, 2
    %v1976 = vrot.slane %v1754, 1
    %v1977 = vsel %vm886, %v1976, %v1975
    %v1978 = vpack.c.b16 %v1977, %v1977
    %v1996 = vunpack.c.l.b16 %v1959
    %v1997 = vunpack.c.l.b16 %v1960
    %v1998 = vunpack.c.l.b16 %v1961
    %v1999 = vunpack.c.l.b16 %v1962
    %v2000 = vunpack.c.l.b16 %v1963
    %v2001 = vunpack.c.l.b16 %v1964
    %v2002 = vunpack.c.l.b16 %v1965
    %v2003 = vunpack.c.l.b16 %v1966
    %v2004 = vunpack.c.l.b16 %v1967
    %v2005 = vunpack.c.l.b16 %v1968
    %v2006 = vunpack.c.l.b16 %v1969
    %v2007 = vunpack.c.l.b16 %v1970
    %v2008 = vunpack.c.l.b16 %v1971
    %v2009 = vunpack.c.l.b16 %v1972
    %v2010 = vunpack.c.l.b16 %v1973
    %v2011 = vunpack.c.l.b16 %v1974
    %v2012 = vpack.c.b16 %v1997, %v1996
    %v2013 = vpack.c.b16 %v1999, %v1998
    %v2014 = vpack.c.b16 %v2001, %v2000
    %v2015 = vpack.c.b16 %v2003, %v2002
    %v2016 = vpack.c.b16 %v2005, %v2004
    %v2017 = vpack.c.b16 %v2007, %v2006
    %v2018 = vpack.c.b16 %v2009, %v2008
    %v2019 = vpack.c.b16 %v2011, %v2010
    %2028 = vmatprep.subr.bf16.mxu0 0
    %2029 = vmatpush1.bf16.msra.mxu0 %v2019
    %2030 = vmatprep.subr.bf16.mxu0 0
    %2031 = vmatpush1.bf16.msra.mxu0 %v2018
    %2032 = vmatprep.subr.bf16.mxu0 0
    %2033 = vmatpush1.bf16.msra.mxu0 %v2017
    %2034 = vmatprep.subr.bf16.mxu0 0
    %2035 = vmatpush1.bf16.msra.mxu0 %v2016
    %2036 = vmatprep.subr.bf16.mxu0 0
    %2037 = vmatpush1.bf16.msra.mxu0 %v2015
    %2038 = vmatprep.subr.bf16.mxu0 0
    %2039 = vmatpush1.bf16.msra.mxu0 %v2014
    %2040 = vmatprep.subr.bf16.mxu0 0
    %2041 = vmatpush1.bf16.msra.mxu0 %v2013
    %2042 = vmatprep.subr.bf16.mxu0 0
    %2043 = vmatpush1.bf16.msra.mxu0 %v2012
    %2044 = vmatprep.subr.bf16.mxu0 0
    %2045 = vmatpush2.bf16.msra.mxu0 0
    %2046 = vmatprep.subr.bf16.mxu0 0
    %2047 = vmatpush2.bf16.msra.mxu0 0
    %2048 = vmatprep.subr.bf16.mxu0 0
    %2049 = vmatpush2.bf16.msra.mxu0 0
    %2050 = vmatprep.subr.bf16.mxu0 0
    %2051 = vmatpush2.bf16.msra.mxu0 0
    %2052 = vmatprep.subr.bf16.mxu0 0
    %2053 = vmatpush2.bf16.msra.mxu0 0
    %2054 = vmatprep.subr.bf16.mxu0 0
    %2055 = vmatpush2.bf16.msra.mxu0 0
    %2056 = vmatprep.subr.bf16.mxu0 0
    %2057 = vmatpush2.bf16.msra.mxu0 0
    %2058 = vmatprep.subr.bf16.mxu0 0
    %2059 = vmatpush2.bf16.msra.mxu0 0
    %2060 = vmatprep.mubr.bf16.mxu0 0
    %2061 = vmatmul.mubr.bf16.gmra.mxu0 %v1978
    %v2062 = vpop.f32.mrf.mxu0
    %v2063 = vadd.f32 0.0, %v2062
    %v2064 = vpop.f32.mrf.mxu0
    %v2065 = vpop.f32.mrf.mxu0
    %v2066 = vpop.f32.mrf.mxu0
    %2067 = vdwg.mxu0
    %v2068 = vadd.f32 %v1957, %v2063
    %s2069 = scalar_lea.vmem %s3, 704
    %v2070 = vld [vmem:[%s2069] sm:$0xf]
    %v2071 = vld [vmem:[%s2069 + $0x4] sm:$0xf]
    %v2072 = vld [vmem:[%s2069 + $0x8] sm:$0xf]
    %v2073 = vld [vmem:[%s2069 + $0xc] sm:$0xf]
    %v2074 = vld [vmem:[%s2069 + $0x10] sm:$0xf]
    %v2075 = vld [vmem:[%s2069 + $0x14] sm:$0xf]
    %v2076 = vld [vmem:[%s2069 + $0x18] sm:$0xf]
    %v2077 = vld [vmem:[%s2069 + $0x1c] sm:$0xf]
    %v2078 = vld [vmem:[%s2069 + $0x20] sm:$0xf]
    %v2079 = vld [vmem:[%s2069 + $0x24] sm:$0xf]
    %v2080 = vld [vmem:[%s2069 + $0x28] sm:$0xf]
    %v2081 = vld [vmem:[%s2069 + $0x2c] sm:$0xf]
    %v2082 = vld [vmem:[%s2069 + $0x30] sm:$0xf]
    %v2083 = vld [vmem:[%s2069 + $0x34] sm:$0xf]
    %v2084 = vld [vmem:[%s2069 + $0x38] sm:$0xf]
    %v2085 = vld [vmem:[%s2069 + $0x3c] sm:$0xf]
    %v2086 = vrot.slane %v1753, 3
    %v2087 = vrot.slane %v1754, 2
    %v2088 = vsel %vm886, %v2087, %v2086
    %v2089 = vpack.c.b16 %v2088, %v2088
    %v2107 = vunpack.c.l.b16 %v2070
    %v2108 = vunpack.c.l.b16 %v2071
    %v2109 = vunpack.c.l.b16 %v2072
    %v2110 = vunpack.c.l.b16 %v2073
    %v2111 = vunpack.c.l.b16 %v2074
    %v2112 = vunpack.c.l.b16 %v2075
    %v2113 = vunpack.c.l.b16 %v2076
    %v2114 = vunpack.c.l.b16 %v2077
    %v2115 = vunpack.c.l.b16 %v2078
    %v2116 = vunpack.c.l.b16 %v2079
    %v2117 = vunpack.c.l.b16 %v2080
    %v2118 = vunpack.c.l.b16 %v2081
    %v2119 = vunpack.c.l.b16 %v2082
    %v2120 = vunpack.c.l.b16 %v2083
    %v2121 = vunpack.c.l.b16 %v2084
    %v2122 = vunpack.c.l.b16 %v2085
    %v2123 = vpack.c.b16 %v2108, %v2107
    %v2124 = vpack.c.b16 %v2110, %v2109
    %v2125 = vpack.c.b16 %v2112, %v2111
    %v2126 = vpack.c.b16 %v2114, %v2113
    %v2127 = vpack.c.b16 %v2116, %v2115
    %v2128 = vpack.c.b16 %v2118, %v2117
    %v2129 = vpack.c.b16 %v2120, %v2119
    %v2130 = vpack.c.b16 %v2122, %v2121
    %2139 = vmatprep.subr.bf16.mxu0 0
    %2140 = vmatpush1.bf16.msra.mxu0 %v2130
    %2141 = vmatprep.subr.bf16.mxu0 0
    %2142 = vmatpush1.bf16.msra.mxu0 %v2129
    %2143 = vmatprep.subr.bf16.mxu0 0
    %2144 = vmatpush1.bf16.msra.mxu0 %v2128
    %2145 = vmatprep.subr.bf16.mxu0 0
    %2146 = vmatpush1.bf16.msra.mxu0 %v2127
    %2147 = vmatprep.subr.bf16.mxu0 0
    %2148 = vmatpush1.bf16.msra.mxu0 %v2126
    %2149 = vmatprep.subr.bf16.mxu0 0
    %2150 = vmatpush1.bf16.msra.mxu0 %v2125
    %2151 = vmatprep.subr.bf16.mxu0 0
    %2152 = vmatpush1.bf16.msra.mxu0 %v2124
    %2153 = vmatprep.subr.bf16.mxu0 0
    %2154 = vmatpush1.bf16.msra.mxu0 %v2123
    %2155 = vmatprep.subr.bf16.mxu0 0
    %2156 = vmatpush2.bf16.msra.mxu0 0
    %2157 = vmatprep.subr.bf16.mxu0 0
    %2158 = vmatpush2.bf16.msra.mxu0 0
    %2159 = vmatprep.subr.bf16.mxu0 0
    %2160 = vmatpush2.bf16.msra.mxu0 0
    %2161 = vmatprep.subr.bf16.mxu0 0
    %2162 = vmatpush2.bf16.msra.mxu0 0
    %2163 = vmatprep.subr.bf16.mxu0 0
    %2164 = vmatpush2.bf16.msra.mxu0 0
    %2165 = vmatprep.subr.bf16.mxu0 0
    %2166 = vmatpush2.bf16.msra.mxu0 0
    %2167 = vmatprep.subr.bf16.mxu0 0
    %2168 = vmatpush2.bf16.msra.mxu0 0
    %2169 = vmatprep.subr.bf16.mxu0 0
    %2170 = vmatpush2.bf16.msra.mxu0 0
    %2171 = vmatprep.mubr.bf16.mxu0 0
    %2172 = vmatmul.mubr.bf16.gmra.mxu0 %v2089
    %v2173 = vpop.f32.mrf.mxu0
    %v2174 = vadd.f32 0.0, %v2173
    %v2175 = vpop.f32.mrf.mxu0
    %v2176 = vpop.f32.mrf.mxu0
    %v2177 = vpop.f32.mrf.mxu0
    %2178 = vdwg.mxu0
    %v2179 = vadd.f32 %v2068, %v2174
    %s2180 = scalar_lea.vmem %s3, 768
    %v2181 = vld [vmem:[%s2180] sm:$0xf]
    %v2182 = vld [vmem:[%s2180 + $0x4] sm:$0xf]
    %v2183 = vld [vmem:[%s2180 + $0x8] sm:$0xf]
    %v2184 = vld [vmem:[%s2180 + $0xc] sm:$0xf]
    %v2185 = vld [vmem:[%s2180 + $0x10] sm:$0xf]
    %v2186 = vld [vmem:[%s2180 + $0x14] sm:$0xf]
    %v2187 = vld [vmem:[%s2180 + $0x18] sm:$0xf]
    %v2188 = vld [vmem:[%s2180 + $0x1c] sm:$0xf]
    %v2189 = vld [vmem:[%s2180 + $0x20] sm:$0xf]
    %v2190 = vld [vmem:[%s2180 + $0x24] sm:$0xf]
    %v2191 = vld [vmem:[%s2180 + $0x28] sm:$0xf]
    %v2192 = vld [vmem:[%s2180 + $0x2c] sm:$0xf]
    %v2193 = vld [vmem:[%s2180 + $0x30] sm:$0xf]
    %v2194 = vld [vmem:[%s2180 + $0x34] sm:$0xf]
    %v2195 = vld [vmem:[%s2180 + $0x38] sm:$0xf]
    %v2196 = vld [vmem:[%s2180 + $0x3c] sm:$0xf]
    %v2197 = vrot.slane %v1753, 4
    %v2198 = vrot.slane %v1754, 3
    %v2199 = vsel %vm886, %v2198, %v2197
    %v2200 = vpack.c.b16 %v2199, %v2199
    %v2218 = vunpack.c.l.b16 %v2181
    %v2219 = vunpack.c.l.b16 %v2182
    %v2220 = vunpack.c.l.b16 %v2183
    %v2221 = vunpack.c.l.b16 %v2184
    %v2222 = vunpack.c.l.b16 %v2185
    %v2223 = vunpack.c.l.b16 %v2186
    %v2224 = vunpack.c.l.b16 %v2187
    %v2225 = vunpack.c.l.b16 %v2188
    %v2226 = vunpack.c.l.b16 %v2189
    %v2227 = vunpack.c.l.b16 %v2190
    %v2228 = vunpack.c.l.b16 %v2191
    %v2229 = vunpack.c.l.b16 %v2192
    %v2230 = vunpack.c.l.b16 %v2193
    %v2231 = vunpack.c.l.b16 %v2194
    %v2232 = vunpack.c.l.b16 %v2195
    %v2233 = vunpack.c.l.b16 %v2196
    %v2234 = vpack.c.b16 %v2219, %v2218
    %v2235 = vpack.c.b16 %v2221, %v2220
    %v2236 = vpack.c.b16 %v2223, %v2222
    %v2237 = vpack.c.b16 %v2225, %v2224
    %v2238 = vpack.c.b16 %v2227, %v2226
    %v2239 = vpack.c.b16 %v2229, %v2228
    %v2240 = vpack.c.b16 %v2231, %v2230
    %v2241 = vpack.c.b16 %v2233, %v2232
    %2250 = vmatprep.subr.bf16.mxu0 0
    %2251 = vmatpush1.bf16.msra.mxu0 %v2241
    %2252 = vmatprep.subr.bf16.mxu0 0
    %2253 = vmatpush1.bf16.msra.mxu0 %v2240
    %2254 = vmatprep.subr.bf16.mxu0 0
    %2255 = vmatpush1.bf16.msra.mxu0 %v2239
    %2256 = vmatprep.subr.bf16.mxu0 0
    %2257 = vmatpush1.bf16.msra.mxu0 %v2238
    %2258 = vmatprep.subr.bf16.mxu0 0
    %2259 = vmatpush1.bf16.msra.mxu0 %v2237
    %2260 = vmatprep.subr.bf16.mxu0 0
    %2261 = vmatpush1.bf16.msra.mxu0 %v2236
    %2262 = vmatprep.subr.bf16.mxu0 0
    %2263 = vmatpush1.bf16.msra.mxu0 %v2235
    %2264 = vmatprep.subr.bf16.mxu0 0
    %2265 = vmatpush1.bf16.msra.mxu0 %v2234
    %2266 = vmatprep.subr.bf16.mxu0 0
    %2267 = vmatpush2.bf16.msra.mxu0 0
    %2268 = vmatprep.subr.bf16.mxu0 0
    %2269 = vmatpush2.bf16.msra.mxu0 0
    %2270 = vmatprep.subr.bf16.mxu0 0
    %2271 = vmatpush2.bf16.msra.mxu0 0
    %2272 = vmatprep.subr.bf16.mxu0 0
    %2273 = vmatpush2.bf16.msra.mxu0 0
    %2274 = vmatprep.subr.bf16.mxu0 0
    %2275 = vmatpush2.bf16.msra.mxu0 0
    %2276 = vmatprep.subr.bf16.mxu0 0
    %2277 = vmatpush2.bf16.msra.mxu0 0
    %2278 = vmatprep.subr.bf16.mxu0 0
    %2279 = vmatpush2.bf16.msra.mxu0 0
    %2280 = vmatprep.subr.bf16.mxu0 0
    %2281 = vmatpush2.bf16.msra.mxu0 0
    %2282 = vmatprep.mubr.bf16.mxu0 0
    %2283 = vmatmul.mubr.bf16.gmra.mxu0 %v2200
    %v2284 = vpop.f32.mrf.mxu0
    %v2285 = vadd.f32 0.0, %v2284
    %v2286 = vpop.f32.mrf.mxu0
    %v2287 = vpop.f32.mrf.mxu0
    %v2288 = vpop.f32.mrf.mxu0
    %2289 = vdwg.mxu0
    %v2290 = vadd.f32 %v2179, %v2285
    %s2291 = scalar_lea.vmem %s3, 832
    %v2292 = vld [vmem:[%s2291] sm:$0xf]
    %v2293 = vld [vmem:[%s2291 + $0x4] sm:$0xf]
    %v2294 = vld [vmem:[%s2291 + $0x8] sm:$0xf]
    %v2295 = vld [vmem:[%s2291 + $0xc] sm:$0xf]
    %v2296 = vld [vmem:[%s2291 + $0x10] sm:$0xf]
    %v2297 = vld [vmem:[%s2291 + $0x14] sm:$0xf]
    %v2298 = vld [vmem:[%s2291 + $0x18] sm:$0xf]
    %v2299 = vld [vmem:[%s2291 + $0x1c] sm:$0xf]
    %v2300 = vld [vmem:[%s2291 + $0x20] sm:$0xf]
    %v2301 = vld [vmem:[%s2291 + $0x24] sm:$0xf]
    %v2302 = vld [vmem:[%s2291 + $0x28] sm:$0xf]
    %v2303 = vld [vmem:[%s2291 + $0x2c] sm:$0xf]
    %v2304 = vld [vmem:[%s2291 + $0x30] sm:$0xf]
    %v2305 = vld [vmem:[%s2291 + $0x34] sm:$0xf]
    %v2306 = vld [vmem:[%s2291 + $0x38] sm:$0xf]
    %v2307 = vld [vmem:[%s2291 + $0x3c] sm:$0xf]
    %v2308 = vrot.slane %v1753, 5
    %v2309 = vrot.slane %v1754, 4
    %v2310 = vsel %vm886, %v2309, %v2308
    %v2311 = vpack.c.b16 %v2310, %v2310
    %v2329 = vunpack.c.l.b16 %v2292
    %v2330 = vunpack.c.l.b16 %v2293
    %v2331 = vunpack.c.l.b16 %v2294
    %v2332 = vunpack.c.l.b16 %v2295
    %v2333 = vunpack.c.l.b16 %v2296
    %v2334 = vunpack.c.l.b16 %v2297
    %v2335 = vunpack.c.l.b16 %v2298
    %v2336 = vunpack.c.l.b16 %v2299
    %v2337 = vunpack.c.l.b16 %v2300
    %v2338 = vunpack.c.l.b16 %v2301
    %v2339 = vunpack.c.l.b16 %v2302
    %v2340 = vunpack.c.l.b16 %v2303
    %v2341 = vunpack.c.l.b16 %v2304
    %v2342 = vunpack.c.l.b16 %v2305
    %v2343 = vunpack.c.l.b16 %v2306
    %v2344 = vunpack.c.l.b16 %v2307
    %v2345 = vpack.c.b16 %v2330, %v2329
    %v2346 = vpack.c.b16 %v2332, %v2331
    %v2347 = vpack.c.b16 %v2334, %v2333
    %v2348 = vpack.c.b16 %v2336, %v2335
    %v2349 = vpack.c.b16 %v2338, %v2337
    %v2350 = vpack.c.b16 %v2340, %v2339
    %v2351 = vpack.c.b16 %v2342, %v2341
    %v2352 = vpack.c.b16 %v2344, %v2343
    %2361 = vmatprep.subr.bf16.mxu0 0
    %2362 = vmatpush1.bf16.msra.mxu0 %v2352
    %2363 = vmatprep.subr.bf16.mxu0 0
    %2364 = vmatpush1.bf16.msra.mxu0 %v2351
    %2365 = vmatprep.subr.bf16.mxu0 0
    %2366 = vmatpush1.bf16.msra.mxu0 %v2350
    %2367 = vmatprep.subr.bf16.mxu0 0
    %2368 = vmatpush1.bf16.msra.mxu0 %v2349
    %2369 = vmatprep.subr.bf16.mxu0 0
    %2370 = vmatpush1.bf16.msra.mxu0 %v2348
    %2371 = vmatprep.subr.bf16.mxu0 0
    %2372 = vmatpush1.bf16.msra.mxu0 %v2347
    %2373 = vmatprep.subr.bf16.mxu0 0
    %2374 = vmatpush1.bf16.msra.mxu0 %v2346
    %2375 = vmatprep.subr.bf16.mxu0 0
    %2376 = vmatpush1.bf16.msra.mxu0 %v2345
    %2377 = vmatprep.subr.bf16.mxu0 0
    %2378 = vmatpush2.bf16.msra.mxu0 0
    %2379 = vmatprep.subr.bf16.mxu0 0
    %2380 = vmatpush2.bf16.msra.mxu0 0
    %2381 = vmatprep.subr.bf16.mxu0 0
    %2382 = vmatpush2.bf16.msra.mxu0 0
    %2383 = vmatprep.subr.bf16.mxu0 0
    %2384 = vmatpush2.bf16.msra.mxu0 0
    %2385 = vmatprep.subr.bf16.mxu0 0
    %2386 = vmatpush2.bf16.msra.mxu0 0
    %2387 = vmatprep.subr.bf16.mxu0 0
    %2388 = vmatpush2.bf16.msra.mxu0 0
    %2389 = vmatprep.subr.bf16.mxu0 0
    %2390 = vmatpush2.bf16.msra.mxu0 0
    %2391 = vmatprep.subr.bf16.mxu0 0
    %2392 = vmatpush2.bf16.msra.mxu0 0
    %2393 = vmatprep.mubr.bf16.mxu0 0
    %2394 = vmatmul.mubr.bf16.gmra.mxu0 %v2311
    %v2395 = vpop.f32.mrf.mxu0
    %v2396 = vadd.f32 0.0, %v2395
    %v2397 = vpop.f32.mrf.mxu0
    %v2398 = vpop.f32.mrf.mxu0
    %v2399 = vpop.f32.mrf.mxu0
    %2400 = vdwg.mxu0
    %v2401 = vadd.f32 %v2290, %v2396
    %s2402 = scalar_lea.vmem %s3, 896
    %v2403 = vld [vmem:[%s2402] sm:$0xf]
    %v2404 = vld [vmem:[%s2402 + $0x4] sm:$0xf]
    %v2405 = vld [vmem:[%s2402 + $0x8] sm:$0xf]
    %v2406 = vld [vmem:[%s2402 + $0xc] sm:$0xf]
    %v2407 = vld [vmem:[%s2402 + $0x10] sm:$0xf]
    %v2408 = vld [vmem:[%s2402 + $0x14] sm:$0xf]
    %v2409 = vld [vmem:[%s2402 + $0x18] sm:$0xf]
    %v2410 = vld [vmem:[%s2402 + $0x1c] sm:$0xf]
    %v2411 = vld [vmem:[%s2402 + $0x20] sm:$0xf]
    %v2412 = vld [vmem:[%s2402 + $0x24] sm:$0xf]
    %v2413 = vld [vmem:[%s2402 + $0x28] sm:$0xf]
    %v2414 = vld [vmem:[%s2402 + $0x2c] sm:$0xf]
    %v2415 = vld [vmem:[%s2402 + $0x30] sm:$0xf]
    %v2416 = vld [vmem:[%s2402 + $0x34] sm:$0xf]
    %v2417 = vld [vmem:[%s2402 + $0x38] sm:$0xf]
    %v2418 = vld [vmem:[%s2402 + $0x3c] sm:$0xf]
    %v2419 = vrot.slane %v1753, 6
    %v2420 = vrot.slane %v1754, 5
    %v2421 = vsel %vm886, %v2420, %v2419
    %v2422 = vpack.c.b16 %v2421, %v2421
    %v2440 = vunpack.c.l.b16 %v2403
    %v2441 = vunpack.c.l.b16 %v2404
    %v2442 = vunpack.c.l.b16 %v2405
    %v2443 = vunpack.c.l.b16 %v2406
    %v2444 = vunpack.c.l.b16 %v2407
    %v2445 = vunpack.c.l.b16 %v2408
    %v2446 = vunpack.c.l.b16 %v2409
    %v2447 = vunpack.c.l.b16 %v2410
    %v2448 = vunpack.c.l.b16 %v2411
    %v2449 = vunpack.c.l.b16 %v2412
    %v2450 = vunpack.c.l.b16 %v2413
    %v2451 = vunpack.c.l.b16 %v2414
    %v2452 = vunpack.c.l.b16 %v2415
    %v2453 = vunpack.c.l.b16 %v2416
    %v2454 = vunpack.c.l.b16 %v2417
    %v2455 = vunpack.c.l.b16 %v2418
    %v2456 = vpack.c.b16 %v2441, %v2440
    %v2457 = vpack.c.b16 %v2443, %v2442
    %v2458 = vpack.c.b16 %v2445, %v2444
    %v2459 = vpack.c.b16 %v2447, %v2446
    %v2460 = vpack.c.b16 %v2449, %v2448
    %v2461 = vpack.c.b16 %v2451, %v2450
    %v2462 = vpack.c.b16 %v2453, %v2452
    %v2463 = vpack.c.b16 %v2455, %v2454
    %2472 = vmatprep.subr.bf16.mxu0 0
    %2473 = vmatpush1.bf16.msra.mxu0 %v2463
    %2474 = vmatprep.subr.bf16.mxu0 0
    %2475 = vmatpush1.bf16.msra.mxu0 %v2462
    %2476 = vmatprep.subr.bf16.mxu0 0
    %2477 = vmatpush1.bf16.msra.mxu0 %v2461
    %2478 = vmatprep.subr.bf16.mxu0 0
    %2479 = vmatpush1.bf16.msra.mxu0 %v2460
    %2480 = vmatprep.subr.bf16.mxu0 0
    %2481 = vmatpush1.bf16.msra.mxu0 %v2459
    %2482 = vmatprep.subr.bf16.mxu0 0
    %2483 = vmatpush1.bf16.msra.mxu0 %v2458
    %2484 = vmatprep.subr.bf16.mxu0 0
    %2485 = vmatpush1.bf16.msra.mxu0 %v2457
    %2486 = vmatprep.subr.bf16.mxu0 0
    %2487 = vmatpush1.bf16.msra.mxu0 %v2456
    %2488 = vmatprep.subr.bf16.mxu0 0
    %2489 = vmatpush2.bf16.msra.mxu0 0
    %2490 = vmatprep.subr.bf16.mxu0 0
    %2491 = vmatpush2.bf16.msra.mxu0 0
    %2492 = vmatprep.subr.bf16.mxu0 0
    %2493 = vmatpush2.bf16.msra.mxu0 0
    %2494 = vmatprep.subr.bf16.mxu0 0
    %2495 = vmatpush2.bf16.msra.mxu0 0
    %2496 = vmatprep.subr.bf16.mxu0 0
    %2497 = vmatpush2.bf16.msra.mxu0 0
    %2498 = vmatprep.subr.bf16.mxu0 0
    %2499 = vmatpush2.bf16.msra.mxu0 0
    %2500 = vmatprep.subr.bf16.mxu0 0
    %2501 = vmatpush2.bf16.msra.mxu0 0
    %2502 = vmatprep.subr.bf16.mxu0 0
    %2503 = vmatpush2.bf16.msra.mxu0 0
    %2504 = vmatprep.mubr.bf16.mxu0 0
    %2505 = vmatmul.mubr.bf16.gmra.mxu0 %v2422
    %v2506 = vpop.f32.mrf.mxu0
    %v2507 = vadd.f32 0.0, %v2506
    %v2508 = vpop.f32.mrf.mxu0
    %v2509 = vpop.f32.mrf.mxu0
    %v2510 = vpop.f32.mrf.mxu0
    %2511 = vdwg.mxu0
    %v2512 = vadd.f32 %v2401, %v2507
    %s2513 = scalar_lea.vmem %s3, 960
    %v2514 = vld [vmem:[%s2513] sm:$0xf]
    %v2515 = vld [vmem:[%s2513 + $0x4] sm:$0xf]
    %v2516 = vld [vmem:[%s2513 + $0x8] sm:$0xf]
    %v2517 = vld [vmem:[%s2513 + $0xc] sm:$0xf]
    %v2518 = vld [vmem:[%s2513 + $0x10] sm:$0xf]
    %v2519 = vld [vmem:[%s2513 + $0x14] sm:$0xf]
    %v2520 = vld [vmem:[%s2513 + $0x18] sm:$0xf]
    %v2521 = vld [vmem:[%s2513 + $0x1c] sm:$0xf]
    %v2522 = vld [vmem:[%s2513 + $0x20] sm:$0xf]
    %v2523 = vld [vmem:[%s2513 + $0x24] sm:$0xf]
    %v2524 = vld [vmem:[%s2513 + $0x28] sm:$0xf]
    %v2525 = vld [vmem:[%s2513 + $0x2c] sm:$0xf]
    %v2526 = vld [vmem:[%s2513 + $0x30] sm:$0xf]
    %v2527 = vld [vmem:[%s2513 + $0x34] sm:$0xf]
    %v2528 = vld [vmem:[%s2513 + $0x38] sm:$0xf]
    %v2529 = vld [vmem:[%s2513 + $0x3c] sm:$0xf]
    %v2530 = vrot.slane %v1753, 7
    %v2531 = vrot.slane %v1754, 6
    %v2532 = vsel %vm886, %v2531, %v2530
    %v2533 = vpack.c.b16 %v2532, %v2532
    %v2551 = vunpack.c.l.b16 %v2514
    %v2552 = vunpack.c.l.b16 %v2515
    %v2553 = vunpack.c.l.b16 %v2516
    %v2554 = vunpack.c.l.b16 %v2517
    %v2555 = vunpack.c.l.b16 %v2518
    %v2556 = vunpack.c.l.b16 %v2519
    %v2557 = vunpack.c.l.b16 %v2520
    %v2558 = vunpack.c.l.b16 %v2521
    %v2559 = vunpack.c.l.b16 %v2522
    %v2560 = vunpack.c.l.b16 %v2523
    %v2561 = vunpack.c.l.b16 %v2524
    %v2562 = vunpack.c.l.b16 %v2525
    %v2563 = vunpack.c.l.b16 %v2526
    %v2564 = vunpack.c.l.b16 %v2527
    %v2565 = vunpack.c.l.b16 %v2528
    %v2566 = vunpack.c.l.b16 %v2529
    %v2567 = vpack.c.b16 %v2552, %v2551
    %v2568 = vpack.c.b16 %v2554, %v2553
    %v2569 = vpack.c.b16 %v2556, %v2555
    %v2570 = vpack.c.b16 %v2558, %v2557
    %v2571 = vpack.c.b16 %v2560, %v2559
    %v2572 = vpack.c.b16 %v2562, %v2561
    %v2573 = vpack.c.b16 %v2564, %v2563
    %v2574 = vpack.c.b16 %v2566, %v2565
    %2583 = vmatprep.subr.bf16.mxu0 0
    %2584 = vmatpush1.bf16.msra.mxu0 %v2574
    %2585 = vmatprep.subr.bf16.mxu0 0
    %2586 = vmatpush1.bf16.msra.mxu0 %v2573
    %2587 = vmatprep.subr.bf16.mxu0 0
    %2588 = vmatpush1.bf16.msra.mxu0 %v2572
    %2589 = vmatprep.subr.bf16.mxu0 0
    %2590 = vmatpush1.bf16.msra.mxu0 %v2571
    %2591 = vmatprep.subr.bf16.mxu0 0
    %2592 = vmatpush1.bf16.msra.mxu0 %v2570
    %2593 = vmatprep.subr.bf16.mxu0 0
    %2594 = vmatpush1.bf16.msra.mxu0 %v2569
    %2595 = vmatprep.subr.bf16.mxu0 0
    %2596 = vmatpush1.bf16.msra.mxu0 %v2568
    %2597 = vmatprep.subr.bf16.mxu0 0
    %2598 = vmatpush1.bf16.msra.mxu0 %v2567
    %2599 = vmatprep.subr.bf16.mxu0 0
    %2600 = vmatpush2.bf16.msra.mxu0 0
    %2601 = vmatprep.subr.bf16.mxu0 0
    %2602 = vmatpush2.bf16.msra.mxu0 0
    %2603 = vmatprep.subr.bf16.mxu0 0
    %2604 = vmatpush2.bf16.msra.mxu0 0
    %2605 = vmatprep.subr.bf16.mxu0 0
    %2606 = vmatpush2.bf16.msra.mxu0 0
    %2607 = vmatprep.subr.bf16.mxu0 0
    %2608 = vmatpush2.bf16.msra.mxu0 0
    %2609 = vmatprep.subr.bf16.mxu0 0
    %2610 = vmatpush2.bf16.msra.mxu0 0
    %2611 = vmatprep.subr.bf16.mxu0 0
    %2612 = vmatpush2.bf16.msra.mxu0 0
    %2613 = vmatprep.subr.bf16.mxu0 0
    %2614 = vmatpush2.bf16.msra.mxu0 0
    %2615 = vmatprep.mubr.bf16.mxu0 0
    %2616 = vmatmul.mubr.bf16.gmra.mxu0 %v2533
    %v2617 = vpop.f32.mrf.mxu0
    %v2618 = vadd.f32 0.0, %v2617
    %v2619 = vpop.f32.mrf.mxu0
    %v2620 = vpop.f32.mrf.mxu0
    %v2621 = vpop.f32.mrf.mxu0
    %2622 = vdwg.mxu0
    %v2623 = vadd.f32 %v2512, %v2618
    %v2624 = vld [vmem:[%s4] sm:$0x1]
    %v2626 = vlaneseq
    %v2627 = vshrl.u32 %v2626, 7
    %v2628 = vsub.s32 0, %v2627
    %v2629 = vrot.slane %v2624, %v2628
    %v2631 = vadd.f32 %v2623, %v2629
    %v2632 = vmax.f32 %v2631, 0.0
    %v2633 = vpack.c.bf16 %v2632, %v2632
    %v2634 = vld [vmem:[%s5] sm:$0xff]
    %v2635 = vld [vmem:[%s5 + $0x8] sm:$0xff]
    %v2636 = vld [vmem:[%s5 + $0x10] sm:$0xff]
    %v2637 = vld [vmem:[%s5 + $0x18] sm:$0xff]
    %v2638 = vld [vmem:[%s5 + $0x20] sm:$0xff]
    %v2639 = vld [vmem:[%s5 + $0x28] sm:$0xff]
    %v2640 = vld [vmem:[%s5 + $0x30] sm:$0xff]
    %v2641 = vld [vmem:[%s5 + $0x38] sm:$0xff]
    %v2642 = vld [vmem:[%s5 + $0x40] sm:$0xff]
    %v2643 = vld [vmem:[%s5 + $0x48] sm:$0xff]
    %v2644 = vld [vmem:[%s5 + $0x50] sm:$0xff]
    %v2645 = vld [vmem:[%s5 + $0x58] sm:$0xff]
    %v2646 = vld [vmem:[%s5 + $0x60] sm:$0xff]
    %v2647 = vld [vmem:[%s5 + $0x68] sm:$0xff]
    %v2648 = vld [vmem:[%s5 + $0x70] sm:$0xff]
    %v2649 = vld [vmem:[%s5 + $0x78] sm:$0xff]
    %v2650 = vld [vmem:[%s6] sm:$0x3]
    %v2652 = vlaneseq
    %v2653 = vshrl.u32 %v2652, 7
    %v2654 = vsub.s32 0, %v2653
    %v2655 = vrot.slane %v2650, %v2654
    %v2656 = vlaneseq
    %v2657 = vshrl.u32 %v2656, 7
    %v2658 = vsub.s32 1, %v2657
    %v2659 = vrot.slane %v2650, %v2658
    %v2678 = vunpack.c.l.b16 %v2634
    %v2679 = vunpack.c.h.b16 %v2634
    %v2680 = vunpack.c.l.b16 %v2635
    %v2681 = vunpack.c.h.b16 %v2635
    %v2682 = vunpack.c.l.b16 %v2636
    %v2683 = vunpack.c.h.b16 %v2636
    %v2684 = vunpack.c.l.b16 %v2637
    %v2685 = vunpack.c.h.b16 %v2637
    %v2686 = vunpack.c.l.b16 %v2638
    %v2687 = vunpack.c.h.b16 %v2638
    %v2688 = vunpack.c.l.b16 %v2639
    %v2689 = vunpack.c.h.b16 %v2639
    %v2690 = vunpack.c.l.b16 %v2640
    %v2691 = vunpack.c.h.b16 %v2640
    %v2692 = vunpack.c.l.b16 %v2641
    %v2693 = vunpack.c.h.b16 %v2641
    %v2694 = vunpack.c.l.b16 %v2642
    %v2695 = vunpack.c.h.b16 %v2642
    %v2696 = vunpack.c.l.b16 %v2643
    %v2697 = vunpack.c.h.b16 %v2643
    %v2698 = vunpack.c.l.b16 %v2644
    %v2699 = vunpack.c.h.b16 %v2644
    %v2700 = vunpack.c.l.b16 %v2645
    %v2701 = vunpack.c.h.b16 %v2645
    %v2702 = vunpack.c.l.b16 %v2646
    %v2703 = vunpack.c.h.b16 %v2646
    %v2704 = vunpack.c.l.b16 %v2647
    %v2705 = vunpack.c.h.b16 %v2647
    %v2706 = vunpack.c.l.b16 %v2648
    %v2707 = vunpack.c.h.b16 %v2648
    %v2708 = vunpack.c.l.b16 %v2649
    %v2709 = vunpack.c.h.b16 %v2649
    %v2710 = vpack.c.b16 %v2680, %v2678
    %v2711 = vpack.c.b16 %v2681, %v2679
    %v2712 = vpack.c.b16 %v2684, %v2682
    %v2713 = vpack.c.b16 %v2685, %v2683
    %v2714 = vpack.c.b16 %v2688, %v2686
    %v2715 = vpack.c.b16 %v2689, %v2687
    %v2716 = vpack.c.b16 %v2692, %v2690
    %v2717 = vpack.c.b16 %v2693, %v2691
    %v2718 = vpack.c.b16 %v2696, %v2694
    %v2719 = vpack.c.b16 %v2697, %v2695
    %v2720 = vpack.c.b16 %v2700, %v2698
    %v2721 = vpack.c.b16 %v2701, %v2699
    %v2722 = vpack.c.b16 %v2704, %v2702
    %v2723 = vpack.c.b16 %v2705, %v2703
    %v2724 = vpack.c.b16 %v2708, %v2706
    %v2725 = vpack.c.b16 %v2709, %v2707
    %2742 = vmatprep.subr.bf16.mxu0 %v2725
    %2743 = vmatpush1.bf16.msra.mxu0 %v2724
    %2744 = vmatprep.subr.bf16.mxu0 %v2723
    %2745 = vmatpush1.bf16.msra.mxu0 %v2722
    %2746 = vmatprep.subr.bf16.mxu0 %v2721
    %2747 = vmatpush1.bf16.msra.mxu0 %v2720
    %2748 = vmatprep.subr.bf16.mxu0 %v2719
    %2749 = vmatpush1.bf16.msra.mxu0 %v2718
    %2750 = vmatprep.subr.bf16.mxu0 %v2717
    %2751 = vmatpush1.bf16.msra.mxu0 %v2716
    %2752 = vmatprep.subr.bf16.mxu0 %v2715
    %2753 = vmatpush1.bf16.msra.mxu0 %v2714
    %2754 = vmatprep.subr.bf16.mxu0 %v2713
    %2755 = vmatpush1.bf16.msra.mxu0 %v2712
    %2756 = vmatprep.subr.bf16.mxu0 %v2711
    %2757 = vmatpush1.bf16.msra.mxu0 %v2710
    %2758 = vmatprep.subr.bf16.mxu0 0
    %2759 = vmatpush2.bf16.msra.mxu0 0
    %2760 = vmatprep.subr.bf16.mxu0 0
    %2761 = vmatpush2.bf16.msra.mxu0 0
    %2762 = vmatprep.subr.bf16.mxu0 0
    %2763 = vmatpush2.bf16.msra.mxu0 0
    %2764 = vmatprep.subr.bf16.mxu0 0
    %2765 = vmatpush2.bf16.msra.mxu0 0
    %2766 = vmatprep.subr.bf16.mxu0 0
    %2767 = vmatpush2.bf16.msra.mxu0 0
    %2768 = vmatprep.subr.bf16.mxu0 0
    %2769 = vmatpush2.bf16.msra.mxu0 0
    %2770 = vmatprep.subr.bf16.mxu0 0
    %2771 = vmatpush2.bf16.msra.mxu0 0
    %2772 = vmatprep.subr.bf16.mxu0 0
    %2773 = vmatpush2.bf16.msra.mxu0 0
    %2774 = vmatprep.mubr.bf16.mxu0 0
    %2775 = vmatmul.mubr.bf16.gmra.mxu0 %v2633
    %v2776 = vpop.f32.mrf.mxu0
    %v2777 = vadd.f32 %v2655, %v2776
    %v2778 = vpop.f32.mrf.mxu0
    %v2779 = vadd.f32 %v2659, %v2778
    %v2780 = vpop.f32.mrf.mxu0
    %v2781 = vpop.f32.mrf.mxu0
    %2782 = vdwg.mxu0
    %v2783 = vlaneseq
    %v2784 = vand.u32 %v2783, 127
    %vm2785 = vcmp.lt.s32.totalorder %v2784, 16
    %v2786 = vsel %vm2785, %v2779, -1e+30
    %vm2787 = vcmask 1041408
    %v2788 = vsel %vm2787, %v2786, -inf
    %2789 = vmax.xlane.f32.xlu0 %v2788
    %v2790 = vpop.xlane.xlu0 %2789
    %v2791 = vsub.f32 %v2786, %v2790
    %v2792 = vmul.f32 %v2791, 1.442695
    %v2793 = vpow.pop %v2792
    %v2794 = vsel %vm2785, %v2793, 0.0
    %v2795 = vsel %vm2787, %v2794, 0.0
    %2796 = vadd.xlane.f32.xlu0 %v2795
    %v2797 = vpop.xlane.xlu0 %2796
    %v2798 = vrcp.pop %v2797
    %v2799 = vmul.f32 %v2794, %v2798
    %v2800 = vadd.f32 %v2799, 1e-06
    %2801 = vst [vmem:[#allocation2] sm:$0x3] %v2777
    %2802 = vst [vmem:[#allocation4] sm:$0x3] %v2800
    // Predicated region
    $region30: #{enc_svhn_forward.5} parent=1 // pred_check
      _
    $region31: #{enc_svhn_forward.5} parent=1 // pred_check_branch
      %2804 = sbr.rel (0) target = $region33
    $region32: #{enc_svhn_forward.5} parent=1 // pred_region
      %s2806 = ssub.s32 32, 32
      %2807 = vsyncadd [#allocation3], %s2806
      %s2809 = sshll.u32 [#allocation2], 4
      %s2810 = int_to_ptr.vmem [resolvable:$true] %s2809
      %2812 = dma.vmem_to_hbm [thread:$0]  %s2810, 32, %s7, [#allocation3]
    $region33: #{enc_svhn_forward.5} parent=1 // pred_fallthru
      _
    // Predicated region
    $region34: #{enc_svhn_forward.5} parent=1 // pred_check
      _
    $region35: #{enc_svhn_forward.5} parent=1 // pred_check_branch
      %2814 = sbr.rel (0) target = $region37
    $region36: #{enc_svhn_forward.5} parent=1 // pred_region
      %s2816 = ssub.s32 32, 32
      %2817 = vsyncadd [#allocation5], %s2816
      %s2819 = sshll.u32 [#allocation4], 4
      %s2820 = int_to_ptr.vmem [resolvable:$true] %s2819
      %2822 = dma.vmem_to_hbm [thread:$0]  %s2820, 32, %s8, [#allocation5]
    $region37: #{enc_svhn_forward.5} parent=1 // pred_fallthru
      _
    // Predicated region
    $region38: #{enc_svhn_forward.5} parent=1 // pred_check
      _
    $region39: #{enc_svhn_forward.5} parent=1 // pred_check_branch
      %2824 = sbr.rel (0) target = $region41
    $region40: #{enc_svhn_forward.5} parent=1 // pred_region
      %2825 = dma.done [#allocation3], 32
    $region41: #{enc_svhn_forward.5} parent=1 // pred_fallthru
      _
    // Predicated region
    $region42: #{enc_svhn_forward.5} parent=1 // pred_check
      _
    $region43: #{enc_svhn_forward.5} parent=1 // pred_check_branch
      %2827 = sbr.rel (0) target = $region45
    $region44: #{enc_svhn_forward.5} parent=1 // pred_region
      %2828 = dma.done [#allocation5], 32
    $region45: #{enc_svhn_forward.5} parent=1 // pred_fallthru
      _
    %2829 = vsyncpa [#allocation3], 1
    %2830 = vsyncpa [#allocation5], 1

</llo_original>
